<compile_context>
chip_gen: v6e
topology: v6e:2x2x1
jax: 0.10.0
libtpu: 0.0.40
codegen_flags: <defaults>
</compile_context>

<pallas_src>
import jax
import jax.numpy as jnp
from jax.experimental import pallas as pl
from jax.experimental.pallas import tpu as pltpu


MID_DIM = 32          # self.mid_dim in the module
LN_EPS = 1e-5
LEAKY_SLOPE = 0.2
ROW_TILE = 512        # rows (edges/points) per grid step


def _layer_norm(h, gamma, beta, eps):
    """LayerNorm over the last dim; used both inside the kernel and in the reference."""
    mu = jnp.mean(h, axis=-1, keepdims=True)
    d = h - mu
    var = jnp.mean(d * d, axis=-1, keepdims=True)
    return d * jax.lax.rsqrt(var + eps) * gamma + beta


def _radial_mlp_kernel(x_ref, w1_ref, w2_ref, w3_ref, p_ref, b3_ref, o_ref):
    # x_ref : (R, E)       tile of input positional encodings
    # w1    : (E, M)       w2 : (M, M)       w3 : (M, OUT)
    # p_ref : (5, M)       rows = [ln1_g, ln1_b, b2, ln2_g, ln2_b]
    # b3    : (1, OUT)
    # o_ref : (R, OUT)
    x = x_ref[...].astype(jnp.float32)
    p = p_ref[...].astype(jnp.float32)
    g1, be1, b2, g2, be2 = (p[0:1, :], p[1:2, :], p[2:3, :], p[3:4, :], p[4:5, :])

    # Linear(edge_dim -> mid, bias=False)                       [MXU]
    h = jnp.dot(x, w1_ref[...].astype(jnp.float32),
                preferred_element_type=jnp.float32)
    # LN + LeakyReLU(0.2)                                       [VPU + EUP rsqrt]
    h = _layer_norm(h, g1, be1, LN_EPS)
    h = jnp.where(h > 0, h, LEAKY_SLOPE * h)

    # Linear(mid -> mid, bias)                                  [MXU]
    h = jnp.dot(h, w2_ref[...].astype(jnp.float32),
                preferred_element_type=jnp.float32) + b2
    h = _layer_norm(h, g2, be2, LN_EPS)
    h = jnp.where(h > 0, h, LEAKY_SLOPE * h)

    # Linear(mid -> num_freq * in_dim * out_dim, bias)          [MXU]
    y = jnp.dot(h, w3_ref[...].astype(jnp.float32),
                preferred_element_type=jnp.float32) + b3_ref[...].astype(jnp.float32)
    o_ref[...] = y.astype(o_ref.dtype)


def _pack_small_params(params):
    """Stack the five (1, M) vectors into a single (5, M) resident block."""
    return jnp.concatenate(
        [params["ln1_g"], params["ln1_b"], params["b2"],
         params["ln2_g"], params["ln2_b"]], axis=0)


def _run_net_pallas(x, params, *, row_tile=ROW_TILE):
    """run_net(x): the fused radial MLP as a single Pallas kernel."""
    P, E = x.shape
    M = params["w1"].shape[1]
    OUT = params["w3"].shape[1]

    # Pad the row count to a multiple of the tile (cheap, sliced off below).
    n_blocks = pl.cdiv(P, row_tile)
    P_pad = n_blocks * row_tile
    if P_pad != P:
        x = jnp.pad(x, ((0, P_pad - P), (0, 0)))

    small = _pack_small_params(params)

    def const2(shape):  # whole-array block, resident across grid steps
        return pl.BlockSpec(shape, lambda i: (0, 0))

    flops = 2 * P_pad * (E * M + M * M + M * OUT) + 12 * P_pad * M
    bytes_accessed = 4 * (P_pad * E + P_pad * OUT
                          + E * M + M * M + M * OUT + 5 * M + OUT)
    cost = pl.CostEstimate(flops=flops,
                           transcendentals=2 * P_pad,      # 2 rsqrt per row
                           bytes_accessed=bytes_accessed)

    y = pl.pallas_call(
        _radial_mlp_kernel,
        out_shape=jax.ShapeDtypeStruct((P_pad, OUT), x.dtype),
        grid_spec=pltpu.PrefetchScalarGridSpec(
            num_scalar_prefetch=0,
            grid=(n_blocks,),
            in_specs=[
                pl.BlockSpec((row_tile, E), lambda i: (i, 0)),   # x tile
                const2((E, M)),       # w1
                const2((M, M)),       # w2
                const2((M, OUT)),     # w3
                const2((5, M)),       # packed [ln1_g, ln1_b, b2, ln2_g, ln2_b]
                const2((1, OUT)),     # b3
            ],
            out_specs=pl.BlockSpec((row_tile, OUT), lambda i: (i, 0)),
        ),
        compiler_params=pltpu.CompilerParams(
            dimension_semantics=("parallel",)),
        cost_estimate=cost,
    )(x, params["w1"], params["w2"], params["w3"], small, params["b3"])

    return y[:P]


def _run_net_ref(x, params, **_):
    """Pure-JAX reference of run_net (mirrors the PyTorch module)."""
    h = x @ params["w1"]
    h = _layer_norm(h, params["ln1_g"], params["ln1_b"], LN_EPS)
    h = jnp.where(h > 0, h, LEAKY_SLOPE * h)
    h = h @ params["w2"] + params["b2"]
    h = _layer_norm(h, params["ln2_g"], params["ln2_b"], LN_EPS)
    h = jnp.where(h > 0, h, LEAKY_SLOPE * h)
    return h @ params["w3"] + params["b3"]


def radial_func_forward(x, params, *, num_freq_component, in_dim, out_dim,
                        edge_dim, symmetric=False, reverse=False,
                        run_net=_run_net_pallas):
    """RadialFunc.forward: branching + final view are cheap JAX glue around the kernel."""
    a, b = num_freq_component
    num_freq = a * b
    P = x.shape[0]

    def swap_ab(y):
        # einops 'p (o i a b) -> p (o i b a)'
        return (y.reshape(P, out_dim, in_dim, a, b)
                 .transpose(0, 1, 2, 4, 3)
                 .reshape(P, out_dim * in_dim * num_freq))

    if edge_dim == 1:
        y = run_net(x, params)
    elif reverse:
        rev = jnp.concatenate([x[:, 1:], x[:, 0:1]], axis=1)
        y = swap_ab(run_net(rev, params))
    elif symmetric:
        # Stack original + reversed encodings -> one fused kernel launch.
        rev = jnp.concatenate([x[:, 1:], x[:, 0:1]], axis=1)
        y_both = run_net(jnp.concatenate([x, rev], axis=0), params)
        y_order, y_rev = y_both[:P], y_both[P:]
        y = (y_order + swap_ab(y_rev)) * 0.5
    else:
        y = run_net(x, params)

    return y.reshape(-1, out_dim, 1, in_dim, 1, num_freq)


if __name__ == "__main__":
    # Small shapes consistent with the module:
    NUM_FREQ = (3, 3)          # num_freq_component -> num_freq = 9
    IN_DIM = 4
    OUT_DIM = 4
    EDGE_DIM = 8               # edge feature / positional-encoding dim
    P = 512                    # number of edges / points
    M = MID_DIM
    OUT = NUM_FREQ[0] * NUM_FREQ[1] * IN_DIM * OUT_DIM   # 144

    key = jax.random.PRNGKey(0)
    ks = jax.random.split(key, 10)

    def kaiming_uniform(k, shape):
        bound = jnp.sqrt(6.0 / shape[0])
        return jax.random.uniform(k, shape, jnp.float32, -bound, bound)

    params = {
        "w1": kaiming_uniform(ks[0], (EDGE_DIM, M)),
        "ln1_g": 1.0 + 0.1 * jax.random.normal(ks[1], (1, M), jnp.float32),
        "ln1_b": 0.1 * jax.random.normal(ks[2], (1, M), jnp.float32),
        "w2": kaiming_uniform(ks[3], (M, M)),
        "b2": jax.random.uniform(ks[4], (1, M), jnp.float32, -0.1, 0.1),
        "ln2_g": 1.0 + 0.1 * jax.random.normal(ks[5], (1, M), jnp.float32),
        "ln2_b": 0.1 * jax.random.normal(ks[6], (1, M), jnp.float32),
        "w3": kaiming_uniform(ks[7], (M, OUT)),
        "b3": jax.random.uniform(ks[8], (1, OUT), jnp.float32, -0.1, 0.1),
    }
    x = jax.random.normal(ks[9], (P, EDGE_DIM), dtype=jnp.float32)

    kwargs = dict(num_freq_component=NUM_FREQ, in_dim=IN_DIM,
                  out_dim=OUT_DIM, edge_dim=EDGE_DIM)

    # Default branch
    out = radial_func_forward(x, params, **kwargs, run_net=_run_net_pallas)
    out = jax.block_until_ready(out)
    ref = radial_func_forward(x, params, **kwargs, run_net=_run_net_ref)
    assert out.shape == (P, OUT_DIM, 1, IN_DIM, 1, NUM_FREQ[0] * NUM_FREQ[1])
    assert jnp.allclose(out, ref, rtol=2e-3, atol=2e-3), "default branch mismatch"

    # Reverse branch
    out_rev = radial_func_forward(x, params, **kwargs, reverse=True,
                                  run_net=_run_net_pallas)
    out_rev = jax.block_until_ready(out_rev)
    ref_rev = radial_func_forward(x, params, **kwargs, reverse=True,
                                  run_net=_run_net_ref)
    assert jnp.allclose(out_rev, ref_rev, rtol=2e-3, atol=2e-3), "reverse branch mismatch"

    # Symmetric branch (original + reversed encodings fused into ONE kernel call)
    out_sym = radial_func_forward(x, params, **kwargs, symmetric=True,
                                  run_net=_run_net_pallas)
    out_sym = jax.block_until_ready(out_sym)
    ref_sym = radial_func_forward(x, params, **kwargs, symmetric=True,
                                  run_net=_run_net_ref)
    assert jnp.allclose(out_sym, ref_sym, rtol=2e-3, atol=2e-3), "symmetric branch mismatch"

    print("KERNEL_OK")
</pallas_src>

<mosaic_0001>
module attributes {stable_mosaic.version = 11 : i64} {
  func.func @_radial_mlp_kernel(%arg0: i32, %arg1: memref<512x8xf32, #tpu.memory_space<vmem>>, %arg2: memref<8x32xf32, #tpu.memory_space<vmem>>, %arg3: memref<32x32xf32, #tpu.memory_space<vmem>>, %arg4: memref<32x144xf32, #tpu.memory_space<vmem>>, %arg5: memref<5x32xf32, #tpu.memory_space<vmem>>, %arg6: memref<1x144xf32, #tpu.memory_space<vmem>>, %arg7: memref<512x144xf32, #tpu.memory_space<vmem>>) attributes {dimension_semantics = [#tpu.dimension_semantics<parallel>], iteration_bounds = array<i64: 1>, scalar_prefetch = 0 : i64, scratch_operands = 0 : i64, tpu.core_type = #tpu.core_type<tc>, window_params = [{transform_indices = @transform_0, window_bounds = array<i64: 512, 8>}, {pipeline_mode = #tpu.pipeline_mode<synchronous>, transform_indices = @transform_1, window_bounds = array<i64: 8, 32>}, {pipeline_mode = #tpu.pipeline_mode<synchronous>, transform_indices = @transform_2, window_bounds = array<i64: 32, 32>}, {pipeline_mode = #tpu.pipeline_mode<synchronous>, transform_indices = @transform_3, window_bounds = array<i64: 32, 144>}, {pipeline_mode = #tpu.pipeline_mode<synchronous>, transform_indices = @transform_4, window_bounds = array<i64: 5, 32>}, {pipeline_mode = #tpu.pipeline_mode<synchronous>, transform_indices = @transform_5, window_bounds = array<i64: 1, 144>}, {transform_indices = @transform_6, window_bounds = array<i64: 512, 144>}]} {
    %c0 = arith.constant 0 : index
    %c0_0 = arith.constant 0 : index
    %0 = vector.load %arg1[%c0, %c0_0] : memref<512x8xf32, #tpu.memory_space<vmem>>, vector<512x8xf32>
    %c0_1 = arith.constant 0 : index
    %c0_2 = arith.constant 0 : index
    %1 = vector.load %arg5[%c0_1, %c0_2] : memref<5x32xf32, #tpu.memory_space<vmem>>, vector<5x32xf32>
    %2 = vector.extract_strided_slice %1 {offsets = [0, 0], sizes = [1, 32], strides = [1, 1]} : vector<5x32xf32> to vector<1x32xf32>
    %3 = vector.extract_strided_slice %1 {offsets = [1, 0], sizes = [1, 32], strides = [1, 1]} : vector<5x32xf32> to vector<1x32xf32>
    %4 = vector.extract_strided_slice %1 {offsets = [2, 0], sizes = [1, 32], strides = [1, 1]} : vector<5x32xf32> to vector<1x32xf32>
    %5 = vector.extract_strided_slice %1 {offsets = [3, 0], sizes = [1, 32], strides = [1, 1]} : vector<5x32xf32> to vector<1x32xf32>
    %6 = vector.extract_strided_slice %1 {offsets = [4, 0], sizes = [1, 32], strides = [1, 1]} : vector<5x32xf32> to vector<1x32xf32>
    %c0_3 = arith.constant 0 : index
    %c0_4 = arith.constant 0 : index
    %7 = vector.load %arg2[%c0_3, %c0_4] : memref<8x32xf32, #tpu.memory_space<vmem>>, vector<8x32xf32>
    %cst = arith.constant dense<0.000000e+00> : vector<512x32xf32>
    %8 = tpu.matmul %0, %7, %cst {dimension_numbers = #tpu.dot_dimension_numbers<[1], [0], [0], [1], [0, 0, 1, 1], [], []>} : vector<512x8xf32>, vector<8x32xf32>, vector<512x32xf32> -> vector<512x32xf32>
    %cst_5 = arith.constant dense<0.000000e+00> : vector<512xf32>
    %9 = vector.multi_reduction <add>, %8, %cst_5 [1] : vector<512x32xf32> to vector<512xf32>
    %10 = vector.shape_cast %9 : vector<512xf32> to vector<512x1xf32>
    %cst_6 = arith.constant 3.200000e+01 : f32
    %11 = vector.broadcast %cst_6 : f32 to vector<512x1xf32>
    %12 = arith.divf %10, %11 : vector<512x1xf32>
    %13 = vector.broadcast %12 : vector<512x1xf32> to vector<512x32xf32>
    %14 = arith.subf %8, %13 : vector<512x32xf32>
    %15 = arith.mulf %14, %14 : vector<512x32xf32>
    %cst_7 = arith.constant dense<0.000000e+00> : vector<512xf32>
    %16 = vector.multi_reduction <add>, %15, %cst_7 [1] : vector<512x32xf32> to vector<512xf32>
    %17 = vector.shape_cast %16 : vector<512xf32> to vector<512x1xf32>
    %cst_8 = arith.constant 3.200000e+01 : f32
    %18 = vector.broadcast %cst_8 : f32 to vector<512x1xf32>
    %19 = arith.divf %17, %18 : vector<512x1xf32>
    %cst_9 = arith.constant 9.99999974E-6 : f32
    %20 = vector.broadcast %cst_9 : f32 to vector<512x1xf32>
    %21 = arith.addf %19, %20 : vector<512x1xf32>
    %22 = math.rsqrt %21 : vector<512x1xf32>
    %23 = vector.broadcast %22 : vector<512x1xf32> to vector<512x32xf32>
    %24 = arith.mulf %14, %23 : vector<512x32xf32>
    %25 = vector.broadcast %2 : vector<1x32xf32> to vector<512x32xf32>
    %26 = arith.mulf %24, %25 : vector<512x32xf32>
    %27 = vector.broadcast %3 : vector<1x32xf32> to vector<512x32xf32>
    %28 = arith.addf %26, %27 : vector<512x32xf32>
    %cst_10 = arith.constant 0.000000e+00 : f32
    %29 = vector.broadcast %cst_10 : f32 to vector<512x32xf32>
    %30 = arith.cmpf ogt, %28, %29 : vector<512x32xf32>
    %cst_11 = arith.constant 2.000000e-01 : f32
    %31 = vector.broadcast %cst_11 : f32 to vector<512x32xf32>
    %32 = arith.mulf %31, %28 : vector<512x32xf32>
    %33 = arith.select %30, %28, %32 : vector<512x32xi1>, vector<512x32xf32>
    %c0_12 = arith.constant 0 : index
    %c0_13 = arith.constant 0 : index
    %34 = vector.load %arg3[%c0_12, %c0_13] : memref<32x32xf32, #tpu.memory_space<vmem>>, vector<32x32xf32>
    %cst_14 = arith.constant dense<0.000000e+00> : vector<512x32xf32>
    %35 = tpu.matmul %33, %34, %cst_14 {dimension_numbers = #tpu.dot_dimension_numbers<[1], [0], [0], [1], [0, 0, 1, 1], [], []>} : vector<512x32xf32>, vector<32x32xf32>, vector<512x32xf32> -> vector<512x32xf32>
    %36 = vector.broadcast %4 : vector<1x32xf32> to vector<512x32xf32>
    %37 = arith.addf %35, %36 : vector<512x32xf32>
    %cst_15 = arith.constant dense<0.000000e+00> : vector<512xf32>
    %38 = vector.multi_reduction <add>, %37, %cst_15 [1] : vector<512x32xf32> to vector<512xf32>
    %39 = vector.shape_cast %38 : vector<512xf32> to vector<512x1xf32>
    %cst_16 = arith.constant 3.200000e+01 : f32
    %40 = vector.broadcast %cst_16 : f32 to vector<512x1xf32>
    %41 = arith.divf %39, %40 : vector<512x1xf32>
    %42 = vector.broadcast %41 : vector<512x1xf32> to vector<512x32xf32>
    %43 = arith.subf %37, %42 : vector<512x32xf32>
    %44 = arith.mulf %43, %43 : vector<512x32xf32>
    %cst_17 = arith.constant dense<0.000000e+00> : vector<512xf32>
    %45 = vector.multi_reduction <add>, %44, %cst_17 [1] : vector<512x32xf32> to vector<512xf32>
    %46 = vector.shape_cast %45 : vector<512xf32> to vector<512x1xf32>
    %cst_18 = arith.constant 3.200000e+01 : f32
    %47 = vector.broadcast %cst_18 : f32 to vector<512x1xf32>
    %48 = arith.divf %46, %47 : vector<512x1xf32>
    %cst_19 = arith.constant 9.99999974E-6 : f32
    %49 = vector.broadcast %cst_19 : f32 to vector<512x1xf32>
    %50 = arith.addf %48, %49 : vector<512x1xf32>
    %51 = math.rsqrt %50 : vector<512x1xf32>
    %52 = vector.broadcast %51 : vector<512x1xf32> to vector<512x32xf32>
    %53 = arith.mulf %43, %52 : vector<512x32xf32>
    %54 = vector.broadcast %5 : vector<1x32xf32> to vector<512x32xf32>
    %55 = arith.mulf %53, %54 : vector<512x32xf32>
    %56 = vector.broadcast %6 : vector<1x32xf32> to vector<512x32xf32>
    %57 = arith.addf %55, %56 : vector<512x32xf32>
    %cst_20 = arith.constant 0.000000e+00 : f32
    %58 = vector.broadcast %cst_20 : f32 to vector<512x32xf32>
    %59 = arith.cmpf ogt, %57, %58 : vector<512x32xf32>
    %cst_21 = arith.constant 2.000000e-01 : f32
    %60 = vector.broadcast %cst_21 : f32 to vector<512x32xf32>
    %61 = arith.mulf %60, %57 : vector<512x32xf32>
    %62 = arith.select %59, %57, %61 : vector<512x32xi1>, vector<512x32xf32>
    %c0_22 = arith.constant 0 : index
    %c0_23 = arith.constant 0 : index
    %63 = vector.load %arg4[%c0_22, %c0_23] : memref<32x144xf32, #tpu.memory_space<vmem>>, vector<32x144xf32>
    %cst_24 = arith.constant dense<0.000000e+00> : vector<512x144xf32>
    %64 = tpu.matmul %62, %63, %cst_24 {dimension_numbers = #tpu.dot_dimension_numbers<[1], [0], [0], [1], [0, 0, 1, 1], [], []>} : vector<512x32xf32>, vector<32x144xf32>, vector<512x144xf32> -> vector<512x144xf32>
    %c0_25 = arith.constant 0 : index
    %c0_26 = arith.constant 0 : index
    %65 = vector.load %arg6[%c0_25, %c0_26] : memref<1x144xf32, #tpu.memory_space<vmem>>, vector<1x144xf32>
    %66 = vector.broadcast %65 : vector<1x144xf32> to vector<512x144xf32>
    %67 = arith.addf %64, %66 : vector<512x144xf32>
    %c0_27 = arith.constant 0 : index
    %c0_28 = arith.constant 0 : index
    %68 = vector.load %arg7[%c0_27, %c0_28] : memref<512x144xf32, #tpu.memory_space<vmem>>, vector<512x144xf32>
    tpu.vector_store %arg7[%c0_27, %c0_28], %67 {strides = array<i32>} : memref<512x144xf32, #tpu.memory_space<vmem>>, vector<512x144xf32>,
    return
  }
  func.func @transform_0(%arg0: i32) -> (i32, i32) {
    %c0_i32 = arith.constant 0 : i32
    %c0_i32_0 = arith.constant 0 : i32
    return %arg0, %c0_i32 : i32, i32
  }
  func.func @transform_1(%arg0: i32) -> (i32, i32) {
    %c0_i32 = arith.constant 0 : i32
    %c0_i32_0 = arith.constant 0 : i32
    %c0_i32_1 = arith.constant 0 : i32
    return %c0_i32, %c0_i32_0 : i32, i32
  }
  func.func @transform_2(%arg0: i32) -> (i32, i32) {
    %c0_i32 = arith.constant 0 : i32
    %c0_i32_0 = arith.constant 0 : i32
    %c0_i32_1 = arith.constant 0 : i32
    return %c0_i32, %c0_i32_0 : i32, i32
  }
  func.func @transform_3(%arg0: i32) -> (i32, i32) {
    %c0_i32 = arith.constant 0 : i32
    %c0_i32_0 = arith.constant 0 : i32
    %c0_i32_1 = arith.constant 0 : i32
    return %c0_i32, %c0_i32_0 : i32, i32
  }
  func.func @transform_4(%arg0: i32) -> (i32, i32) {
    %c0_i32 = arith.constant 0 : i32
    %c0_i32_0 = arith.constant 0 : i32
    %c0_i32_1 = arith.constant 0 : i32
    return %c0_i32, %c0_i32_0 : i32, i32
  }
  func.func @transform_5(%arg0: i32) -> (i32, i32) {
    %c0_i32 = arith.constant 0 : i32
    %c0_i32_0 = arith.constant 0 : i32
    %c0_i32_1 = arith.constant 0 : i32
    return %c0_i32, %c0_i32_0 : i32, i32
  }
  func.func @transform_6(%arg0: i32) -> (i32, i32) {
    %c0_i32 = arith.constant 0 : i32
    %c0_i32_0 = arith.constant 0 : i32
    return %arg0, %c0_i32 : i32, i32
  }
}

</mosaic_0001>

<llo_original>
// kernel: tpu_custom_call.1
$region0: #{tpu_custom_call.1}
  #allocation0 [shape = 'u32[]', space=smem, size = 0x4, offset = 0x4, fixed_abs, tag = 'smem constant byte address 0x4 - core index']
  #allocation1 [shape = 'u32[144,128]{1,0:T(1,128)}', space=vmem, size = 0x12000, scoped, tag = 'internal scratch']
  %s0 = inlined_call_operand.vmem [shape: f32[512,8], index: 0, kind: input, shape index: {}]
  %s1 = inlined_call_operand.vmem [shape: f32[8,32], index: 1, kind: input, shape index: {}]
  %s2 = inlined_call_operand.vmem [shape: f32[32,32], index: 2, kind: input, shape index: {}]
  %s3 = inlined_call_operand.vmem [shape: f32[32,144], index: 3, kind: input, shape index: {}]
  %s4 = inlined_call_operand.vmem [shape: f32[5,32], index: 4, kind: input, shape index: {}]
  %s5 = inlined_call_operand.vmem [shape: f32[1,144], index: 5, kind: input, shape index: {}]
  %s6 = inlined_call_operand.vmem [shape: f32[512,144], index: 6, kind: output, shape index: {}]
  %s7 = sld [smem:[#allocation0]]
  $region34: #{tpu_custom_call.1} parent=0
    _
  %s9 = ssub.s32 1, %s7
  %s10 = scalar_select 0, %s9, %s7
  // Predicated region
  $region2: #{tpu_custom_call.1} parent=0 // pred_check
    _
  $region3: #{tpu_custom_call.1} parent=0 // pred_check_branch
    %12 = sbr.rel (0) target = $region5
  $region4: #{tpu_custom_call.1} parent=0 // pred_region
    _
  $region5: #{tpu_custom_call.1} parent=0 // pred_fallthru
    _
  // Predicated region
  $region6: #{tpu_custom_call.1} parent=0 // pred_check
    _
  $region7: #{tpu_custom_call.1} parent=0 // pred_check_branch
    %14 = sbr.rel (0) target = $region9
  $region8: #{tpu_custom_call.1} parent=0 // pred_region
    _
  $region9: #{tpu_custom_call.1} parent=0 // pred_fallthru
    _
  // Predicated region
  $region10: #{tpu_custom_call.1} parent=0 // pred_check
    _
  $region11: #{tpu_custom_call.1} parent=0 // pred_check_branch
    %16 = sbr.rel (0) target = $region13
  $region12: #{tpu_custom_call.1} parent=0 // pred_region
    _
  $region13: #{tpu_custom_call.1} parent=0 // pred_fallthru
    _
  // Predicated region
  $region14: #{tpu_custom_call.1} parent=0 // pred_check
    _
  $region15: #{tpu_custom_call.1} parent=0 // pred_check_branch
    %18 = sbr.rel (0) target = $region17
  $region16: #{tpu_custom_call.1} parent=0 // pred_region
    _
  $region17: #{tpu_custom_call.1} parent=0 // pred_fallthru
    _
  // Predicated region
  $region18: #{tpu_custom_call.1} parent=0 // pred_check
    _
  $region19: #{tpu_custom_call.1} parent=0 // pred_check_branch
    %20 = sbr.rel (0) target = $region21
  $region20: #{tpu_custom_call.1} parent=0 // pred_region
    _
  $region21: #{tpu_custom_call.1} parent=0 // pred_fallthru
    _
  // Predicated region
  $region22: #{tpu_custom_call.1} parent=0 // pred_check
    _
  $region23: #{tpu_custom_call.1} parent=0 // pred_check_branch
    %22 = sbr.rel (0) target = $region25
  $region24: #{tpu_custom_call.1} parent=0 // pred_region
    _
  $region25: #{tpu_custom_call.1} parent=0 // pred_fallthru
    _
  %v23 = vld [vmem:[%s0] sm:$0xff]
  %v24 = vld [vmem:[%s0 + $0x8] sm:$0xff]
  %v25 = vld [vmem:[%s0 + $0x10] sm:$0xff]
  %v26 = vld [vmem:[%s0 + $0x18] sm:$0xff]
  %v27 = vld [vmem:[%s0 + $0x20] sm:$0xff]
  %v28 = vld [vmem:[%s0 + $0x28] sm:$0xff]
  %v29 = vld [vmem:[%s0 + $0x30] sm:$0xff]
  %v30 = vld [vmem:[%s0 + $0x38] sm:$0xff]
  %v31 = vld [vmem:[%s0 + $0x40] sm:$0xff]
  %v32 = vld [vmem:[%s0 + $0x48] sm:$0xff]
  %v33 = vld [vmem:[%s0 + $0x50] sm:$0xff]
  %v34 = vld [vmem:[%s0 + $0x58] sm:$0xff]
  %v35 = vld [vmem:[%s0 + $0x60] sm:$0xff]
  %v36 = vld [vmem:[%s0 + $0x68] sm:$0xff]
  %v37 = vld [vmem:[%s0 + $0x70] sm:$0xff]
  %v38 = vld [vmem:[%s0 + $0x78] sm:$0xff]
  %v39 = vld [vmem:[%s0 + $0x80] sm:$0xff]
  %v40 = vld [vmem:[%s0 + $0x88] sm:$0xff]
  %v41 = vld [vmem:[%s0 + $0x90] sm:$0xff]
  %v42 = vld [vmem:[%s0 + $0x98] sm:$0xff]
  %v43 = vld [vmem:[%s0 + $0xa0] sm:$0xff]
  %v44 = vld [vmem:[%s0 + $0xa8] sm:$0xff]
  %v45 = vld [vmem:[%s0 + $0xb0] sm:$0xff]
  %v46 = vld [vmem:[%s0 + $0xb8] sm:$0xff]
  %v47 = vld [vmem:[%s0 + $0xc0] sm:$0xff]
  %v48 = vld [vmem:[%s0 + $0xc8] sm:$0xff]
  %v49 = vld [vmem:[%s0 + $0xd0] sm:$0xff]
  %v50 = vld [vmem:[%s0 + $0xd8] sm:$0xff]
  %v51 = vld [vmem:[%s0 + $0xe0] sm:$0xff]
  %v52 = vld [vmem:[%s0 + $0xe8] sm:$0xff]
  %v53 = vld [vmem:[%s0 + $0xf0] sm:$0xff]
  %v54 = vld [vmem:[%s0 + $0xf8] sm:$0xff]
  %v55 = vld [vmem:[%s0 + $0x100] sm:$0xff]
  %v56 = vld [vmem:[%s0 + $0x108] sm:$0xff]
  %v57 = vld [vmem:[%s0 + $0x110] sm:$0xff]
  %v58 = vld [vmem:[%s0 + $0x118] sm:$0xff]
  %v59 = vld [vmem:[%s0 + $0x120] sm:$0xff]
  %v60 = vld [vmem:[%s0 + $0x128] sm:$0xff]
  %v61 = vld [vmem:[%s0 + $0x130] sm:$0xff]
  %v62 = vld [vmem:[%s0 + $0x138] sm:$0xff]
  %v63 = vld [vmem:[%s0 + $0x140] sm:$0xff]
  %v64 = vld [vmem:[%s0 + $0x148] sm:$0xff]
  %v65 = vld [vmem:[%s0 + $0x150] sm:$0xff]
  %v66 = vld [vmem:[%s0 + $0x158] sm:$0xff]
  %v67 = vld [vmem:[%s0 + $0x160] sm:$0xff]
  %v68 = vld [vmem:[%s0 + $0x168] sm:$0xff]
  %v69 = vld [vmem:[%s0 + $0x170] sm:$0xff]
  %v70 = vld [vmem:[%s0 + $0x178] sm:$0xff]
  %v71 = vld [vmem:[%s0 + $0x180] sm:$0xff]
  %v72 = vld [vmem:[%s0 + $0x188] sm:$0xff]
  %v73 = vld [vmem:[%s0 + $0x190] sm:$0xff]
  %v74 = vld [vmem:[%s0 + $0x198] sm:$0xff]
  %v75 = vld [vmem:[%s0 + $0x1a0] sm:$0xff]
  %v76 = vld [vmem:[%s0 + $0x1a8] sm:$0xff]
  %v77 = vld [vmem:[%s0 + $0x1b0] sm:$0xff]
  %v78 = vld [vmem:[%s0 + $0x1b8] sm:$0xff]
  %v79 = vld [vmem:[%s0 + $0x1c0] sm:$0xff]
  %v80 = vld [vmem:[%s0 + $0x1c8] sm:$0xff]
  %v81 = vld [vmem:[%s0 + $0x1d0] sm:$0xff]
  %v82 = vld [vmem:[%s0 + $0x1d8] sm:$0xff]
  %v83 = vld [vmem:[%s0 + $0x1e0] sm:$0xff]
  %v84 = vld [vmem:[%s0 + $0x1e8] sm:$0xff]
  %v85 = vld [vmem:[%s0 + $0x1f0] sm:$0xff]
  %v86 = vld [vmem:[%s0 + $0x1f8] sm:$0xff]
  %v87 = vld [vmem:[%s4] sm:$0x1f]
  %v88 = vld [vmem:[%s1] sm:$0xff]
  %vm89 = vcmask 64512
  %v91 = vsel %vm89, %v23, 0
  %v94 = vsel %vm89, %v24, 0
  %v97 = vsel %vm89, %v25, 0
  %v100 = vsel %vm89, %v26, 0
  %v103 = vsel %vm89, %v27, 0
  %v106 = vsel %vm89, %v28, 0
  %v109 = vsel %vm89, %v29, 0
  %v112 = vsel %vm89, %v30, 0
  %v115 = vsel %vm89, %v31, 0
  %v118 = vsel %vm89, %v32, 0
  %v121 = vsel %vm89, %v33, 0
  %v124 = vsel %vm89, %v34, 0
  %v127 = vsel %vm89, %v35, 0
  %v130 = vsel %vm89, %v36, 0
  %v133 = vsel %vm89, %v37, 0
  %v136 = vsel %vm89, %v38, 0
  %v139 = vsel %vm89, %v39, 0
  %v142 = vsel %vm89, %v40, 0
  %v145 = vsel %vm89, %v41, 0
  %v148 = vsel %vm89, %v42, 0
  %v151 = vsel %vm89, %v43, 0
  %v154 = vsel %vm89, %v44, 0
  %v157 = vsel %vm89, %v45, 0
  %v160 = vsel %vm89, %v46, 0
  %v163 = vsel %vm89, %v47, 0
  %v166 = vsel %vm89, %v48, 0
  %v169 = vsel %vm89, %v49, 0
  %v172 = vsel %vm89, %v50, 0
  %v175 = vsel %vm89, %v51, 0
  %v178 = vsel %vm89, %v52, 0
  %v181 = vsel %vm89, %v53, 0
  %v184 = vsel %vm89, %v54, 0
  %v187 = vsel %vm89, %v55, 0
  %v190 = vsel %vm89, %v56, 0
  %v193 = vsel %vm89, %v57, 0
  %v196 = vsel %vm89, %v58, 0
  %v199 = vsel %vm89, %v59, 0
  %v202 = vsel %vm89, %v60, 0
  %v205 = vsel %vm89, %v61, 0
  %v208 = vsel %vm89, %v62, 0
  %v211 = vsel %vm89, %v63, 0
  %v214 = vsel %vm89, %v64, 0
  %v217 = vsel %vm89, %v65, 0
  %v220 = vsel %vm89, %v66, 0
  %v223 = vsel %vm89, %v67, 0
  %v226 = vsel %vm89, %v68, 0
  %v229 = vsel %vm89, %v69, 0
  %v232 = vsel %vm89, %v70, 0
  %v235 = vsel %vm89, %v71, 0
  %v238 = vsel %vm89, %v72, 0
  %v241 = vsel %vm89, %v73, 0
  %v244 = vsel %vm89, %v74, 0
  %v247 = vsel %vm89, %v75, 0
  %v250 = vsel %vm89, %v76, 0
  %v253 = vsel %vm89, %v77, 0
  %v256 = vsel %vm89, %v78, 0
  %v259 = vsel %vm89, %v79, 0
  %v262 = vsel %vm89, %v80, 0
  %v265 = vsel %vm89, %v81, 0
  %v268 = vsel %vm89, %v82, 0
  %v271 = vsel %vm89, %v83, 0
  %v274 = vsel %vm89, %v84, 0
  %v277 = vsel %vm89, %v85, 0
  %v280 = vsel %vm89, %v86, 0
  %282 = vmatprep.subr.mxu0 0.0
  %283 = vmatpush1.msra.mxu0 0.0
  %284 = vmatprep.subr.mxu0 0.0
  %285 = vmatpush1.msra.mxu0 0.0
  %286 = vmatprep.subr.mxu0 0.0
  %287 = vmatpush1.msra.mxu0 0.0
  %288 = vmatprep.subr.mxu0 0.0
  %289 = vmatpush1.msra.mxu0 0.0
  %290 = vmatprep.subr.mxu0 0.0
  %291 = vmatpush1.msra.mxu0 0.0
  %292 = vmatprep.subr.mxu0 0.0
  %293 = vmatpush1.msra.mxu0 0.0
  %294 = vmatprep.subr.mxu0 0.0
  %295 = vmatpush1.msra.mxu0 0.0
  %296 = vmatprep.subr.mxu0 0.0
  %297 = vmatpush1.msra.mxu0 0.0
  %298 = vmatprep.subr.mxu0 0.0
  %299 = vmatpush1.msra.mxu0 0.0
  %300 = vmatprep.subr.mxu0 0.0
  %301 = vmatpush1.msra.mxu0 0.0
  %302 = vmatprep.subr.mxu0 0.0
  %303 = vmatpush1.msra.mxu0 0.0
  %304 = vmatprep.subr.mxu0 0.0
  %305 = vmatpush1.msra.mxu0 0.0
  %306 = vmatprep.subr.mxu0 0.0
  %307 = vmatpush1.msra.mxu0 0.0
  %308 = vmatprep.subr.mxu0 0.0
  %309 = vmatpush1.msra.mxu0 0.0
  %310 = vmatprep.subr.mxu0 0.0
  %311 = vmatpush1.msra.mxu0 0.0
  %312 = vmatprep.subr.mxu0 0.0
  %313 = vmatpush1.msra.mxu0 %v88
  %314 = vmatprep.subr.mxu0 0.0
  %315 = vmatpush2.msra.mxu0 0.0
  %316 = vmatprep.subr.mxu0 0.0
  %317 = vmatpush2.msra.mxu0 0.0
  %318 = vmatprep.subr.mxu0 0.0
  %319 = vmatpush2.msra.mxu0 0.0
  %320 = vmatprep.subr.mxu0 0.0
  %321 = vmatpush2.msra.mxu0 0.0
  %322 = vmatprep.subr.mxu0 0.0
  %323 = vmatpush2.msra.mxu0 0.0
  %324 = vmatprep.subr.mxu0 0.0
  %325 = vmatpush2.msra.mxu0 0.0
  %326 = vmatprep.subr.mxu0 0.0
  %327 = vmatpush2.msra.mxu0 0.0
  %328 = vmatprep.subr.mxu0 0.0
  %329 = vmatpush2.msra.mxu0 0.0
  %330 = vmatprep.subr.mxu0 0.0
  %331 = vmatpush2.msra.mxu0 0.0
  %332 = vmatprep.subr.mxu0 0.0
  %333 = vmatpush2.msra.mxu0 0.0
  %334 = vmatprep.subr.mxu0 0.0
  %335 = vmatpush2.msra.mxu0 0.0
  %336 = vmatprep.subr.mxu0 0.0
  %337 = vmatpush2.msra.mxu0 0.0
  %338 = vmatprep.subr.mxu0 0.0
  %339 = vmatpush2.msra.mxu0 0.0
  %340 = vmatprep.subr.mxu0 0.0
  %341 = vmatpush2.msra.mxu0 0.0
  %342 = vmatprep.subr.mxu0 0.0
  %343 = vmatpush2.msra.mxu0 0.0
  %344 = vmatprep.subr.mxu0 0.0
  %345 = vmatpush2.msra.mxu0 0.0
  %346 = vmatprep.mubr.f32.mxu0 0.0
  %347 = vmatmul.mubr.f32.gmra.mxu0 %v91
  %v348 = vpop.f32.mrf.mxu0
  %v349 = vadd.f32 0.0, %v348
  %v350 = vpop.f32.mrf.mxu0
  %351 = vmatprep.mubr.f32.mxu0 0.0
  %352 = vmatmul.mubr.f32.gmra.mxu0 %v94
  %v353 = vpop.f32.mrf.mxu0
  %v354 = vadd.f32 0.0, %v353
  %v355 = vpop.f32.mrf.mxu0
  %356 = vmatprep.mubr.f32.mxu0 0.0
  %357 = vmatmul.mubr.f32.gmra.mxu0 %v97
  %v358 = vpop.f32.mrf.mxu0
  %v359 = vadd.f32 0.0, %v358
  %v360 = vpop.f32.mrf.mxu0
  %361 = vmatprep.mubr.f32.mxu0 0.0
  %362 = vmatmul.mubr.f32.gmra.mxu0 %v100
  %v363 = vpop.f32.mrf.mxu0
  %v364 = vadd.f32 0.0, %v363
  %v365 = vpop.f32.mrf.mxu0
  %366 = vmatprep.mubr.f32.mxu0 0.0
  %367 = vmatmul.mubr.f32.gmra.mxu0 %v103
  %v368 = vpop.f32.mrf.mxu0
  %v369 = vadd.f32 0.0, %v368
  %v370 = vpop.f32.mrf.mxu0
  %371 = vmatprep.mubr.f32.mxu0 0.0
  %372 = vmatmul.mubr.f32.gmra.mxu0 %v106
  %v373 = vpop.f32.mrf.mxu0
  %v374 = vadd.f32 0.0, %v373
  %v375 = vpop.f32.mrf.mxu0
  %376 = vmatprep.mubr.f32.mxu0 0.0
  %377 = vmatmul.mubr.f32.gmra.mxu0 %v109
  %v378 = vpop.f32.mrf.mxu0
  %v379 = vadd.f32 0.0, %v378
  %v380 = vpop.f32.mrf.mxu0
  %381 = vmatprep.mubr.f32.mxu0 0.0
  %382 = vmatmul.mubr.f32.gmra.mxu0 %v112
  %v383 = vpop.f32.mrf.mxu0
  %v384 = vadd.f32 0.0, %v383
  %v385 = vpop.f32.mrf.mxu0
  %386 = vmatprep.mubr.f32.mxu0 0.0
  %387 = vmatmul.mubr.f32.gmra.mxu0 %v115
  %v388 = vpop.f32.mrf.mxu0
  %v389 = vadd.f32 0.0, %v388
  %v390 = vpop.f32.mrf.mxu0
  %391 = vmatprep.mubr.f32.mxu0 0.0
  %392 = vmatmul.mubr.f32.gmra.mxu0 %v118
  %v393 = vpop.f32.mrf.mxu0
  %v394 = vadd.f32 0.0, %v393
  %v395 = vpop.f32.mrf.mxu0
  %396 = vmatprep.mubr.f32.mxu0 0.0
  %397 = vmatmul.mubr.f32.gmra.mxu0 %v121
  %v398 = vpop.f32.mrf.mxu0
  %v399 = vadd.f32 0.0, %v398
  %v400 = vpop.f32.mrf.mxu0
  %401 = vmatprep.mubr.f32.mxu0 0.0
  %402 = vmatmul.mubr.f32.gmra.mxu0 %v124
  %v403 = vpop.f32.mrf.mxu0
  %v404 = vadd.f32 0.0, %v403
  %v405 = vpop.f32.mrf.mxu0
  %406 = vmatprep.mubr.f32.mxu0 0.0
  %407 = vmatmul.mubr.f32.gmra.mxu0 %v127
  %v408 = vpop.f32.mrf.mxu0
  %v409 = vadd.f32 0.0, %v408
  %v410 = vpop.f32.mrf.mxu0
  %411 = vmatprep.mubr.f32.mxu0 0.0
  %412 = vmatmul.mubr.f32.gmra.mxu0 %v130
  %v413 = vpop.f32.mrf.mxu0
  %v414 = vadd.f32 0.0, %v413
  %v415 = vpop.f32.mrf.mxu0
  %416 = vmatprep.mubr.f32.mxu0 0.0
  %417 = vmatmul.mubr.f32.gmra.mxu0 %v133
  %v418 = vpop.f32.mrf.mxu0
  %v419 = vadd.f32 0.0, %v418
  %v420 = vpop.f32.mrf.mxu0
  %421 = vmatprep.mubr.f32.mxu0 0.0
  %422 = vmatmul.mubr.f32.gmra.mxu0 %v136
  %v423 = vpop.f32.mrf.mxu0
  %v424 = vadd.f32 0.0, %v423
  %v425 = vpop.f32.mrf.mxu0
  %426 = vmatprep.mubr.f32.mxu0 0.0
  %427 = vmatmul.mubr.f32.gmra.mxu0 %v139
  %v428 = vpop.f32.mrf.mxu0
  %v429 = vadd.f32 0.0, %v428
  %v430 = vpop.f32.mrf.mxu0
  %431 = vmatprep.mubr.f32.mxu0 0.0
  %432 = vmatmul.mubr.f32.gmra.mxu0 %v142
  %v433 = vpop.f32.mrf.mxu0
  %v434 = vadd.f32 0.0, %v433
  %v435 = vpop.f32.mrf.mxu0
  %436 = vmatprep.mubr.f32.mxu0 0.0
  %437 = vmatmul.mubr.f32.gmra.mxu0 %v145
  %v438 = vpop.f32.mrf.mxu0
  %v439 = vadd.f32 0.0, %v438
  %v440 = vpop.f32.mrf.mxu0
  %441 = vmatprep.mubr.f32.mxu0 0.0
  %442 = vmatmul.mubr.f32.gmra.mxu0 %v148
  %v443 = vpop.f32.mrf.mxu0
  %v444 = vadd.f32 0.0, %v443
  %v445 = vpop.f32.mrf.mxu0
  %446 = vmatprep.mubr.f32.mxu0 0.0
  %447 = vmatmul.mubr.f32.gmra.mxu0 %v151
  %v448 = vpop.f32.mrf.mxu0
  %v449 = vadd.f32 0.0, %v448
  %v450 = vpop.f32.mrf.mxu0
  %451 = vmatprep.mubr.f32.mxu0 0.0
  %452 = vmatmul.mubr.f32.gmra.mxu0 %v154
  %v453 = vpop.f32.mrf.mxu0
  %v454 = vadd.f32 0.0, %v453
  %v455 = vpop.f32.mrf.mxu0
  %456 = vmatprep.mubr.f32.mxu0 0.0
  %457 = vmatmul.mubr.f32.gmra.mxu0 %v157
  %v458 = vpop.f32.mrf.mxu0
  %v459 = vadd.f32 0.0, %v458
  %v460 = vpop.f32.mrf.mxu0
  %461 = vmatprep.mubr.f32.mxu0 0.0
  %462 = vmatmul.mubr.f32.gmra.mxu0 %v160
  %v463 = vpop.f32.mrf.mxu0
  %v464 = vadd.f32 0.0, %v463
  %v465 = vpop.f32.mrf.mxu0
  %466 = vmatprep.mubr.f32.mxu0 0.0
  %467 = vmatmul.mubr.f32.gmra.mxu0 %v163
  %v468 = vpop.f32.mrf.mxu0
  %v469 = vadd.f32 0.0, %v468
  %v470 = vpop.f32.mrf.mxu0
  %471 = vmatprep.mubr.f32.mxu0 0.0
  %472 = vmatmul.mubr.f32.gmra.mxu0 %v166
  %v473 = vpop.f32.mrf.mxu0
  %v474 = vadd.f32 0.0, %v473
  %v475 = vpop.f32.mrf.mxu0
  %476 = vmatprep.mubr.f32.mxu0 0.0
  %477 = vmatmul.mubr.f32.gmra.mxu0 %v169
  %v478 = vpop.f32.mrf.mxu0
  %v479 = vadd.f32 0.0, %v478
  %v480 = vpop.f32.mrf.mxu0
  %481 = vmatprep.mubr.f32.mxu0 0.0
  %482 = vmatmul.mubr.f32.gmra.mxu0 %v172
  %v483 = vpop.f32.mrf.mxu0
  %v484 = vadd.f32 0.0, %v483
  %v485 = vpop.f32.mrf.mxu0
  %486 = vmatprep.mubr.f32.mxu0 0.0
  %487 = vmatmul.mubr.f32.gmra.mxu0 %v175
  %v488 = vpop.f32.mrf.mxu0
  %v489 = vadd.f32 0.0, %v488
  %v490 = vpop.f32.mrf.mxu0
  %491 = vmatprep.mubr.f32.mxu0 0.0
  %492 = vmatmul.mubr.f32.gmra.mxu0 %v178
  %v493 = vpop.f32.mrf.mxu0
  %v494 = vadd.f32 0.0, %v493
  %v495 = vpop.f32.mrf.mxu0
  %496 = vmatprep.mubr.f32.mxu0 0.0
  %497 = vmatmul.mubr.f32.gmra.mxu0 %v181
  %v498 = vpop.f32.mrf.mxu0
  %v499 = vadd.f32 0.0, %v498
  %v500 = vpop.f32.mrf.mxu0
  %501 = vmatprep.mubr.f32.mxu0 0.0
  %502 = vmatmul.mubr.f32.gmra.mxu0 %v184
  %v503 = vpop.f32.mrf.mxu0
  %v504 = vadd.f32 0.0, %v503
  %v505 = vpop.f32.mrf.mxu0
  %506 = vmatprep.mubr.f32.mxu0 0.0
  %507 = vmatmul.mubr.f32.gmra.mxu0 %v187
  %v508 = vpop.f32.mrf.mxu0
  %v509 = vadd.f32 0.0, %v508
  %v510 = vpop.f32.mrf.mxu0
  %511 = vmatprep.mubr.f32.mxu0 0.0
  %512 = vmatmul.mubr.f32.gmra.mxu0 %v190
  %v513 = vpop.f32.mrf.mxu0
  %v514 = vadd.f32 0.0, %v513
  %v515 = vpop.f32.mrf.mxu0
  %516 = vmatprep.mubr.f32.mxu0 0.0
  %517 = vmatmul.mubr.f32.gmra.mxu0 %v193
  %v518 = vpop.f32.mrf.mxu0
  %v519 = vadd.f32 0.0, %v518
  %v520 = vpop.f32.mrf.mxu0
  %521 = vmatprep.mubr.f32.mxu0 0.0
  %522 = vmatmul.mubr.f32.gmra.mxu0 %v196
  %v523 = vpop.f32.mrf.mxu0
  %v524 = vadd.f32 0.0, %v523
  %v525 = vpop.f32.mrf.mxu0
  %526 = vmatprep.mubr.f32.mxu0 0.0
  %527 = vmatmul.mubr.f32.gmra.mxu0 %v199
  %v528 = vpop.f32.mrf.mxu0
  %v529 = vadd.f32 0.0, %v528
  %v530 = vpop.f32.mrf.mxu0
  %531 = vmatprep.mubr.f32.mxu0 0.0
  %532 = vmatmul.mubr.f32.gmra.mxu0 %v202
  %v533 = vpop.f32.mrf.mxu0
  %v534 = vadd.f32 0.0, %v533
  %v535 = vpop.f32.mrf.mxu0
  %536 = vmatprep.mubr.f32.mxu0 0.0
  %537 = vmatmul.mubr.f32.gmra.mxu0 %v205
  %v538 = vpop.f32.mrf.mxu0
  %v539 = vadd.f32 0.0, %v538
  %v540 = vpop.f32.mrf.mxu0
  %541 = vmatprep.mubr.f32.mxu0 0.0
  %542 = vmatmul.mubr.f32.gmra.mxu0 %v208
  %v543 = vpop.f32.mrf.mxu0
  %v544 = vadd.f32 0.0, %v543
  %v545 = vpop.f32.mrf.mxu0
  %546 = vmatprep.mubr.f32.mxu0 0.0
  %547 = vmatmul.mubr.f32.gmra.mxu0 %v211
  %v548 = vpop.f32.mrf.mxu0
  %v549 = vadd.f32 0.0, %v548
  %v550 = vpop.f32.mrf.mxu0
  %551 = vmatprep.mubr.f32.mxu0 0.0
  %552 = vmatmul.mubr.f32.gmra.mxu0 %v214
  %v553 = vpop.f32.mrf.mxu0
  %v554 = vadd.f32 0.0, %v553
  %v555 = vpop.f32.mrf.mxu0
  %556 = vmatprep.mubr.f32.mxu0 0.0
  %557 = vmatmul.mubr.f32.gmra.mxu0 %v217
  %v558 = vpop.f32.mrf.mxu0
  %v559 = vadd.f32 0.0, %v558
  %v560 = vpop.f32.mrf.mxu0
  %561 = vmatprep.mubr.f32.mxu0 0.0
  %562 = vmatmul.mubr.f32.gmra.mxu0 %v220
  %v563 = vpop.f32.mrf.mxu0
  %v564 = vadd.f32 0.0, %v563
  %v565 = vpop.f32.mrf.mxu0
  %566 = vmatprep.mubr.f32.mxu0 0.0
  %567 = vmatmul.mubr.f32.gmra.mxu0 %v223
  %v568 = vpop.f32.mrf.mxu0
  %v569 = vadd.f32 0.0, %v568
  %v570 = vpop.f32.mrf.mxu0
  %571 = vmatprep.mubr.f32.mxu0 0.0
  %572 = vmatmul.mubr.f32.gmra.mxu0 %v226
  %v573 = vpop.f32.mrf.mxu0
  %v574 = vadd.f32 0.0, %v573
  %v575 = vpop.f32.mrf.mxu0
  %576 = vmatprep.mubr.f32.mxu0 0.0
  %577 = vmatmul.mubr.f32.gmra.mxu0 %v229
  %v578 = vpop.f32.mrf.mxu0
  %v579 = vadd.f32 0.0, %v578
  %v580 = vpop.f32.mrf.mxu0
  %581 = vmatprep.mubr.f32.mxu0 0.0
  %582 = vmatmul.mubr.f32.gmra.mxu0 %v232
  %v583 = vpop.f32.mrf.mxu0
  %v584 = vadd.f32 0.0, %v583
  %v585 = vpop.f32.mrf.mxu0
  %586 = vmatprep.mubr.f32.mxu0 0.0
  %587 = vmatmul.mubr.f32.gmra.mxu0 %v235
  %v588 = vpop.f32.mrf.mxu0
  %v589 = vadd.f32 0.0, %v588
  %v590 = vpop.f32.mrf.mxu0
  %591 = vmatprep.mubr.f32.mxu0 0.0
  %592 = vmatmul.mubr.f32.gmra.mxu0 %v238
  %v593 = vpop.f32.mrf.mxu0
  %v594 = vadd.f32 0.0, %v593
  %v595 = vpop.f32.mrf.mxu0
  %596 = vmatprep.mubr.f32.mxu0 0.0
  %597 = vmatmul.mubr.f32.gmra.mxu0 %v241
  %v598 = vpop.f32.mrf.mxu0
  %v599 = vadd.f32 0.0, %v598
  %v600 = vpop.f32.mrf.mxu0
  %601 = vmatprep.mubr.f32.mxu0 0.0
  %602 = vmatmul.mubr.f32.gmra.mxu0 %v244
  %v603 = vpop.f32.mrf.mxu0
  %v604 = vadd.f32 0.0, %v603
  %v605 = vpop.f32.mrf.mxu0
  %606 = vmatprep.mubr.f32.mxu0 0.0
  %607 = vmatmul.mubr.f32.gmra.mxu0 %v247
  %v608 = vpop.f32.mrf.mxu0
  %v609 = vadd.f32 0.0, %v608
  %v610 = vpop.f32.mrf.mxu0
  %611 = vmatprep.mubr.f32.mxu0 0.0
  %612 = vmatmul.mubr.f32.gmra.mxu0 %v250
  %v613 = vpop.f32.mrf.mxu0
  %v614 = vadd.f32 0.0, %v613
  %v615 = vpop.f32.mrf.mxu0
  %616 = vmatprep.mubr.f32.mxu0 0.0
  %617 = vmatmul.mubr.f32.gmra.mxu0 %v253
  %v618 = vpop.f32.mrf.mxu0
  %v619 = vadd.f32 0.0, %v618
  %v620 = vpop.f32.mrf.mxu0
  %621 = vmatprep.mubr.f32.mxu0 0.0
  %622 = vmatmul.mubr.f32.gmra.mxu0 %v256
  %v623 = vpop.f32.mrf.mxu0
  %v624 = vadd.f32 0.0, %v623
  %v625 = vpop.f32.mrf.mxu0
  %626 = vmatprep.mubr.f32.mxu0 0.0
  %627 = vmatmul.mubr.f32.gmra.mxu0 %v259
  %v628 = vpop.f32.mrf.mxu0
  %v629 = vadd.f32 0.0, %v628
  %v630 = vpop.f32.mrf.mxu0
  %631 = vmatprep.mubr.f32.mxu0 0.0
  %632 = vmatmul.mubr.f32.gmra.mxu0 %v262
  %v633 = vpop.f32.mrf.mxu0
  %v634 = vadd.f32 0.0, %v633
  %v635 = vpop.f32.mrf.mxu0
  %636 = vmatprep.mubr.f32.mxu0 0.0
  %637 = vmatmul.mubr.f32.gmra.mxu0 %v265
  %v638 = vpop.f32.mrf.mxu0
  %v639 = vadd.f32 0.0, %v638
  %v640 = vpop.f32.mrf.mxu0
  %641 = vmatprep.mubr.f32.mxu0 0.0
  %642 = vmatmul.mubr.f32.gmra.mxu0 %v268
  %v643 = vpop.f32.mrf.mxu0
  %v644 = vadd.f32 0.0, %v643
  %v645 = vpop.f32.mrf.mxu0
  %646 = vmatprep.mubr.f32.mxu0 0.0
  %647 = vmatmul.mubr.f32.gmra.mxu0 %v271
  %v648 = vpop.f32.mrf.mxu0
  %v649 = vadd.f32 0.0, %v648
  %v650 = vpop.f32.mrf.mxu0
  %651 = vmatprep.mubr.f32.mxu0 0.0
  %652 = vmatmul.mubr.f32.gmra.mxu0 %v274
  %v653 = vpop.f32.mrf.mxu0
  %v654 = vadd.f32 0.0, %v653
  %v655 = vpop.f32.mrf.mxu0
  %656 = vmatprep.mubr.f32.mxu0 0.0
  %657 = vmatmul.mubr.f32.gmra.mxu0 %v277
  %v658 = vpop.f32.mrf.mxu0
  %v659 = vadd.f32 0.0, %v658
  %v660 = vpop.f32.mrf.mxu0
  %661 = vmatprep.mubr.f32.mxu0 0.0
  %662 = vmatmul.mubr.f32.gmra.mxu0 %v280
  %v663 = vpop.f32.mrf.mxu0
  %v664 = vadd.f32 0.0, %v663
  %v665 = vpop.f32.mrf.mxu0
  %666 = vdwg.mxu0
  %vm667 = vcmask 261120
  %v668 = vsel %vm667, %v349, 0.0
  %669 = vadd.xlane.f32.xlu0 %v668
  %v670 = vpop.xlane.xlu0 %669
  %v671 = vsel %vm667, %v354, 0.0
  %672 = vadd.xlane.f32.xlu0 %v671
  %v673 = vpop.xlane.xlu0 %672
  %v674 = vsel %vm667, %v359, 0.0
  %675 = vadd.xlane.f32.xlu0 %v674
  %v676 = vpop.xlane.xlu0 %675
  %v677 = vsel %vm667, %v364, 0.0
  %678 = vadd.xlane.f32.xlu0 %v677
  %v679 = vpop.xlane.xlu0 %678
  %v680 = vsel %vm667, %v369, 0.0
  %681 = vadd.xlane.f32.xlu0 %v680
  %v682 = vpop.xlane.xlu0 %681
  %v683 = vsel %vm667, %v374, 0.0
  %684 = vadd.xlane.f32.xlu0 %v683
  %v685 = vpop.xlane.xlu0 %684
  %v686 = vsel %vm667, %v379, 0.0
  %687 = vadd.xlane.f32.xlu0 %v686
  %v688 = vpop.xlane.xlu0 %687
  %v689 = vsel %vm667, %v384, 0.0
  %690 = vadd.xlane.f32.xlu0 %v689
  %v691 = vpop.xlane.xlu0 %690
  %v692 = vsel %vm667, %v389, 0.0
  %693 = vadd.xlane.f32.xlu0 %v692
  %v694 = vpop.xlane.xlu0 %693
  %v695 = vsel %vm667, %v394, 0.0
  %696 = vadd.xlane.f32.xlu0 %v695
  %v697 = vpop.xlane.xlu0 %696
  %v698 = vsel %vm667, %v399, 0.0
  %699 = vadd.xlane.f32.xlu0 %v698
  %v700 = vpop.xlane.xlu0 %699
  %v701 = vsel %vm667, %v404, 0.0
  %702 = vadd.xlane.f32.xlu0 %v701
  %v703 = vpop.xlane.xlu0 %702
  %v704 = vsel %vm667, %v409, 0.0
  %705 = vadd.xlane.f32.xlu0 %v704
  %v706 = vpop.xlane.xlu0 %705
  %v707 = vsel %vm667, %v414, 0.0
  %708 = vadd.xlane.f32.xlu0 %v707
  %v709 = vpop.xlane.xlu0 %708
  %v710 = vsel %vm667, %v419, 0.0
  %711 = vadd.xlane.f32.xlu0 %v710
  %v712 = vpop.xlane.xlu0 %711
  %v713 = vsel %vm667, %v424, 0.0
  %714 = vadd.xlane.f32.xlu0 %v713
  %v715 = vpop.xlane.xlu0 %714
  %v716 = vsel %vm667, %v429, 0.0
  %717 = vadd.xlane.f32.xlu0 %v716
  %v718 = vpop.xlane.xlu0 %717
  %v719 = vsel %vm667, %v434, 0.0
  %720 = vadd.xlane.f32.xlu0 %v719
  %v721 = vpop.xlane.xlu0 %720
  %v722 = vsel %vm667, %v439, 0.0
  %723 = vadd.xlane.f32.xlu0 %v722
  %v724 = vpop.xlane.xlu0 %723
  %v725 = vsel %vm667, %v444, 0.0
  %726 = vadd.xlane.f32.xlu0 %v725
  %v727 = vpop.xlane.xlu0 %726
  %v728 = vsel %vm667, %v449, 0.0
  %729 = vadd.xlane.f32.xlu0 %v728
  %v730 = vpop.xlane.xlu0 %729
  %v731 = vsel %vm667, %v454, 0.0
  %732 = vadd.xlane.f32.xlu0 %v731
  %v733 = vpop.xlane.xlu0 %732
  %v734 = vsel %vm667, %v459, 0.0
  %735 = vadd.xlane.f32.xlu0 %v734
  %v736 = vpop.xlane.xlu0 %735
  %v737 = vsel %vm667, %v464, 0.0
  %738 = vadd.xlane.f32.xlu0 %v737
  %v739 = vpop.xlane.xlu0 %738
  %v740 = vsel %vm667, %v469, 0.0
  %741 = vadd.xlane.f32.xlu0 %v740
  %v742 = vpop.xlane.xlu0 %741
  %v743 = vsel %vm667, %v474, 0.0
  %744 = vadd.xlane.f32.xlu0 %v743
  %v745 = vpop.xlane.xlu0 %744
  %v746 = vsel %vm667, %v479, 0.0
  %747 = vadd.xlane.f32.xlu0 %v746
  %v748 = vpop.xlane.xlu0 %747
  %v749 = vsel %vm667, %v484, 0.0
  %750 = vadd.xlane.f32.xlu0 %v749
  %v751 = vpop.xlane.xlu0 %750
  %v752 = vsel %vm667, %v489, 0.0
  %753 = vadd.xlane.f32.xlu0 %v752
  %v754 = vpop.xlane.xlu0 %753
  %v755 = vsel %vm667, %v494, 0.0
  %756 = vadd.xlane.f32.xlu0 %v755
  %v757 = vpop.xlane.xlu0 %756
  %v758 = vsel %vm667, %v499, 0.0
  %759 = vadd.xlane.f32.xlu0 %v758
  %v760 = vpop.xlane.xlu0 %759
  %v761 = vsel %vm667, %v504, 0.0
  %762 = vadd.xlane.f32.xlu0 %v761
  %v763 = vpop.xlane.xlu0 %762
  %v764 = vsel %vm667, %v509, 0.0
  %765 = vadd.xlane.f32.xlu0 %v764
  %v766 = vpop.xlane.xlu0 %765
  %v767 = vsel %vm667, %v514, 0.0
  %768 = vadd.xlane.f32.xlu0 %v767
  %v769 = vpop.xlane.xlu0 %768
  %v770 = vsel %vm667, %v519, 0.0
  %771 = vadd.xlane.f32.xlu0 %v770
  %v772 = vpop.xlane.xlu0 %771
  %v773 = vsel %vm667, %v524, 0.0
  %774 = vadd.xlane.f32.xlu0 %v773
  %v775 = vpop.xlane.xlu0 %774
  %v776 = vsel %vm667, %v529, 0.0
  %777 = vadd.xlane.f32.xlu0 %v776
  %v778 = vpop.xlane.xlu0 %777
  %v779 = vsel %vm667, %v534, 0.0
  %780 = vadd.xlane.f32.xlu0 %v779
  %v781 = vpop.xlane.xlu0 %780
  %v782 = vsel %vm667, %v539, 0.0
  %783 = vadd.xlane.f32.xlu0 %v782
  %v784 = vpop.xlane.xlu0 %783
  %v785 = vsel %vm667, %v544, 0.0
  %786 = vadd.xlane.f32.xlu0 %v785
  %v787 = vpop.xlane.xlu0 %786
  %v788 = vsel %vm667, %v549, 0.0
  %789 = vadd.xlane.f32.xlu0 %v788
  %v790 = vpop.xlane.xlu0 %789
  %v791 = vsel %vm667, %v554, 0.0
  %792 = vadd.xlane.f32.xlu0 %v791
  %v793 = vpop.xlane.xlu0 %792
  %v794 = vsel %vm667, %v559, 0.0
  %795 = vadd.xlane.f32.xlu0 %v794
  %v796 = vpop.xlane.xlu0 %795
  %v797 = vsel %vm667, %v564, 0.0
  %798 = vadd.xlane.f32.xlu0 %v797
  %v799 = vpop.xlane.xlu0 %798
  %v800 = vsel %vm667, %v569, 0.0
  %801 = vadd.xlane.f32.xlu0 %v800
  %v802 = vpop.xlane.xlu0 %801
  %v803 = vsel %vm667, %v574, 0.0
  %804 = vadd.xlane.f32.xlu0 %v803
  %v805 = vpop.xlane.xlu0 %804
  %v806 = vsel %vm667, %v579, 0.0
  %807 = vadd.xlane.f32.xlu0 %v806
  %v808 = vpop.xlane.xlu0 %807
  %v809 = vsel %vm667, %v584, 0.0
  %810 = vadd.xlane.f32.xlu0 %v809
  %v811 = vpop.xlane.xlu0 %810
  %v812 = vsel %vm667, %v589, 0.0
  %813 = vadd.xlane.f32.xlu0 %v812
  %v814 = vpop.xlane.xlu0 %813
  %v815 = vsel %vm667, %v594, 0.0
  %816 = vadd.xlane.f32.xlu0 %v815
  %v817 = vpop.xlane.xlu0 %816
  %v818 = vsel %vm667, %v599, 0.0
  %819 = vadd.xlane.f32.xlu0 %v818
  %v820 = vpop.xlane.xlu0 %819
  %v821 = vsel %vm667, %v604, 0.0
  %822 = vadd.xlane.f32.xlu0 %v821
  %v823 = vpop.xlane.xlu0 %822
  %v824 = vsel %vm667, %v609, 0.0
  %825 = vadd.xlane.f32.xlu0 %v824
  %v826 = vpop.xlane.xlu0 %825
  %v827 = vsel %vm667, %v614, 0.0
  %828 = vadd.xlane.f32.xlu0 %v827
  %v829 = vpop.xlane.xlu0 %828
  %v830 = vsel %vm667, %v619, 0.0
  %831 = vadd.xlane.f32.xlu0 %v830
  %v832 = vpop.xlane.xlu0 %831
  %v833 = vsel %vm667, %v624, 0.0
  %834 = vadd.xlane.f32.xlu0 %v833
  %v835 = vpop.xlane.xlu0 %834
  %v836 = vsel %vm667, %v629, 0.0
  %837 = vadd.xlane.f32.xlu0 %v836
  %v838 = vpop.xlane.xlu0 %837
  %v839 = vsel %vm667, %v634, 0.0
  %840 = vadd.xlane.f32.xlu0 %v839
  %v841 = vpop.xlane.xlu0 %840
  %v842 = vsel %vm667, %v639, 0.0
  %843 = vadd.xlane.f32.xlu0 %v842
  %v844 = vpop.xlane.xlu0 %843
  %v845 = vsel %vm667, %v644, 0.0
  %846 = vadd.xlane.f32.xlu0 %v845
  %v847 = vpop.xlane.xlu0 %846
  %v848 = vsel %vm667, %v649, 0.0
  %849 = vadd.xlane.f32.xlu0 %v848
  %v850 = vpop.xlane.xlu0 %849
  %v851 = vsel %vm667, %v654, 0.0
  %852 = vadd.xlane.f32.xlu0 %v851
  %v853 = vpop.xlane.xlu0 %852
  %v854 = vsel %vm667, %v659, 0.0
  %855 = vadd.xlane.f32.xlu0 %v854
  %v856 = vpop.xlane.xlu0 %855
  %v857 = vsel %vm667, %v664, 0.0
  %858 = vadd.xlane.f32.xlu0 %v857
  %v859 = vpop.xlane.xlu0 %858
  %v860 = vrcp.pop 32.0
  %v861 = vmul.f32 %v670, %v860
  %v862 = vmul.f32 %v673, %v860
  %v863 = vmul.f32 %v676, %v860
  %v864 = vmul.f32 %v679, %v860
  %v865 = vmul.f32 %v682, %v860
  %v866 = vmul.f32 %v685, %v860
  %v867 = vmul.f32 %v688, %v860
  %v868 = vmul.f32 %v691, %v860
  %v869 = vmul.f32 %v694, %v860
  %v870 = vmul.f32 %v697, %v860
  %v871 = vmul.f32 %v700, %v860
  %v872 = vmul.f32 %v703, %v860
  %v873 = vmul.f32 %v706, %v860
  %v874 = vmul.f32 %v709, %v860
  %v875 = vmul.f32 %v712, %v860
  %v876 = vmul.f32 %v715, %v860
  %v877 = vmul.f32 %v718, %v860
  %v878 = vmul.f32 %v721, %v860
  %v879 = vmul.f32 %v724, %v860
  %v880 = vmul.f32 %v727, %v860
  %v881 = vmul.f32 %v730, %v860
  %v882 = vmul.f32 %v733, %v860
  %v883 = vmul.f32 %v736, %v860
  %v884 = vmul.f32 %v739, %v860
  %v885 = vmul.f32 %v742, %v860
  %v886 = vmul.f32 %v745, %v860
  %v887 = vmul.f32 %v748, %v860
  %v888 = vmul.f32 %v751, %v860
  %v889 = vmul.f32 %v754, %v860
  %v890 = vmul.f32 %v757, %v860
  %v891 = vmul.f32 %v760, %v860
  %v892 = vmul.f32 %v763, %v860
  %v893 = vmul.f32 %v766, %v860
  %v894 = vmul.f32 %v769, %v860
  %v895 = vmul.f32 %v772, %v860
  %v896 = vmul.f32 %v775, %v860
  %v897 = vmul.f32 %v778, %v860
  %v898 = vmul.f32 %v781, %v860
  %v899 = vmul.f32 %v784, %v860
  %v900 = vmul.f32 %v787, %v860
  %v901 = vmul.f32 %v790, %v860
  %v902 = vmul.f32 %v793, %v860
  %v903 = vmul.f32 %v796, %v860
  %v904 = vmul.f32 %v799, %v860
  %v905 = vmul.f32 %v802, %v860
  %v906 = vmul.f32 %v805, %v860
  %v907 = vmul.f32 %v808, %v860
  %v908 = vmul.f32 %v811, %v860
  %v909 = vmul.f32 %v814, %v860
  %v910 = vmul.f32 %v817, %v860
  %v911 = vmul.f32 %v820, %v860
  %v912 = vmul.f32 %v823, %v860
  %v913 = vmul.f32 %v826, %v860
  %v914 = vmul.f32 %v829, %v860
  %v915 = vmul.f32 %v832, %v860
  %v916 = vmul.f32 %v835, %v860
  %v917 = vmul.f32 %v838, %v860
  %v918 = vmul.f32 %v841, %v860
  %v919 = vmul.f32 %v844, %v860
  %v920 = vmul.f32 %v847, %v860
  %v921 = vmul.f32 %v850, %v860
  %v922 = vmul.f32 %v853, %v860
  %v923 = vmul.f32 %v856, %v860
  %v924 = vmul.f32 %v859, %v860
  %v925 = vsub.f32 %v349, %v861
  %v926 = vsub.f32 %v354, %v862
  %v927 = vsub.f32 %v359, %v863
  %v928 = vsub.f32 %v364, %v864
  %v929 = vsub.f32 %v369, %v865
  %v930 = vsub.f32 %v374, %v866
  %v931 = vsub.f32 %v379, %v867
  %v932 = vsub.f32 %v384, %v868
  %v933 = vsub.f32 %v389, %v869
  %v934 = vsub.f32 %v394, %v870
  %v935 = vsub.f32 %v399, %v871
  %v936 = vsub.f32 %v404, %v872
  %v937 = vsub.f32 %v409, %v873
  %v938 = vsub.f32 %v414, %v874
  %v939 = vsub.f32 %v419, %v875
  %v940 = vsub.f32 %v424, %v876
  %v941 = vsub.f32 %v429, %v877
  %v942 = vsub.f32 %v434, %v878
  %v943 = vsub.f32 %v439, %v879
  %v944 = vsub.f32 %v444, %v880
  %v945 = vsub.f32 %v449, %v881
  %v946 = vsub.f32 %v454, %v882
  %v947 = vsub.f32 %v459, %v883
  %v948 = vsub.f32 %v464, %v884
  %v949 = vsub.f32 %v469, %v885
  %v950 = vsub.f32 %v474, %v886
  %v951 = vsub.f32 %v479, %v887
  %v952 = vsub.f32 %v484, %v888
  %v953 = vsub.f32 %v489, %v889
  %v954 = vsub.f32 %v494, %v890
  %v955 = vsub.f32 %v499, %v891
  %v956 = vsub.f32 %v504, %v892
  %v957 = vsub.f32 %v509, %v893
  %v958 = vsub.f32 %v514, %v894
  %v959 = vsub.f32 %v519, %v895
  %v960 = vsub.f32 %v524, %v896
  %v961 = vsub.f32 %v529, %v897
  %v962 = vsub.f32 %v534, %v898
  %v963 = vsub.f32 %v539, %v899
  %v964 = vsub.f32 %v544, %v900
  %v965 = vsub.f32 %v549, %v901
  %v966 = vsub.f32 %v554, %v902
  %v967 = vsub.f32 %v559, %v903
  %v968 = vsub.f32 %v564, %v904
  %v969 = vsub.f32 %v569, %v905
  %v970 = vsub.f32 %v574, %v906
  %v971 = vsub.f32 %v579, %v907
  %v972 = vsub.f32 %v584, %v908
  %v973 = vsub.f32 %v589, %v909
  %v974 = vsub.f32 %v594, %v910
  %v975 = vsub.f32 %v599, %v911
  %v976 = vsub.f32 %v604, %v912
  %v977 = vsub.f32 %v609, %v913
  %v978 = vsub.f32 %v614, %v914
  %v979 = vsub.f32 %v619, %v915
  %v980 = vsub.f32 %v624, %v916
  %v981 = vsub.f32 %v629, %v917
  %v982 = vsub.f32 %v634, %v918
  %v983 = vsub.f32 %v639, %v919
  %v984 = vsub.f32 %v644, %v920
  %v985 = vsub.f32 %v649, %v921
  %v986 = vsub.f32 %v654, %v922
  %v987 = vsub.f32 %v659, %v923
  %v988 = vsub.f32 %v664, %v924
  %v989 = vmul.f32 %v925, %v925
  %v990 = vmul.f32 %v926, %v926
  %v991 = vmul.f32 %v927, %v927
  %v992 = vmul.f32 %v928, %v928
  %v993 = vmul.f32 %v929, %v929
  %v994 = vmul.f32 %v930, %v930
  %v995 = vmul.f32 %v931, %v931
  %v996 = vmul.f32 %v932, %v932
  %v997 = vmul.f32 %v933, %v933
  %v998 = vmul.f32 %v934, %v934
  %v999 = vmul.f32 %v935, %v935
  %v1000 = vmul.f32 %v936, %v936
  %v1001 = vmul.f32 %v937, %v937
  %v1002 = vmul.f32 %v938, %v938
  %v1003 = vmul.f32 %v939, %v939
  %v1004 = vmul.f32 %v940, %v940
  %v1005 = vmul.f32 %v941, %v941
  %v1006 = vmul.f32 %v942, %v942
  %v1007 = vmul.f32 %v943, %v943
  %v1008 = vmul.f32 %v944, %v944
  %v1009 = vmul.f32 %v945, %v945
  %v1010 = vmul.f32 %v946, %v946
  %v1011 = vmul.f32 %v947, %v947
  %v1012 = vmul.f32 %v948, %v948
  %v1013 = vmul.f32 %v949, %v949
  %v1014 = vmul.f32 %v950, %v950
  %v1015 = vmul.f32 %v951, %v951
  %v1016 = vmul.f32 %v952, %v952
  %v1017 = vmul.f32 %v953, %v953
  %v1018 = vmul.f32 %v954, %v954
  %v1019 = vmul.f32 %v955, %v955
  %v1020 = vmul.f32 %v956, %v956
  %v1021 = vmul.f32 %v957, %v957
  %v1022 = vmul.f32 %v958, %v958
  %v1023 = vmul.f32 %v959, %v959
  %v1024 = vmul.f32 %v960, %v960
  %v1025 = vmul.f32 %v961, %v961
  %v1026 = vmul.f32 %v962, %v962
  %v1027 = vmul.f32 %v963, %v963
  %v1028 = vmul.f32 %v964, %v964
  %v1029 = vmul.f32 %v965, %v965
  %v1030 = vmul.f32 %v966, %v966
  %v1031 = vmul.f32 %v967, %v967
  %v1032 = vmul.f32 %v968, %v968
  %v1033 = vmul.f32 %v969, %v969
  %v1034 = vmul.f32 %v970, %v970
  %v1035 = vmul.f32 %v971, %v971
  %v1036 = vmul.f32 %v972, %v972
  %v1037 = vmul.f32 %v973, %v973
  %v1038 = vmul.f32 %v974, %v974
  %v1039 = vmul.f32 %v975, %v975
  %v1040 = vmul.f32 %v976, %v976
  %v1041 = vmul.f32 %v977, %v977
  %v1042 = vmul.f32 %v978, %v978
  %v1043 = vmul.f32 %v979, %v979
  %v1044 = vmul.f32 %v980, %v980
  %v1045 = vmul.f32 %v981, %v981
  %v1046 = vmul.f32 %v982, %v982
  %v1047 = vmul.f32 %v983, %v983
  %v1048 = vmul.f32 %v984, %v984
  %v1049 = vmul.f32 %v985, %v985
  %v1050 = vmul.f32 %v986, %v986
  %v1051 = vmul.f32 %v987, %v987
  %v1052 = vmul.f32 %v988, %v988
  %v1053 = vsel %vm667, %v989, 0.0
  %1054 = vadd.xlane.f32.xlu0 %v1053
  %v1055 = vpop.xlane.xlu0 %1054
  %v1056 = vsel %vm667, %v990, 0.0
  %1057 = vadd.xlane.f32.xlu0 %v1056
  %v1058 = vpop.xlane.xlu0 %1057
  %v1059 = vsel %vm667, %v991, 0.0
  %1060 = vadd.xlane.f32.xlu0 %v1059
  %v1061 = vpop.xlane.xlu0 %1060
  %v1062 = vsel %vm667, %v992, 0.0
  %1063 = vadd.xlane.f32.xlu0 %v1062
  %v1064 = vpop.xlane.xlu0 %1063
  %v1065 = vsel %vm667, %v993, 0.0
  %1066 = vadd.xlane.f32.xlu0 %v1065
  %v1067 = vpop.xlane.xlu0 %1066
  %v1068 = vsel %vm667, %v994, 0.0
  %1069 = vadd.xlane.f32.xlu0 %v1068
  %v1070 = vpop.xlane.xlu0 %1069
  %v1071 = vsel %vm667, %v995, 0.0
  %1072 = vadd.xlane.f32.xlu0 %v1071
  %v1073 = vpop.xlane.xlu0 %1072
  %v1074 = vsel %vm667, %v996, 0.0
  %1075 = vadd.xlane.f32.xlu0 %v1074
  %v1076 = vpop.xlane.xlu0 %1075
  %v1077 = vsel %vm667, %v997, 0.0
  %1078 = vadd.xlane.f32.xlu0 %v1077
  %v1079 = vpop.xlane.xlu0 %1078
  %v1080 = vsel %vm667, %v998, 0.0
  %1081 = vadd.xlane.f32.xlu0 %v1080
  %v1082 = vpop.xlane.xlu0 %1081
  %v1083 = vsel %vm667, %v999, 0.0
  %1084 = vadd.xlane.f32.xlu0 %v1083
  %v1085 = vpop.xlane.xlu0 %1084
  %v1086 = vsel %vm667, %v1000, 0.0
  %1087 = vadd.xlane.f32.xlu0 %v1086
  %v1088 = vpop.xlane.xlu0 %1087
  %v1089 = vsel %vm667, %v1001, 0.0
  %1090 = vadd.xlane.f32.xlu0 %v1089
  %v1091 = vpop.xlane.xlu0 %1090
  %v1092 = vsel %vm667, %v1002, 0.0
  %1093 = vadd.xlane.f32.xlu0 %v1092
  %v1094 = vpop.xlane.xlu0 %1093
  %v1095 = vsel %vm667, %v1003, 0.0
  %1096 = vadd.xlane.f32.xlu0 %v1095
  %v1097 = vpop.xlane.xlu0 %1096
  %v1098 = vsel %vm667, %v1004, 0.0
  %1099 = vadd.xlane.f32.xlu0 %v1098
  %v1100 = vpop.xlane.xlu0 %1099
  %v1101 = vsel %vm667, %v1005, 0.0
  %1102 = vadd.xlane.f32.xlu0 %v1101
  %v1103 = vpop.xlane.xlu0 %1102
  %v1104 = vsel %vm667, %v1006, 0.0
  %1105 = vadd.xlane.f32.xlu0 %v1104
  %v1106 = vpop.xlane.xlu0 %1105
  %v1107 = vsel %vm667, %v1007, 0.0
  %1108 = vadd.xlane.f32.xlu0 %v1107
  %v1109 = vpop.xlane.xlu0 %1108
  %v1110 = vsel %vm667, %v1008, 0.0
  %1111 = vadd.xlane.f32.xlu0 %v1110
  %v1112 = vpop.xlane.xlu0 %1111
  %v1113 = vsel %vm667, %v1009, 0.0
  %1114 = vadd.xlane.f32.xlu0 %v1113
  %v1115 = vpop.xlane.xlu0 %1114
  %v1116 = vsel %vm667, %v1010, 0.0
  %1117 = vadd.xlane.f32.xlu0 %v1116
  %v1118 = vpop.xlane.xlu0 %1117
  %v1119 = vsel %vm667, %v1011, 0.0
  %1120 = vadd.xlane.f32.xlu0 %v1119
  %v1121 = vpop.xlane.xlu0 %1120
  %v1122 = vsel %vm667, %v1012, 0.0
  %1123 = vadd.xlane.f32.xlu0 %v1122
  %v1124 = vpop.xlane.xlu0 %1123
  %v1125 = vsel %vm667, %v1013, 0.0
  %1126 = vadd.xlane.f32.xlu0 %v1125
  %v1127 = vpop.xlane.xlu0 %1126
  %v1128 = vsel %vm667, %v1014, 0.0
  %1129 = vadd.xlane.f32.xlu0 %v1128
  %v1130 = vpop.xlane.xlu0 %1129
  %v1131 = vsel %vm667, %v1015, 0.0
  %1132 = vadd.xlane.f32.xlu0 %v1131
  %v1133 = vpop.xlane.xlu0 %1132
  %v1134 = vsel %vm667, %v1016, 0.0
  %1135 = vadd.xlane.f32.xlu0 %v1134
  %v1136 = vpop.xlane.xlu0 %1135
  %v1137 = vsel %vm667, %v1017, 0.0
  %1138 = vadd.xlane.f32.xlu0 %v1137
  %v1139 = vpop.xlane.xlu0 %1138
  %v1140 = vsel %vm667, %v1018, 0.0
  %1141 = vadd.xlane.f32.xlu0 %v1140
  %v1142 = vpop.xlane.xlu0 %1141
  %v1143 = vsel %vm667, %v1019, 0.0
  %1144 = vadd.xlane.f32.xlu0 %v1143
  %v1145 = vpop.xlane.xlu0 %1144
  %v1146 = vsel %vm667, %v1020, 0.0
  %1147 = vadd.xlane.f32.xlu0 %v1146
  %v1148 = vpop.xlane.xlu0 %1147
  %v1149 = vsel %vm667, %v1021, 0.0
  %1150 = vadd.xlane.f32.xlu0 %v1149
  %v1151 = vpop.xlane.xlu0 %1150
  %v1152 = vsel %vm667, %v1022, 0.0
  %1153 = vadd.xlane.f32.xlu0 %v1152
  %v1154 = vpop.xlane.xlu0 %1153
  %v1155 = vsel %vm667, %v1023, 0.0
  %1156 = vadd.xlane.f32.xlu0 %v1155
  %v1157 = vpop.xlane.xlu0 %1156
  %v1158 = vsel %vm667, %v1024, 0.0
  %1159 = vadd.xlane.f32.xlu0 %v1158
  %v1160 = vpop.xlane.xlu0 %1159
  %v1161 = vsel %vm667, %v1025, 0.0
  %1162 = vadd.xlane.f32.xlu0 %v1161
  %v1163 = vpop.xlane.xlu0 %1162
  %v1164 = vsel %vm667, %v1026, 0.0
  %1165 = vadd.xlane.f32.xlu0 %v1164
  %v1166 = vpop.xlane.xlu0 %1165
  %v1167 = vsel %vm667, %v1027, 0.0
  %1168 = vadd.xlane.f32.xlu0 %v1167
  %v1169 = vpop.xlane.xlu0 %1168
  %v1170 = vsel %vm667, %v1028, 0.0
  %1171 = vadd.xlane.f32.xlu0 %v1170
  %v1172 = vpop.xlane.xlu0 %1171
  %v1173 = vsel %vm667, %v1029, 0.0
  %1174 = vadd.xlane.f32.xlu0 %v1173
  %v1175 = vpop.xlane.xlu0 %1174
  %v1176 = vsel %vm667, %v1030, 0.0
  %1177 = vadd.xlane.f32.xlu0 %v1176
  %v1178 = vpop.xlane.xlu0 %1177
  %v1179 = vsel %vm667, %v1031, 0.0
  %1180 = vadd.xlane.f32.xlu0 %v1179
  %v1181 = vpop.xlane.xlu0 %1180
  %v1182 = vsel %vm667, %v1032, 0.0
  %1183 = vadd.xlane.f32.xlu0 %v1182
  %v1184 = vpop.xlane.xlu0 %1183
  %v1185 = vsel %vm667, %v1033, 0.0
  %1186 = vadd.xlane.f32.xlu0 %v1185
  %v1187 = vpop.xlane.xlu0 %1186
  %v1188 = vsel %vm667, %v1034, 0.0
  %1189 = vadd.xlane.f32.xlu0 %v1188
  %v1190 = vpop.xlane.xlu0 %1189
  %v1191 = vsel %vm667, %v1035, 0.0
  %1192 = vadd.xlane.f32.xlu0 %v1191
  %v1193 = vpop.xlane.xlu0 %1192
  %v1194 = vsel %vm667, %v1036, 0.0
  %1195 = vadd.xlane.f32.xlu0 %v1194
  %v1196 = vpop.xlane.xlu0 %1195
  %v1197 = vsel %vm667, %v1037, 0.0
  %1198 = vadd.xlane.f32.xlu0 %v1197
  %v1199 = vpop.xlane.xlu0 %1198
  %v1200 = vsel %vm667, %v1038, 0.0
  %1201 = vadd.xlane.f32.xlu0 %v1200
  %v1202 = vpop.xlane.xlu0 %1201
  %v1203 = vsel %vm667, %v1039, 0.0
  %1204 = vadd.xlane.f32.xlu0 %v1203
  %v1205 = vpop.xlane.xlu0 %1204
  %v1206 = vsel %vm667, %v1040, 0.0
  %1207 = vadd.xlane.f32.xlu0 %v1206
  %v1208 = vpop.xlane.xlu0 %1207
  %v1209 = vsel %vm667, %v1041, 0.0
  %1210 = vadd.xlane.f32.xlu0 %v1209
  %v1211 = vpop.xlane.xlu0 %1210
  %v1212 = vsel %vm667, %v1042, 0.0
  %1213 = vadd.xlane.f32.xlu0 %v1212
  %v1214 = vpop.xlane.xlu0 %1213
  %v1215 = vsel %vm667, %v1043, 0.0
  %1216 = vadd.xlane.f32.xlu0 %v1215
  %v1217 = vpop.xlane.xlu0 %1216
  %v1218 = vsel %vm667, %v1044, 0.0
  %1219 = vadd.xlane.f32.xlu0 %v1218
  %v1220 = vpop.xlane.xlu0 %1219
  %v1221 = vsel %vm667, %v1045, 0.0
  %1222 = vadd.xlane.f32.xlu0 %v1221
  %v1223 = vpop.xlane.xlu0 %1222
  %v1224 = vsel %vm667, %v1046, 0.0
  %1225 = vadd.xlane.f32.xlu0 %v1224
  %v1226 = vpop.xlane.xlu0 %1225
  %v1227 = vsel %vm667, %v1047, 0.0
  %1228 = vadd.xlane.f32.xlu0 %v1227
  %v1229 = vpop.xlane.xlu0 %1228
  %v1230 = vsel %vm667, %v1048, 0.0
  %1231 = vadd.xlane.f32.xlu0 %v1230
  %v1232 = vpop.xlane.xlu0 %1231
  %v1233 = vsel %vm667, %v1049, 0.0
  %1234 = vadd.xlane.f32.xlu0 %v1233
  %v1235 = vpop.xlane.xlu0 %1234
  %v1236 = vsel %vm667, %v1050, 0.0
  %1237 = vadd.xlane.f32.xlu0 %v1236
  %v1238 = vpop.xlane.xlu0 %1237
  %v1239 = vsel %vm667, %v1051, 0.0
  %1240 = vadd.xlane.f32.xlu0 %v1239
  %v1241 = vpop.xlane.xlu0 %1240
  %v1242 = vsel %vm667, %v1052, 0.0
  %1243 = vadd.xlane.f32.xlu0 %v1242
  %v1244 = vpop.xlane.xlu0 %1243
  %v1245 = vmul.f32 %v1055, %v860
  %v1246 = vmul.f32 %v1058, %v860
  %v1247 = vmul.f32 %v1061, %v860
  %v1248 = vmul.f32 %v1064, %v860
  %v1249 = vmul.f32 %v1067, %v860
  %v1250 = vmul.f32 %v1070, %v860
  %v1251 = vmul.f32 %v1073, %v860
  %v1252 = vmul.f32 %v1076, %v860
  %v1253 = vmul.f32 %v1079, %v860
  %v1254 = vmul.f32 %v1082, %v860
  %v1255 = vmul.f32 %v1085, %v860
  %v1256 = vmul.f32 %v1088, %v860
  %v1257 = vmul.f32 %v1091, %v860
  %v1258 = vmul.f32 %v1094, %v860
  %v1259 = vmul.f32 %v1097, %v860
  %v1260 = vmul.f32 %v1100, %v860
  %v1261 = vmul.f32 %v1103, %v860
  %v1262 = vmul.f32 %v1106, %v860
  %v1263 = vmul.f32 %v1109, %v860
  %v1264 = vmul.f32 %v1112, %v860
  %v1265 = vmul.f32 %v1115, %v860
  %v1266 = vmul.f32 %v1118, %v860
  %v1267 = vmul.f32 %v1121, %v860
  %v1268 = vmul.f32 %v1124, %v860
  %v1269 = vmul.f32 %v1127, %v860
  %v1270 = vmul.f32 %v1130, %v860
  %v1271 = vmul.f32 %v1133, %v860
  %v1272 = vmul.f32 %v1136, %v860
  %v1273 = vmul.f32 %v1139, %v860
  %v1274 = vmul.f32 %v1142, %v860
  %v1275 = vmul.f32 %v1145, %v860
  %v1276 = vmul.f32 %v1148, %v860
  %v1277 = vmul.f32 %v1151, %v860
  %v1278 = vmul.f32 %v1154, %v860
  %v1279 = vmul.f32 %v1157, %v860
  %v1280 = vmul.f32 %v1160, %v860
  %v1281 = vmul.f32 %v1163, %v860
  %v1282 = vmul.f32 %v1166, %v860
  %v1283 = vmul.f32 %v1169, %v860
  %v1284 = vmul.f32 %v1172, %v860
  %v1285 = vmul.f32 %v1175, %v860
  %v1286 = vmul.f32 %v1178, %v860
  %v1287 = vmul.f32 %v1181, %v860
  %v1288 = vmul.f32 %v1184, %v860
  %v1289 = vmul.f32 %v1187, %v860
  %v1290 = vmul.f32 %v1190, %v860
  %v1291 = vmul.f32 %v1193, %v860
  %v1292 = vmul.f32 %v1196, %v860
  %v1293 = vmul.f32 %v1199, %v860
  %v1294 = vmul.f32 %v1202, %v860
  %v1295 = vmul.f32 %v1205, %v860
  %v1296 = vmul.f32 %v1208, %v860
  %v1297 = vmul.f32 %v1211, %v860
  %v1298 = vmul.f32 %v1214, %v860
  %v1299 = vmul.f32 %v1217, %v860
  %v1300 = vmul.f32 %v1220, %v860
  %v1301 = vmul.f32 %v1223, %v860
  %v1302 = vmul.f32 %v1226, %v860
  %v1303 = vmul.f32 %v1229, %v860
  %v1304 = vmul.f32 %v1232, %v860
  %v1305 = vmul.f32 %v1235, %v860
  %v1306 = vmul.f32 %v1238, %v860
  %v1307 = vmul.f32 %v1241, %v860
  %v1308 = vmul.f32 %v1244, %v860
  %v1309 = vadd.f32 %v1245, 1e-05
  %v1310 = vadd.f32 %v1246, 1e-05
  %v1311 = vadd.f32 %v1247, 1e-05
  %v1312 = vadd.f32 %v1248, 1e-05
  %v1313 = vadd.f32 %v1249, 1e-05
  %v1314 = vadd.f32 %v1250, 1e-05
  %v1315 = vadd.f32 %v1251, 1e-05
  %v1316 = vadd.f32 %v1252, 1e-05
  %v1317 = vadd.f32 %v1253, 1e-05
  %v1318 = vadd.f32 %v1254, 1e-05
  %v1319 = vadd.f32 %v1255, 1e-05
  %v1320 = vadd.f32 %v1256, 1e-05
  %v1321 = vadd.f32 %v1257, 1e-05
  %v1322 = vadd.f32 %v1258, 1e-05
  %v1323 = vadd.f32 %v1259, 1e-05
  %v1324 = vadd.f32 %v1260, 1e-05
  %v1325 = vadd.f32 %v1261, 1e-05
  %v1326 = vadd.f32 %v1262, 1e-05
  %v1327 = vadd.f32 %v1263, 1e-05
  %v1328 = vadd.f32 %v1264, 1e-05
  %v1329 = vadd.f32 %v1265, 1e-05
  %v1330 = vadd.f32 %v1266, 1e-05
  %v1331 = vadd.f32 %v1267, 1e-05
  %v1332 = vadd.f32 %v1268, 1e-05
  %v1333 = vadd.f32 %v1269, 1e-05
  %v1334 = vadd.f32 %v1270, 1e-05
  %v1335 = vadd.f32 %v1271, 1e-05
  %v1336 = vadd.f32 %v1272, 1e-05
  %v1337 = vadd.f32 %v1273, 1e-05
  %v1338 = vadd.f32 %v1274, 1e-05
  %v1339 = vadd.f32 %v1275, 1e-05
  %v1340 = vadd.f32 %v1276, 1e-05
  %v1341 = vadd.f32 %v1277, 1e-05
  %v1342 = vadd.f32 %v1278, 1e-05
  %v1343 = vadd.f32 %v1279, 1e-05
  %v1344 = vadd.f32 %v1280, 1e-05
  %v1345 = vadd.f32 %v1281, 1e-05
  %v1346 = vadd.f32 %v1282, 1e-05
  %v1347 = vadd.f32 %v1283, 1e-05
  %v1348 = vadd.f32 %v1284, 1e-05
  %v1349 = vadd.f32 %v1285, 1e-05
  %v1350 = vadd.f32 %v1286, 1e-05
  %v1351 = vadd.f32 %v1287, 1e-05
  %v1352 = vadd.f32 %v1288, 1e-05
  %v1353 = vadd.f32 %v1289, 1e-05
  %v1354 = vadd.f32 %v1290, 1e-05
  %v1355 = vadd.f32 %v1291, 1e-05
  %v1356 = vadd.f32 %v1292, 1e-05
  %v1357 = vadd.f32 %v1293, 1e-05
  %v1358 = vadd.f32 %v1294, 1e-05
  %v1359 = vadd.f32 %v1295, 1e-05
  %v1360 = vadd.f32 %v1296, 1e-05
  %v1361 = vadd.f32 %v1297, 1e-05
  %v1362 = vadd.f32 %v1298, 1e-05
  %v1363 = vadd.f32 %v1299, 1e-05
  %v1364 = vadd.f32 %v1300, 1e-05
  %v1365 = vadd.f32 %v1301, 1e-05
  %v1366 = vadd.f32 %v1302, 1e-05
  %v1367 = vadd.f32 %v1303, 1e-05
  %v1368 = vadd.f32 %v1304, 1e-05
  %v1369 = vadd.f32 %v1305, 1e-05
  %v1370 = vadd.f32 %v1306, 1e-05
  %v1371 = vadd.f32 %v1307, 1e-05
  %v1372 = vadd.f32 %v1308, 1e-05
  %v1373 = vrsqrt.pop %v1309
  %v1374 = vrsqrt.pop %v1310
  %v1375 = vrsqrt.pop %v1311
  %v1376 = vrsqrt.pop %v1312
  %v1377 = vrsqrt.pop %v1313
  %v1378 = vrsqrt.pop %v1314
  %v1379 = vrsqrt.pop %v1315
  %v1380 = vrsqrt.pop %v1316
  %v1381 = vrsqrt.pop %v1317
  %v1382 = vrsqrt.pop %v1318
  %v1383 = vrsqrt.pop %v1319
  %v1384 = vrsqrt.pop %v1320
  %v1385 = vrsqrt.pop %v1321
  %v1386 = vrsqrt.pop %v1322
  %v1387 = vrsqrt.pop %v1323
  %v1388 = vrsqrt.pop %v1324
  %v1389 = vrsqrt.pop %v1325
  %v1390 = vrsqrt.pop %v1326
  %v1391 = vrsqrt.pop %v1327
  %v1392 = vrsqrt.pop %v1328
  %v1393 = vrsqrt.pop %v1329
  %v1394 = vrsqrt.pop %v1330
  %v1395 = vrsqrt.pop %v1331
  %v1396 = vrsqrt.pop %v1332
  %v1397 = vrsqrt.pop %v1333
  %v1398 = vrsqrt.pop %v1334
  %v1399 = vrsqrt.pop %v1335
  %v1400 = vrsqrt.pop %v1336
  %v1401 = vrsqrt.pop %v1337
  %v1402 = vrsqrt.pop %v1338
  %v1403 = vrsqrt.pop %v1339
  %v1404 = vrsqrt.pop %v1340
  %v1405 = vrsqrt.pop %v1341
  %v1406 = vrsqrt.pop %v1342
  %v1407 = vrsqrt.pop %v1343
  %v1408 = vrsqrt.pop %v1344
  %v1409 = vrsqrt.pop %v1345
  %v1410 = vrsqrt.pop %v1346
  %v1411 = vrsqrt.pop %v1347
  %v1412 = vrsqrt.pop %v1348
  %v1413 = vrsqrt.pop %v1349
  %v1414 = vrsqrt.pop %v1350
  %v1415 = vrsqrt.pop %v1351
  %v1416 = vrsqrt.pop %v1352
  %v1417 = vrsqrt.pop %v1353
  %v1418 = vrsqrt.pop %v1354
  %v1419 = vrsqrt.pop %v1355
  %v1420 = vrsqrt.pop %v1356
  %v1421 = vrsqrt.pop %v1357
  %v1422 = vrsqrt.pop %v1358
  %v1423 = vrsqrt.pop %v1359
  %v1424 = vrsqrt.pop %v1360
  %v1425 = vrsqrt.pop %v1361
  %v1426 = vrsqrt.pop %v1362
  %v1427 = vrsqrt.pop %v1363
  %v1428 = vrsqrt.pop %v1364
  %v1429 = vrsqrt.pop %v1365
  %v1430 = vrsqrt.pop %v1366
  %v1431 = vrsqrt.pop %v1367
  %v1432 = vrsqrt.pop %v1368
  %v1433 = vrsqrt.pop %v1369
  %v1434 = vrsqrt.pop %v1370
  %v1435 = vrsqrt.pop %v1371
  %v1436 = vrsqrt.pop %v1372
  %v1437 = vmul.f32 %v925, %v1373
  %v1438 = vmul.f32 %v926, %v1374
  %v1439 = vmul.f32 %v927, %v1375
  %v1440 = vmul.f32 %v928, %v1376
  %v1441 = vmul.f32 %v929, %v1377
  %v1442 = vmul.f32 %v930, %v1378
  %v1443 = vmul.f32 %v931, %v1379
  %v1444 = vmul.f32 %v932, %v1380
  %v1445 = vmul.f32 %v933, %v1381
  %v1446 = vmul.f32 %v934, %v1382
  %v1447 = vmul.f32 %v935, %v1383
  %v1448 = vmul.f32 %v936, %v1384
  %v1449 = vmul.f32 %v937, %v1385
  %v1450 = vmul.f32 %v938, %v1386
  %v1451 = vmul.f32 %v939, %v1387
  %v1452 = vmul.f32 %v940, %v1388
  %v1453 = vmul.f32 %v941, %v1389
  %v1454 = vmul.f32 %v942, %v1390
  %v1455 = vmul.f32 %v943, %v1391
  %v1456 = vmul.f32 %v944, %v1392
  %v1457 = vmul.f32 %v945, %v1393
  %v1458 = vmul.f32 %v946, %v1394
  %v1459 = vmul.f32 %v947, %v1395
  %v1460 = vmul.f32 %v948, %v1396
  %v1461 = vmul.f32 %v949, %v1397
  %v1462 = vmul.f32 %v950, %v1398
  %v1463 = vmul.f32 %v951, %v1399
  %v1464 = vmul.f32 %v952, %v1400
  %v1465 = vmul.f32 %v953, %v1401
  %v1466 = vmul.f32 %v954, %v1402
  %v1467 = vmul.f32 %v955, %v1403
  %v1468 = vmul.f32 %v956, %v1404
  %v1469 = vmul.f32 %v957, %v1405
  %v1470 = vmul.f32 %v958, %v1406
  %v1471 = vmul.f32 %v959, %v1407
  %v1472 = vmul.f32 %v960, %v1408
  %v1473 = vmul.f32 %v961, %v1409
  %v1474 = vmul.f32 %v962, %v1410
  %v1475 = vmul.f32 %v963, %v1411
  %v1476 = vmul.f32 %v964, %v1412
  %v1477 = vmul.f32 %v965, %v1413
  %v1478 = vmul.f32 %v966, %v1414
  %v1479 = vmul.f32 %v967, %v1415
  %v1480 = vmul.f32 %v968, %v1416
  %v1481 = vmul.f32 %v969, %v1417
  %v1482 = vmul.f32 %v970, %v1418
  %v1483 = vmul.f32 %v971, %v1419
  %v1484 = vmul.f32 %v972, %v1420
  %v1485 = vmul.f32 %v973, %v1421
  %v1486 = vmul.f32 %v974, %v1422
  %v1487 = vmul.f32 %v975, %v1423
  %v1488 = vmul.f32 %v976, %v1424
  %v1489 = vmul.f32 %v977, %v1425
  %v1490 = vmul.f32 %v978, %v1426
  %v1491 = vmul.f32 %v979, %v1427
  %v1492 = vmul.f32 %v980, %v1428
  %v1493 = vmul.f32 %v981, %v1429
  %v1494 = vmul.f32 %v982, %v1430
  %v1495 = vmul.f32 %v983, %v1431
  %v1496 = vmul.f32 %v984, %v1432
  %v1497 = vmul.f32 %v985, %v1433
  %v1498 = vmul.f32 %v986, %v1434
  %v1499 = vmul.f32 %v987, %v1435
  %v1500 = vmul.f32 %v988, %v1436
  %v1501 = vlaneseq
  %v1502 = vshrl.u32 %v1501, 7
  %v1503 = vsub.s32 0, %v1502
  %v1504 = vrot.slane %v87, %v1503
  %v1505 = vmul.f32 %v1437, %v1504
  %v1506 = vmul.f32 %v1438, %v1504
  %v1507 = vmul.f32 %v1439, %v1504
  %v1508 = vmul.f32 %v1440, %v1504
  %v1509 = vmul.f32 %v1441, %v1504
  %v1510 = vmul.f32 %v1442, %v1504
  %v1511 = vmul.f32 %v1443, %v1504
  %v1512 = vmul.f32 %v1444, %v1504
  %v1513 = vmul.f32 %v1445, %v1504
  %v1514 = vmul.f32 %v1446, %v1504
  %v1515 = vmul.f32 %v1447, %v1504
  %v1516 = vmul.f32 %v1448, %v1504
  %v1517 = vmul.f32 %v1449, %v1504
  %v1518 = vmul.f32 %v1450, %v1504
  %v1519 = vmul.f32 %v1451, %v1504
  %v1520 = vmul.f32 %v1452, %v1504
  %v1521 = vmul.f32 %v1453, %v1504
  %v1522 = vmul.f32 %v1454, %v1504
  %v1523 = vmul.f32 %v1455, %v1504
  %v1524 = vmul.f32 %v1456, %v1504
  %v1525 = vmul.f32 %v1457, %v1504
  %v1526 = vmul.f32 %v1458, %v1504
  %v1527 = vmul.f32 %v1459, %v1504
  %v1528 = vmul.f32 %v1460, %v1504
  %v1529 = vmul.f32 %v1461, %v1504
  %v1530 = vmul.f32 %v1462, %v1504
  %v1531 = vmul.f32 %v1463, %v1504
  %v1532 = vmul.f32 %v1464, %v1504
  %v1533 = vmul.f32 %v1465, %v1504
  %v1534 = vmul.f32 %v1466, %v1504
  %v1535 = vmul.f32 %v1467, %v1504
  %v1536 = vmul.f32 %v1468, %v1504
  %v1537 = vmul.f32 %v1469, %v1504
  %v1538 = vmul.f32 %v1470, %v1504
  %v1539 = vmul.f32 %v1471, %v1504
  %v1540 = vmul.f32 %v1472, %v1504
  %v1541 = vmul.f32 %v1473, %v1504
  %v1542 = vmul.f32 %v1474, %v1504
  %v1543 = vmul.f32 %v1475, %v1504
  %v1544 = vmul.f32 %v1476, %v1504
  %v1545 = vmul.f32 %v1477, %v1504
  %v1546 = vmul.f32 %v1478, %v1504
  %v1547 = vmul.f32 %v1479, %v1504
  %v1548 = vmul.f32 %v1480, %v1504
  %v1549 = vmul.f32 %v1481, %v1504
  %v1550 = vmul.f32 %v1482, %v1504
  %v1551 = vmul.f32 %v1483, %v1504
  %v1552 = vmul.f32 %v1484, %v1504
  %v1553 = vmul.f32 %v1485, %v1504
  %v1554 = vmul.f32 %v1486, %v1504
  %v1555 = vmul.f32 %v1487, %v1504
  %v1556 = vmul.f32 %v1488, %v1504
  %v1557 = vmul.f32 %v1489, %v1504
  %v1558 = vmul.f32 %v1490, %v1504
  %v1559 = vmul.f32 %v1491, %v1504
  %v1560 = vmul.f32 %v1492, %v1504
  %v1561 = vmul.f32 %v1493, %v1504
  %v1562 = vmul.f32 %v1494, %v1504
  %v1563 = vmul.f32 %v1495, %v1504
  %v1564 = vmul.f32 %v1496, %v1504
  %v1565 = vmul.f32 %v1497, %v1504
  %v1566 = vmul.f32 %v1498, %v1504
  %v1567 = vmul.f32 %v1499, %v1504
  %v1568 = vmul.f32 %v1500, %v1504
  %v1569 = vlaneseq
  %v1570 = vshrl.u32 %v1569, 7
  %v1571 = vsub.s32 1, %v1570
  %v1572 = vrot.slane %v87, %v1571
  %v1573 = vadd.f32 %v1505, %v1572
  %v1574 = vadd.f32 %v1506, %v1572
  %v1575 = vadd.f32 %v1507, %v1572
  %v1576 = vadd.f32 %v1508, %v1572
  %v1577 = vadd.f32 %v1509, %v1572
  %v1578 = vadd.f32 %v1510, %v1572
  %v1579 = vadd.f32 %v1511, %v1572
  %v1580 = vadd.f32 %v1512, %v1572
  %v1581 = vadd.f32 %v1513, %v1572
  %v1582 = vadd.f32 %v1514, %v1572
  %v1583 = vadd.f32 %v1515, %v1572
  %v1584 = vadd.f32 %v1516, %v1572
  %v1585 = vadd.f32 %v1517, %v1572
  %v1586 = vadd.f32 %v1518, %v1572
  %v1587 = vadd.f32 %v1519, %v1572
  %v1588 = vadd.f32 %v1520, %v1572
  %v1589 = vadd.f32 %v1521, %v1572
  %v1590 = vadd.f32 %v1522, %v1572
  %v1591 = vadd.f32 %v1523, %v1572
  %v1592 = vadd.f32 %v1524, %v1572
  %v1593 = vadd.f32 %v1525, %v1572
  %v1594 = vadd.f32 %v1526, %v1572
  %v1595 = vadd.f32 %v1527, %v1572
  %v1596 = vadd.f32 %v1528, %v1572
  %v1597 = vadd.f32 %v1529, %v1572
  %v1598 = vadd.f32 %v1530, %v1572
  %v1599 = vadd.f32 %v1531, %v1572
  %v1600 = vadd.f32 %v1532, %v1572
  %v1601 = vadd.f32 %v1533, %v1572
  %v1602 = vadd.f32 %v1534, %v1572
  %v1603 = vadd.f32 %v1535, %v1572
  %v1604 = vadd.f32 %v1536, %v1572
  %v1605 = vadd.f32 %v1537, %v1572
  %v1606 = vadd.f32 %v1538, %v1572
  %v1607 = vadd.f32 %v1539, %v1572
  %v1608 = vadd.f32 %v1540, %v1572
  %v1609 = vadd.f32 %v1541, %v1572
  %v1610 = vadd.f32 %v1542, %v1572
  %v1611 = vadd.f32 %v1543, %v1572
  %v1612 = vadd.f32 %v1544, %v1572
  %v1613 = vadd.f32 %v1545, %v1572
  %v1614 = vadd.f32 %v1546, %v1572
  %v1615 = vadd.f32 %v1547, %v1572
  %v1616 = vadd.f32 %v1548, %v1572
  %v1617 = vadd.f32 %v1549, %v1572
  %v1618 = vadd.f32 %v1550, %v1572
  %v1619 = vadd.f32 %v1551, %v1572
  %v1620 = vadd.f32 %v1552, %v1572
  %v1621 = vadd.f32 %v1553, %v1572
  %v1622 = vadd.f32 %v1554, %v1572
  %v1623 = vadd.f32 %v1555, %v1572
  %v1624 = vadd.f32 %v1556, %v1572
  %v1625 = vadd.f32 %v1557, %v1572
  %v1626 = vadd.f32 %v1558, %v1572
  %v1627 = vadd.f32 %v1559, %v1572
  %v1628 = vadd.f32 %v1560, %v1572
  %v1629 = vadd.f32 %v1561, %v1572
  %v1630 = vadd.f32 %v1562, %v1572
  %v1631 = vadd.f32 %v1563, %v1572
  %v1632 = vadd.f32 %v1564, %v1572
  %v1633 = vadd.f32 %v1565, %v1572
  %v1634 = vadd.f32 %v1566, %v1572
  %v1635 = vadd.f32 %v1567, %v1572
  %v1636 = vadd.f32 %v1568, %v1572
  %vm1637 = vcmp.gt.f32.partialorder %v1573, 0.0
  %vm1638 = vcmp.gt.f32.partialorder %v1574, 0.0
  %vm1639 = vcmp.gt.f32.partialorder %v1575, 0.0
  %vm1640 = vcmp.gt.f32.partialorder %v1576, 0.0
  %vm1641 = vcmp.gt.f32.partialorder %v1577, 0.0
  %vm1642 = vcmp.gt.f32.partialorder %v1578, 0.0
  %vm1643 = vcmp.gt.f32.partialorder %v1579, 0.0
  %vm1644 = vcmp.gt.f32.partialorder %v1580, 0.0
  %vm1645 = vcmp.gt.f32.partialorder %v1581, 0.0
  %vm1646 = vcmp.gt.f32.partialorder %v1582, 0.0
  %vm1647 = vcmp.gt.f32.partialorder %v1583, 0.0
  %vm1648 = vcmp.gt.f32.partialorder %v1584, 0.0
  %vm1649 = vcmp.gt.f32.partialorder %v1585, 0.0
  %vm1650 = vcmp.gt.f32.partialorder %v1586, 0.0
  %vm1651 = vcmp.gt.f32.partialorder %v1587, 0.0
  %vm1652 = vcmp.gt.f32.partialorder %v1588, 0.0
  %vm1653 = vcmp.gt.f32.partialorder %v1589, 0.0
  %vm1654 = vcmp.gt.f32.partialorder %v1590, 0.0
  %vm1655 = vcmp.gt.f32.partialorder %v1591, 0.0
  %vm1656 = vcmp.gt.f32.partialorder %v1592, 0.0
  %vm1657 = vcmp.gt.f32.partialorder %v1593, 0.0
  %vm1658 = vcmp.gt.f32.partialorder %v1594, 0.0
  %vm1659 = vcmp.gt.f32.partialorder %v1595, 0.0
  %vm1660 = vcmp.gt.f32.partialorder %v1596, 0.0
  %vm1661 = vcmp.gt.f32.partialorder %v1597, 0.0
  %vm1662 = vcmp.gt.f32.partialorder %v1598, 0.0
  %vm1663 = vcmp.gt.f32.partialorder %v1599, 0.0
  %vm1664 = vcmp.gt.f32.partialorder %v1600, 0.0
  %vm1665 = vcmp.gt.f32.partialorder %v1601, 0.0
  %vm1666 = vcmp.gt.f32.partialorder %v1602, 0.0
  %vm1667 = vcmp.gt.f32.partialorder %v1603, 0.0
  %vm1668 = vcmp.gt.f32.partialorder %v1604, 0.0
  %vm1669 = vcmp.gt.f32.partialorder %v1605, 0.0
  %vm1670 = vcmp.gt.f32.partialorder %v1606, 0.0
  %vm1671 = vcmp.gt.f32.partialorder %v1607, 0.0
  %vm1672 = vcmp.gt.f32.partialorder %v1608, 0.0
  %vm1673 = vcmp.gt.f32.partialorder %v1609, 0.0
  %vm1674 = vcmp.gt.f32.partialorder %v1610, 0.0
  %vm1675 = vcmp.gt.f32.partialorder %v1611, 0.0
  %vm1676 = vcmp.gt.f32.partialorder %v1612, 0.0
  %vm1677 = vcmp.gt.f32.partialorder %v1613, 0.0
  %vm1678 = vcmp.gt.f32.partialorder %v1614, 0.0
  %vm1679 = vcmp.gt.f32.partialorder %v1615, 0.0
  %vm1680 = vcmp.gt.f32.partialorder %v1616, 0.0
  %vm1681 = vcmp.gt.f32.partialorder %v1617, 0.0
  %vm1682 = vcmp.gt.f32.partialorder %v1618, 0.0
  %vm1683 = vcmp.gt.f32.partialorder %v1619, 0.0
  %vm1684 = vcmp.gt.f32.partialorder %v1620, 0.0
  %vm1685 = vcmp.gt.f32.partialorder %v1621, 0.0
  %vm1686 = vcmp.gt.f32.partialorder %v1622, 0.0
  %vm1687 = vcmp.gt.f32.partialorder %v1623, 0.0
  %vm1688 = vcmp.gt.f32.partialorder %v1624, 0.0
  %vm1689 = vcmp.gt.f32.partialorder %v1625, 0.0
  %vm1690 = vcmp.gt.f32.partialorder %v1626, 0.0
  %vm1691 = vcmp.gt.f32.partialorder %v1627, 0.0
  %vm1692 = vcmp.gt.f32.partialorder %v1628, 0.0
  %vm1693 = vcmp.gt.f32.partialorder %v1629, 0.0
  %vm1694 = vcmp.gt.f32.partialorder %v1630, 0.0
  %vm1695 = vcmp.gt.f32.partialorder %v1631, 0.0
  %vm1696 = vcmp.gt.f32.partialorder %v1632, 0.0
  %vm1697 = vcmp.gt.f32.partialorder %v1633, 0.0
  %vm1698 = vcmp.gt.f32.partialorder %v1634, 0.0
  %vm1699 = vcmp.gt.f32.partialorder %v1635, 0.0
  %vm1700 = vcmp.gt.f32.partialorder %v1636, 0.0
  %v1701 = vmul.f32 %v1573, 0.2
  %v1702 = vmul.f32 %v1574, 0.2
  %v1703 = vmul.f32 %v1575, 0.2
  %v1704 = vmul.f32 %v1576, 0.2
  %v1705 = vmul.f32 %v1577, 0.2
  %v1706 = vmul.f32 %v1578, 0.2
  %v1707 = vmul.f32 %v1579, 0.2
  %v1708 = vmul.f32 %v1580, 0.2
  %v1709 = vmul.f32 %v1581, 0.2
  %v1710 = vmul.f32 %v1582, 0.2
  %v1711 = vmul.f32 %v1583, 0.2
  %v1712 = vmul.f32 %v1584, 0.2
  %v1713 = vmul.f32 %v1585, 0.2
  %v1714 = vmul.f32 %v1586, 0.2
  %v1715 = vmul.f32 %v1587, 0.2
  %v1716 = vmul.f32 %v1588, 0.2
  %v1717 = vmul.f32 %v1589, 0.2
  %v1718 = vmul.f32 %v1590, 0.2
  %v1719 = vmul.f32 %v1591, 0.2
  %v1720 = vmul.f32 %v1592, 0.2
  %v1721 = vmul.f32 %v1593, 0.2
  %v1722 = vmul.f32 %v1594, 0.2
  %v1723 = vmul.f32 %v1595, 0.2
  %v1724 = vmul.f32 %v1596, 0.2
  %v1725 = vmul.f32 %v1597, 0.2
  %v1726 = vmul.f32 %v1598, 0.2
  %v1727 = vmul.f32 %v1599, 0.2
  %v1728 = vmul.f32 %v1600, 0.2
  %v1729 = vmul.f32 %v1601, 0.2
  %v1730 = vmul.f32 %v1602, 0.2
  %v1731 = vmul.f32 %v1603, 0.2
  %v1732 = vmul.f32 %v1604, 0.2
  %v1733 = vmul.f32 %v1605, 0.2
  %v1734 = vmul.f32 %v1606, 0.2
  %v1735 = vmul.f32 %v1607, 0.2
  %v1736 = vmul.f32 %v1608, 0.2
  %v1737 = vmul.f32 %v1609, 0.2
  %v1738 = vmul.f32 %v1610, 0.2
  %v1739 = vmul.f32 %v1611, 0.2
  %v1740 = vmul.f32 %v1612, 0.2
  %v1741 = vmul.f32 %v1613, 0.2
  %v1742 = vmul.f32 %v1614, 0.2
  %v1743 = vmul.f32 %v1615, 0.2
  %v1744 = vmul.f32 %v1616, 0.2
  %v1745 = vmul.f32 %v1617, 0.2
  %v1746 = vmul.f32 %v1618, 0.2
  %v1747 = vmul.f32 %v1619, 0.2
  %v1748 = vmul.f32 %v1620, 0.2
  %v1749 = vmul.f32 %v1621, 0.2
  %v1750 = vmul.f32 %v1622, 0.2
  %v1751 = vmul.f32 %v1623, 0.2
  %v1752 = vmul.f32 %v1624, 0.2
  %v1753 = vmul.f32 %v1625, 0.2
  %v1754 = vmul.f32 %v1626, 0.2
  %v1755 = vmul.f32 %v1627, 0.2
  %v1756 = vmul.f32 %v1628, 0.2
  %v1757 = vmul.f32 %v1629, 0.2
  %v1758 = vmul.f32 %v1630, 0.2
  %v1759 = vmul.f32 %v1631, 0.2
  %v1760 = vmul.f32 %v1632, 0.2
  %v1761 = vmul.f32 %v1633, 0.2
  %v1762 = vmul.f32 %v1634, 0.2
  %v1763 = vmul.f32 %v1635, 0.2
  %v1764 = vmul.f32 %v1636, 0.2
  %v1765 = vsel %vm1637, %v1573, %v1701
  %v1766 = vsel %vm1638, %v1574, %v1702
  %v1767 = vsel %vm1639, %v1575, %v1703
  %v1768 = vsel %vm1640, %v1576, %v1704
  %v1769 = vsel %vm1641, %v1577, %v1705
  %v1770 = vsel %vm1642, %v1578, %v1706
  %v1771 = vsel %vm1643, %v1579, %v1707
  %v1772 = vsel %vm1644, %v1580, %v1708
  %v1773 = vsel %vm1645, %v1581, %v1709
  %v1774 = vsel %vm1646, %v1582, %v1710
  %v1775 = vsel %vm1647, %v1583, %v1711
  %v1776 = vsel %vm1648, %v1584, %v1712
  %v1777 = vsel %vm1649, %v1585, %v1713
  %v1778 = vsel %vm1650, %v1586, %v1714
  %v1779 = vsel %vm1651, %v1587, %v1715
  %v1780 = vsel %vm1652, %v1588, %v1716
  %v1781 = vsel %vm1653, %v1589, %v1717
  %v1782 = vsel %vm1654, %v1590, %v1718
  %v1783 = vsel %vm1655, %v1591, %v1719
  %v1784 = vsel %vm1656, %v1592, %v1720
  %v1785 = vsel %vm1657, %v1593, %v1721
  %v1786 = vsel %vm1658, %v1594, %v1722
  %v1787 = vsel %vm1659, %v1595, %v1723
  %v1788 = vsel %vm1660, %v1596, %v1724
  %v1789 = vsel %vm1661, %v1597, %v1725
  %v1790 = vsel %vm1662, %v1598, %v1726
  %v1791 = vsel %vm1663, %v1599, %v1727
  %v1792 = vsel %vm1664, %v1600, %v1728
  %v1793 = vsel %vm1665, %v1601, %v1729
  %v1794 = vsel %vm1666, %v1602, %v1730
  %v1795 = vsel %vm1667, %v1603, %v1731
  %v1796 = vsel %vm1668, %v1604, %v1732
  %v1797 = vsel %vm1669, %v1605, %v1733
  %v1798 = vsel %vm1670, %v1606, %v1734
  %v1799 = vsel %vm1671, %v1607, %v1735
  %v1800 = vsel %vm1672, %v1608, %v1736
  %v1801 = vsel %vm1673, %v1609, %v1737
  %v1802 = vsel %vm1674, %v1610, %v1738
  %v1803 = vsel %vm1675, %v1611, %v1739
  %v1804 = vsel %vm1676, %v1612, %v1740
  %v1805 = vsel %vm1677, %v1613, %v1741
  %v1806 = vsel %vm1678, %v1614, %v1742
  %v1807 = vsel %vm1679, %v1615, %v1743
  %v1808 = vsel %vm1680, %v1616, %v1744
  %v1809 = vsel %vm1681, %v1617, %v1745
  %v1810 = vsel %vm1682, %v1618, %v1746
  %v1811 = vsel %vm1683, %v1619, %v1747
  %v1812 = vsel %vm1684, %v1620, %v1748
  %v1813 = vsel %vm1685, %v1621, %v1749
  %v1814 = vsel %vm1686, %v1622, %v1750
  %v1815 = vsel %vm1687, %v1623, %v1751
  %v1816 = vsel %vm1688, %v1624, %v1752
  %v1817 = vsel %vm1689, %v1625, %v1753
  %v1818 = vsel %vm1690, %v1626, %v1754
  %v1819 = vsel %vm1691, %v1627, %v1755
  %v1820 = vsel %vm1692, %v1628, %v1756
  %v1821 = vsel %vm1693, %v1629, %v1757
  %v1822 = vsel %vm1694, %v1630, %v1758
  %v1823 = vsel %vm1695, %v1631, %v1759
  %v1824 = vsel %vm1696, %v1632, %v1760
  %v1825 = vsel %vm1697, %v1633, %v1761
  %v1826 = vsel %vm1698, %v1634, %v1762
  %v1827 = vsel %vm1699, %v1635, %v1763
  %v1828 = vsel %vm1700, %v1636, %v1764
  %v1829 = vld [vmem:[%s2] sm:$0xff]
  %v1830 = vld [vmem:[%s2 + $0x8] sm:$0xff]
  %v1831 = vld [vmem:[%s2 + $0x10] sm:$0xff]
  %v1832 = vld [vmem:[%s2 + $0x18] sm:$0xff]
  %v1833 = vlaneseq
  %v1834 = vshrl.u32 %v1833, 7
  %v1835 = vsub.s32 2, %v1834
  %v1836 = vrot.slane %v87, %v1835
  %v1838 = vsel %vm667, %v1765, 0
  %v1841 = vsel %vm667, %v1766, 0
  %v1844 = vsel %vm667, %v1767, 0
  %v1847 = vsel %vm667, %v1768, 0
  %v1850 = vsel %vm667, %v1769, 0
  %v1853 = vsel %vm667, %v1770, 0
  %v1856 = vsel %vm667, %v1771, 0
  %v1859 = vsel %vm667, %v1772, 0
  %v1862 = vsel %vm667, %v1773, 0
  %v1865 = vsel %vm667, %v1774, 0
  %v1868 = vsel %vm667, %v1775, 0
  %v1871 = vsel %vm667, %v1776, 0
  %v1874 = vsel %vm667, %v1777, 0
  %v1877 = vsel %vm667, %v1778, 0
  %v1880 = vsel %vm667, %v1779, 0
  %v1883 = vsel %vm667, %v1780, 0
  %v1886 = vsel %vm667, %v1781, 0
  %v1889 = vsel %vm667, %v1782, 0
  %v1892 = vsel %vm667, %v1783, 0
  %v1895 = vsel %vm667, %v1784, 0
  %v1898 = vsel %vm667, %v1785, 0
  %v1901 = vsel %vm667, %v1786, 0
  %v1904 = vsel %vm667, %v1787, 0
  %v1907 = vsel %vm667, %v1788, 0
  %v1910 = vsel %vm667, %v1789, 0
  %v1913 = vsel %vm667, %v1790, 0
  %v1916 = vsel %vm667, %v1791, 0
  %v1919 = vsel %vm667, %v1792, 0
  %v1922 = vsel %vm667, %v1793, 0
  %v1925 = vsel %vm667, %v1794, 0
  %v1928 = vsel %vm667, %v1795, 0
  %v1931 = vsel %vm667, %v1796, 0
  %v1934 = vsel %vm667, %v1797, 0
  %v1937 = vsel %vm667, %v1798, 0
  %v1940 = vsel %vm667, %v1799, 0
  %v1943 = vsel %vm667, %v1800, 0
  %v1946 = vsel %vm667, %v1801, 0
  %v1949 = vsel %vm667, %v1802, 0
  %v1952 = vsel %vm667, %v1803, 0
  %v1955 = vsel %vm667, %v1804, 0
  %v1958 = vsel %vm667, %v1805, 0
  %v1961 = vsel %vm667, %v1806, 0
  %v1964 = vsel %vm667, %v1807, 0
  %v1967 = vsel %vm667, %v1808, 0
  %v1970 = vsel %vm667, %v1809, 0
  %v1973 = vsel %vm667, %v1810, 0
  %v1976 = vsel %vm667, %v1811, 0
  %v1979 = vsel %vm667, %v1812, 0
  %v1982 = vsel %vm667, %v1813, 0
  %v1985 = vsel %vm667, %v1814, 0
  %v1988 = vsel %vm667, %v1815, 0
  %v1991 = vsel %vm667, %v1816, 0
  %v1994 = vsel %vm667, %v1817, 0
  %v1997 = vsel %vm667, %v1818, 0
  %v2000 = vsel %vm667, %v1819, 0
  %v2003 = vsel %vm667, %v1820, 0
  %v2006 = vsel %vm667, %v1821, 0
  %v2009 = vsel %vm667, %v1822, 0
  %v2012 = vsel %vm667, %v1823, 0
  %v2015 = vsel %vm667, %v1824, 0
  %v2018 = vsel %vm667, %v1825, 0
  %v2021 = vsel %vm667, %v1826, 0
  %v2024 = vsel %vm667, %v1827, 0
  %v2027 = vsel %vm667, %v1828, 0
  %2029 = vmatprep.subr.mxu0 0.0
  %2030 = vmatpush1.msra.mxu0 0.0
  %2031 = vmatprep.subr.mxu0 0.0
  %2032 = vmatpush1.msra.mxu0 0.0
  %2033 = vmatprep.subr.mxu0 0.0
  %2034 = vmatpush1.msra.mxu0 0.0
  %2035 = vmatprep.subr.mxu0 0.0
  %2036 = vmatpush1.msra.mxu0 0.0
  %2037 = vmatprep.subr.mxu0 0.0
  %2038 = vmatpush1.msra.mxu0 0.0
  %2039 = vmatprep.subr.mxu0 0.0
  %2040 = vmatpush1.msra.mxu0 0.0
  %2041 = vmatprep.subr.mxu0 0.0
  %2042 = vmatpush1.msra.mxu0 0.0
  %2043 = vmatprep.subr.mxu0 0.0
  %2044 = vmatpush1.msra.mxu0 0.0
  %2045 = vmatprep.subr.mxu0 0.0
  %2046 = vmatpush1.msra.mxu0 0.0
  %2047 = vmatprep.subr.mxu0 0.0
  %2048 = vmatpush1.msra.mxu0 0.0
  %2049 = vmatprep.subr.mxu0 0.0
  %2050 = vmatpush1.msra.mxu0 0.0
  %2051 = vmatprep.subr.mxu0 0.0
  %2052 = vmatpush1.msra.mxu0 0.0
  %2053 = vmatprep.subr.mxu0 0.0
  %2054 = vmatpush1.msra.mxu0 %v1832
  %2055 = vmatprep.subr.mxu0 0.0
  %2056 = vmatpush1.msra.mxu0 %v1831
  %2057 = vmatprep.subr.mxu0 0.0
  %2058 = vmatpush1.msra.mxu0 %v1830
  %2059 = vmatprep.subr.mxu0 0.0
  %2060 = vmatpush1.msra.mxu0 %v1829
  %2061 = vmatprep.subr.mxu0 0.0
  %2062 = vmatpush2.msra.mxu0 0.0
  %2063 = vmatprep.subr.mxu0 0.0
  %2064 = vmatpush2.msra.mxu0 0.0
  %2065 = vmatprep.subr.mxu0 0.0
  %2066 = vmatpush2.msra.mxu0 0.0
  %2067 = vmatprep.subr.mxu0 0.0
  %2068 = vmatpush2.msra.mxu0 0.0
  %2069 = vmatprep.subr.mxu0 0.0
  %2070 = vmatpush2.msra.mxu0 0.0
  %2071 = vmatprep.subr.mxu0 0.0
  %2072 = vmatpush2.msra.mxu0 0.0
  %2073 = vmatprep.subr.mxu0 0.0
  %2074 = vmatpush2.msra.mxu0 0.0
  %2075 = vmatprep.subr.mxu0 0.0
  %2076 = vmatpush2.msra.mxu0 0.0
  %2077 = vmatprep.subr.mxu0 0.0
  %2078 = vmatpush2.msra.mxu0 0.0
  %2079 = vmatprep.subr.mxu0 0.0
  %2080 = vmatpush2.msra.mxu0 0.0
  %2081 = vmatprep.subr.mxu0 0.0
  %2082 = vmatpush2.msra.mxu0 0.0
  %2083 = vmatprep.subr.mxu0 0.0
  %2084 = vmatpush2.msra.mxu0 0.0
  %2085 = vmatprep.subr.mxu0 0.0
  %2086 = vmatpush2.msra.mxu0 0.0
  %2087 = vmatprep.subr.mxu0 0.0
  %2088 = vmatpush2.msra.mxu0 0.0
  %2089 = vmatprep.subr.mxu0 0.0
  %2090 = vmatpush2.msra.mxu0 0.0
  %2091 = vmatprep.subr.mxu0 0.0
  %2092 = vmatpush2.msra.mxu0 0.0
  %2093 = vmatprep.mubr.f32.mxu0 0.0
  %2094 = vmatmul.mubr.f32.gmra.mxu0 %v1838
  %v2095 = vpop.f32.mrf.mxu0
  %v2096 = vadd.f32 %v1836, %v2095
  %v2097 = vpop.f32.mrf.mxu0
  %2098 = vmatprep.mubr.f32.mxu0 0.0
  %2099 = vmatmul.mubr.f32.gmra.mxu0 %v1841
  %v2100 = vpop.f32.mrf.mxu0
  %v2101 = vadd.f32 %v1836, %v2100
  %v2102 = vpop.f32.mrf.mxu0
  %2103 = vmatprep.mubr.f32.mxu0 0.0
  %2104 = vmatmul.mubr.f32.gmra.mxu0 %v1844
  %v2105 = vpop.f32.mrf.mxu0
  %v2106 = vadd.f32 %v1836, %v2105
  %v2107 = vpop.f32.mrf.mxu0
  %2108 = vmatprep.mubr.f32.mxu0 0.0
  %2109 = vmatmul.mubr.f32.gmra.mxu0 %v1847
  %v2110 = vpop.f32.mrf.mxu0
  %v2111 = vadd.f32 %v1836, %v2110
  %v2112 = vpop.f32.mrf.mxu0
  %2113 = vmatprep.mubr.f32.mxu0 0.0
  %2114 = vmatmul.mubr.f32.gmra.mxu0 %v1850
  %v2115 = vpop.f32.mrf.mxu0
  %v2116 = vadd.f32 %v1836, %v2115
  %v2117 = vpop.f32.mrf.mxu0
  %2118 = vmatprep.mubr.f32.mxu0 0.0
  %2119 = vmatmul.mubr.f32.gmra.mxu0 %v1853
  %v2120 = vpop.f32.mrf.mxu0
  %v2121 = vadd.f32 %v1836, %v2120
  %v2122 = vpop.f32.mrf.mxu0
  %2123 = vmatprep.mubr.f32.mxu0 0.0
  %2124 = vmatmul.mubr.f32.gmra.mxu0 %v1856
  %v2125 = vpop.f32.mrf.mxu0
  %v2126 = vadd.f32 %v1836, %v2125
  %v2127 = vpop.f32.mrf.mxu0
  %2128 = vmatprep.mubr.f32.mxu0 0.0
  %2129 = vmatmul.mubr.f32.gmra.mxu0 %v1859
  %v2130 = vpop.f32.mrf.mxu0
  %v2131 = vadd.f32 %v1836, %v2130
  %v2132 = vpop.f32.mrf.mxu0
  %2133 = vmatprep.mubr.f32.mxu0 0.0
  %2134 = vmatmul.mubr.f32.gmra.mxu0 %v1862
  %v2135 = vpop.f32.mrf.mxu0
  %v2136 = vadd.f32 %v1836, %v2135
  %v2137 = vpop.f32.mrf.mxu0
  %2138 = vmatprep.mubr.f32.mxu0 0.0
  %2139 = vmatmul.mubr.f32.gmra.mxu0 %v1865
  %v2140 = vpop.f32.mrf.mxu0
  %v2141 = vadd.f32 %v1836, %v2140
  %v2142 = vpop.f32.mrf.mxu0
  %2143 = vmatprep.mubr.f32.mxu0 0.0
  %2144 = vmatmul.mubr.f32.gmra.mxu0 %v1868
  %v2145 = vpop.f32.mrf.mxu0
  %v2146 = vadd.f32 %v1836, %v2145
  %v2147 = vpop.f32.mrf.mxu0
  %2148 = vmatprep.mubr.f32.mxu0 0.0
  %2149 = vmatmul.mubr.f32.gmra.mxu0 %v1871
  %v2150 = vpop.f32.mrf.mxu0
  %v2151 = vadd.f32 %v1836, %v2150
  %v2152 = vpop.f32.mrf.mxu0
  %2153 = vmatprep.mubr.f32.mxu0 0.0
  %2154 = vmatmul.mubr.f32.gmra.mxu0 %v1874
  %v2155 = vpop.f32.mrf.mxu0
  %v2156 = vadd.f32 %v1836, %v2155
  %v2157 = vpop.f32.mrf.mxu0
  %2158 = vmatprep.mubr.f32.mxu0 0.0
  %2159 = vmatmul.mubr.f32.gmra.mxu0 %v1877
  %v2160 = vpop.f32.mrf.mxu0
  %v2161 = vadd.f32 %v1836, %v2160
  %v2162 = vpop.f32.mrf.mxu0
  %2163 = vmatprep.mubr.f32.mxu0 0.0
  %2164 = vmatmul.mubr.f32.gmra.mxu0 %v1880
  %v2165 = vpop.f32.mrf.mxu0
  %v2166 = vadd.f32 %v1836, %v2165
  %v2167 = vpop.f32.mrf.mxu0
  %2168 = vmatprep.mubr.f32.mxu0 0.0
  %2169 = vmatmul.mubr.f32.gmra.mxu0 %v1883
  %v2170 = vpop.f32.mrf.mxu0
  %v2171 = vadd.f32 %v1836, %v2170
  %v2172 = vpop.f32.mrf.mxu0
  %2173 = vmatprep.mubr.f32.mxu0 0.0
  %2174 = vmatmul.mubr.f32.gmra.mxu0 %v1886
  %v2175 = vpop.f32.mrf.mxu0
  %v2176 = vadd.f32 %v1836, %v2175
  %v2177 = vpop.f32.mrf.mxu0
  %2178 = vmatprep.mubr.f32.mxu0 0.0
  %2179 = vmatmul.mubr.f32.gmra.mxu0 %v1889
  %v2180 = vpop.f32.mrf.mxu0
  %v2181 = vadd.f32 %v1836, %v2180
  %v2182 = vpop.f32.mrf.mxu0
  %2183 = vmatprep.mubr.f32.mxu0 0.0
  %2184 = vmatmul.mubr.f32.gmra.mxu0 %v1892
  %v2185 = vpop.f32.mrf.mxu0
  %v2186 = vadd.f32 %v1836, %v2185
  %v2187 = vpop.f32.mrf.mxu0
  %2188 = vmatprep.mubr.f32.mxu0 0.0
  %2189 = vmatmul.mubr.f32.gmra.mxu0 %v1895
  %v2190 = vpop.f32.mrf.mxu0
  %v2191 = vadd.f32 %v1836, %v2190
  %v2192 = vpop.f32.mrf.mxu0
  %2193 = vmatprep.mubr.f32.mxu0 0.0
  %2194 = vmatmul.mubr.f32.gmra.mxu0 %v1898
  %v2195 = vpop.f32.mrf.mxu0
  %v2196 = vadd.f32 %v1836, %v2195
  %v2197 = vpop.f32.mrf.mxu0
  %2198 = vmatprep.mubr.f32.mxu0 0.0
  %2199 = vmatmul.mubr.f32.gmra.mxu0 %v1901
  %v2200 = vpop.f32.mrf.mxu0
  %v2201 = vadd.f32 %v1836, %v2200
  %v2202 = vpop.f32.mrf.mxu0
  %2203 = vmatprep.mubr.f32.mxu0 0.0
  %2204 = vmatmul.mubr.f32.gmra.mxu0 %v1904
  %v2205 = vpop.f32.mrf.mxu0
  %v2206 = vadd.f32 %v1836, %v2205
  %v2207 = vpop.f32.mrf.mxu0
  %2208 = vmatprep.mubr.f32.mxu0 0.0
  %2209 = vmatmul.mubr.f32.gmra.mxu0 %v1907
  %v2210 = vpop.f32.mrf.mxu0
  %v2211 = vadd.f32 %v1836, %v2210
  %v2212 = vpop.f32.mrf.mxu0
  %2213 = vmatprep.mubr.f32.mxu0 0.0
  %2214 = vmatmul.mubr.f32.gmra.mxu0 %v1910
  %v2215 = vpop.f32.mrf.mxu0
  %v2216 = vadd.f32 %v1836, %v2215
  %v2217 = vpop.f32.mrf.mxu0
  %2218 = vmatprep.mubr.f32.mxu0 0.0
  %2219 = vmatmul.mubr.f32.gmra.mxu0 %v1913
  %v2220 = vpop.f32.mrf.mxu0
  %v2221 = vadd.f32 %v1836, %v2220
  %v2222 = vpop.f32.mrf.mxu0
  %2223 = vmatprep.mubr.f32.mxu0 0.0
  %2224 = vmatmul.mubr.f32.gmra.mxu0 %v1916
  %v2225 = vpop.f32.mrf.mxu0
  %v2226 = vadd.f32 %v1836, %v2225
  %v2227 = vpop.f32.mrf.mxu0
  %2228 = vmatprep.mubr.f32.mxu0 0.0
  %2229 = vmatmul.mubr.f32.gmra.mxu0 %v1919
  %v2230 = vpop.f32.mrf.mxu0
  %v2231 = vadd.f32 %v1836, %v2230
  %v2232 = vpop.f32.mrf.mxu0
  %2233 = vmatprep.mubr.f32.mxu0 0.0
  %2234 = vmatmul.mubr.f32.gmra.mxu0 %v1922
  %v2235 = vpop.f32.mrf.mxu0
  %v2236 = vadd.f32 %v1836, %v2235
  %v2237 = vpop.f32.mrf.mxu0
  %2238 = vmatprep.mubr.f32.mxu0 0.0
  %2239 = vmatmul.mubr.f32.gmra.mxu0 %v1925
  %v2240 = vpop.f32.mrf.mxu0
  %v2241 = vadd.f32 %v1836, %v2240
  %v2242 = vpop.f32.mrf.mxu0
  %2243 = vmatprep.mubr.f32.mxu0 0.0
  %2244 = vmatmul.mubr.f32.gmra.mxu0 %v1928
  %v2245 = vpop.f32.mrf.mxu0
  %v2246 = vadd.f32 %v1836, %v2245
  %v2247 = vpop.f32.mrf.mxu0
  %2248 = vmatprep.mubr.f32.mxu0 0.0
  %2249 = vmatmul.mubr.f32.gmra.mxu0 %v1931
  %v2250 = vpop.f32.mrf.mxu0
  %v2251 = vadd.f32 %v1836, %v2250
  %v2252 = vpop.f32.mrf.mxu0
  %2253 = vmatprep.mubr.f32.mxu0 0.0
  %2254 = vmatmul.mubr.f32.gmra.mxu0 %v1934
  %v2255 = vpop.f32.mrf.mxu0
  %v2256 = vadd.f32 %v1836, %v2255
  %v2257 = vpop.f32.mrf.mxu0
  %2258 = vmatprep.mubr.f32.mxu0 0.0
  %2259 = vmatmul.mubr.f32.gmra.mxu0 %v1937
  %v2260 = vpop.f32.mrf.mxu0
  %v2261 = vadd.f32 %v1836, %v2260
  %v2262 = vpop.f32.mrf.mxu0
  %2263 = vmatprep.mubr.f32.mxu0 0.0
  %2264 = vmatmul.mubr.f32.gmra.mxu0 %v1940
  %v2265 = vpop.f32.mrf.mxu0
  %v2266 = vadd.f32 %v1836, %v2265
  %v2267 = vpop.f32.mrf.mxu0
  %2268 = vmatprep.mubr.f32.mxu0 0.0
  %2269 = vmatmul.mubr.f32.gmra.mxu0 %v1943
  %v2270 = vpop.f32.mrf.mxu0
  %v2271 = vadd.f32 %v1836, %v2270
  %v2272 = vpop.f32.mrf.mxu0
  %2273 = vmatprep.mubr.f32.mxu0 0.0
  %2274 = vmatmul.mubr.f32.gmra.mxu0 %v1946
  %v2275 = vpop.f32.mrf.mxu0
  %v2276 = vadd.f32 %v1836, %v2275
  %v2277 = vpop.f32.mrf.mxu0
  %2278 = vmatprep.mubr.f32.mxu0 0.0
  %2279 = vmatmul.mubr.f32.gmra.mxu0 %v1949
  %v2280 = vpop.f32.mrf.mxu0
  %v2281 = vadd.f32 %v1836, %v2280
  %v2282 = vpop.f32.mrf.mxu0
  %2283 = vmatprep.mubr.f32.mxu0 0.0
  %2284 = vmatmul.mubr.f32.gmra.mxu0 %v1952
  %v2285 = vpop.f32.mrf.mxu0
  %v2286 = vadd.f32 %v1836, %v2285
  %v2287 = vpop.f32.mrf.mxu0
  %2288 = vmatprep.mubr.f32.mxu0 0.0
  %2289 = vmatmul.mubr.f32.gmra.mxu0 %v1955
  %v2290 = vpop.f32.mrf.mxu0
  %v2291 = vadd.f32 %v1836, %v2290
  %v2292 = vpop.f32.mrf.mxu0
  %2293 = vmatprep.mubr.f32.mxu0 0.0
  %2294 = vmatmul.mubr.f32.gmra.mxu0 %v1958
  %v2295 = vpop.f32.mrf.mxu0
  %v2296 = vadd.f32 %v1836, %v2295
  %v2297 = vpop.f32.mrf.mxu0
  %2298 = vmatprep.mubr.f32.mxu0 0.0
  %2299 = vmatmul.mubr.f32.gmra.mxu0 %v1961
  %v2300 = vpop.f32.mrf.mxu0
  %v2301 = vadd.f32 %v1836, %v2300
  %v2302 = vpop.f32.mrf.mxu0
  %2303 = vmatprep.mubr.f32.mxu0 0.0
  %2304 = vmatmul.mubr.f32.gmra.mxu0 %v1964
  %v2305 = vpop.f32.mrf.mxu0
  %v2306 = vadd.f32 %v1836, %v2305
  %v2307 = vpop.f32.mrf.mxu0
  %2308 = vmatprep.mubr.f32.mxu0 0.0
  %2309 = vmatmul.mubr.f32.gmra.mxu0 %v1967
  %v2310 = vpop.f32.mrf.mxu0
  %v2311 = vadd.f32 %v1836, %v2310
  %v2312 = vpop.f32.mrf.mxu0
  %2313 = vmatprep.mubr.f32.mxu0 0.0
  %2314 = vmatmul.mubr.f32.gmra.mxu0 %v1970
  %v2315 = vpop.f32.mrf.mxu0
  %v2316 = vadd.f32 %v1836, %v2315
  %v2317 = vpop.f32.mrf.mxu0
  %2318 = vmatprep.mubr.f32.mxu0 0.0
  %2319 = vmatmul.mubr.f32.gmra.mxu0 %v1973
  %v2320 = vpop.f32.mrf.mxu0
  %v2321 = vadd.f32 %v1836, %v2320
  %v2322 = vpop.f32.mrf.mxu0
  %2323 = vmatprep.mubr.f32.mxu0 0.0
  %2324 = vmatmul.mubr.f32.gmra.mxu0 %v1976
  %v2325 = vpop.f32.mrf.mxu0
  %v2326 = vadd.f32 %v1836, %v2325
  %v2327 = vpop.f32.mrf.mxu0
  %2328 = vmatprep.mubr.f32.mxu0 0.0
  %2329 = vmatmul.mubr.f32.gmra.mxu0 %v1979
  %v2330 = vpop.f32.mrf.mxu0
  %v2331 = vadd.f32 %v1836, %v2330
  %v2332 = vpop.f32.mrf.mxu0
  %2333 = vmatprep.mubr.f32.mxu0 0.0
  %2334 = vmatmul.mubr.f32.gmra.mxu0 %v1982
  %v2335 = vpop.f32.mrf.mxu0
  %v2336 = vadd.f32 %v1836, %v2335
  %v2337 = vpop.f32.mrf.mxu0
  %2338 = vmatprep.mubr.f32.mxu0 0.0
  %2339 = vmatmul.mubr.f32.gmra.mxu0 %v1985
  %v2340 = vpop.f32.mrf.mxu0
  %v2341 = vadd.f32 %v1836, %v2340
  %v2342 = vpop.f32.mrf.mxu0
  %2343 = vmatprep.mubr.f32.mxu0 0.0
  %2344 = vmatmul.mubr.f32.gmra.mxu0 %v1988
  %v2345 = vpop.f32.mrf.mxu0
  %v2346 = vadd.f32 %v1836, %v2345
  %v2347 = vpop.f32.mrf.mxu0
  %2348 = vmatprep.mubr.f32.mxu0 0.0
  %2349 = vmatmul.mubr.f32.gmra.mxu0 %v1991
  %v2350 = vpop.f32.mrf.mxu0
  %v2351 = vadd.f32 %v1836, %v2350
  %v2352 = vpop.f32.mrf.mxu0
  %2353 = vmatprep.mubr.f32.mxu0 0.0
  %2354 = vmatmul.mubr.f32.gmra.mxu0 %v1994
  %v2355 = vpop.f32.mrf.mxu0
  %v2356 = vadd.f32 %v1836, %v2355
  %v2357 = vpop.f32.mrf.mxu0
  %2358 = vmatprep.mubr.f32.mxu0 0.0
  %2359 = vmatmul.mubr.f32.gmra.mxu0 %v1997
  %v2360 = vpop.f32.mrf.mxu0
  %v2361 = vadd.f32 %v1836, %v2360
  %v2362 = vpop.f32.mrf.mxu0
  %2363 = vmatprep.mubr.f32.mxu0 0.0
  %2364 = vmatmul.mubr.f32.gmra.mxu0 %v2000
  %v2365 = vpop.f32.mrf.mxu0
  %v2366 = vadd.f32 %v1836, %v2365
  %v2367 = vpop.f32.mrf.mxu0
  %2368 = vmatprep.mubr.f32.mxu0 0.0
  %2369 = vmatmul.mubr.f32.gmra.mxu0 %v2003
  %v2370 = vpop.f32.mrf.mxu0
  %v2371 = vadd.f32 %v1836, %v2370
  %v2372 = vpop.f32.mrf.mxu0
  %2373 = vmatprep.mubr.f32.mxu0 0.0
  %2374 = vmatmul.mubr.f32.gmra.mxu0 %v2006
  %v2375 = vpop.f32.mrf.mxu0
  %v2376 = vadd.f32 %v1836, %v2375
  %v2377 = vpop.f32.mrf.mxu0
  %2378 = vmatprep.mubr.f32.mxu0 0.0
  %2379 = vmatmul.mubr.f32.gmra.mxu0 %v2009
  %v2380 = vpop.f32.mrf.mxu0
  %v2381 = vadd.f32 %v1836, %v2380
  %v2382 = vpop.f32.mrf.mxu0
  %2383 = vmatprep.mubr.f32.mxu0 0.0
  %2384 = vmatmul.mubr.f32.gmra.mxu0 %v2012
  %v2385 = vpop.f32.mrf.mxu0
  %v2386 = vadd.f32 %v1836, %v2385
  %v2387 = vpop.f32.mrf.mxu0
  %2388 = vmatprep.mubr.f32.mxu0 0.0
  %2389 = vmatmul.mubr.f32.gmra.mxu0 %v2015
  %v2390 = vpop.f32.mrf.mxu0
  %v2391 = vadd.f32 %v1836, %v2390
  %v2392 = vpop.f32.mrf.mxu0
  %2393 = vmatprep.mubr.f32.mxu0 0.0
  %2394 = vmatmul.mubr.f32.gmra.mxu0 %v2018
  %v2395 = vpop.f32.mrf.mxu0
  %v2396 = vadd.f32 %v1836, %v2395
  %v2397 = vpop.f32.mrf.mxu0
  %2398 = vmatprep.mubr.f32.mxu0 0.0
  %2399 = vmatmul.mubr.f32.gmra.mxu0 %v2021
  %v2400 = vpop.f32.mrf.mxu0
  %v2401 = vadd.f32 %v1836, %v2400
  %v2402 = vpop.f32.mrf.mxu0
  %2403 = vmatprep.mubr.f32.mxu0 0.0
  %2404 = vmatmul.mubr.f32.gmra.mxu0 %v2024
  %v2405 = vpop.f32.mrf.mxu0
  %v2406 = vadd.f32 %v1836, %v2405
  %v2407 = vpop.f32.mrf.mxu0
  %2408 = vmatprep.mubr.f32.mxu0 0.0
  %2409 = vmatmul.mubr.f32.gmra.mxu0 %v2027
  %v2410 = vpop.f32.mrf.mxu0
  %v2411 = vadd.f32 %v1836, %v2410
  %v2412 = vpop.f32.mrf.mxu0
  %2413 = vdwg.mxu0
  %v2414 = vsel %vm667, %v2096, 0.0
  %2415 = vadd.xlane.f32.xlu0 %v2414
  %v2416 = vpop.xlane.xlu0 %2415
  %v2417 = vsel %vm667, %v2101, 0.0
  %2418 = vadd.xlane.f32.xlu0 %v2417
  %v2419 = vpop.xlane.xlu0 %2418
  %v2420 = vsel %vm667, %v2106, 0.0
  %2421 = vadd.xlane.f32.xlu0 %v2420
  %v2422 = vpop.xlane.xlu0 %2421
  %v2423 = vsel %vm667, %v2111, 0.0
  %2424 = vadd.xlane.f32.xlu0 %v2423
  %v2425 = vpop.xlane.xlu0 %2424
  %v2426 = vsel %vm667, %v2116, 0.0
  %2427 = vadd.xlane.f32.xlu0 %v2426
  %v2428 = vpop.xlane.xlu0 %2427
  %v2429 = vsel %vm667, %v2121, 0.0
  %2430 = vadd.xlane.f32.xlu0 %v2429
  %v2431 = vpop.xlane.xlu0 %2430
  %v2432 = vsel %vm667, %v2126, 0.0
  %2433 = vadd.xlane.f32.xlu0 %v2432
  %v2434 = vpop.xlane.xlu0 %2433
  %v2435 = vsel %vm667, %v2131, 0.0
  %2436 = vadd.xlane.f32.xlu0 %v2435
  %v2437 = vpop.xlane.xlu0 %2436
  %v2438 = vsel %vm667, %v2136, 0.0
  %2439 = vadd.xlane.f32.xlu0 %v2438
  %v2440 = vpop.xlane.xlu0 %2439
  %v2441 = vsel %vm667, %v2141, 0.0
  %2442 = vadd.xlane.f32.xlu0 %v2441
  %v2443 = vpop.xlane.xlu0 %2442
  %v2444 = vsel %vm667, %v2146, 0.0
  %2445 = vadd.xlane.f32.xlu0 %v2444
  %v2446 = vpop.xlane.xlu0 %2445
  %v2447 = vsel %vm667, %v2151, 0.0
  %2448 = vadd.xlane.f32.xlu0 %v2447
  %v2449 = vpop.xlane.xlu0 %2448
  %v2450 = vsel %vm667, %v2156, 0.0
  %2451 = vadd.xlane.f32.xlu0 %v2450
  %v2452 = vpop.xlane.xlu0 %2451
  %v2453 = vsel %vm667, %v2161, 0.0
  %2454 = vadd.xlane.f32.xlu0 %v2453
  %v2455 = vpop.xlane.xlu0 %2454
  %v2456 = vsel %vm667, %v2166, 0.0
  %2457 = vadd.xlane.f32.xlu0 %v2456
  %v2458 = vpop.xlane.xlu0 %2457
  %v2459 = vsel %vm667, %v2171, 0.0
  %2460 = vadd.xlane.f32.xlu0 %v2459
  %v2461 = vpop.xlane.xlu0 %2460
  %v2462 = vsel %vm667, %v2176, 0.0
  %2463 = vadd.xlane.f32.xlu0 %v2462
  %v2464 = vpop.xlane.xlu0 %2463
  %v2465 = vsel %vm667, %v2181, 0.0
  %2466 = vadd.xlane.f32.xlu0 %v2465
  %v2467 = vpop.xlane.xlu0 %2466
  %v2468 = vsel %vm667, %v2186, 0.0
  %2469 = vadd.xlane.f32.xlu0 %v2468
  %v2470 = vpop.xlane.xlu0 %2469
  %v2471 = vsel %vm667, %v2191, 0.0
  %2472 = vadd.xlane.f32.xlu0 %v2471
  %v2473 = vpop.xlane.xlu0 %2472
  %v2474 = vsel %vm667, %v2196, 0.0
  %2475 = vadd.xlane.f32.xlu0 %v2474
  %v2476 = vpop.xlane.xlu0 %2475
  %v2477 = vsel %vm667, %v2201, 0.0
  %2478 = vadd.xlane.f32.xlu0 %v2477
  %v2479 = vpop.xlane.xlu0 %2478
  %v2480 = vsel %vm667, %v2206, 0.0
  %2481 = vadd.xlane.f32.xlu0 %v2480
  %v2482 = vpop.xlane.xlu0 %2481
  %v2483 = vsel %vm667, %v2211, 0.0
  %2484 = vadd.xlane.f32.xlu0 %v2483
  %v2485 = vpop.xlane.xlu0 %2484
  %v2486 = vsel %vm667, %v2216, 0.0
  %2487 = vadd.xlane.f32.xlu0 %v2486
  %v2488 = vpop.xlane.xlu0 %2487
  %v2489 = vsel %vm667, %v2221, 0.0
  %2490 = vadd.xlane.f32.xlu0 %v2489
  %v2491 = vpop.xlane.xlu0 %2490
  %v2492 = vsel %vm667, %v2226, 0.0
  %2493 = vadd.xlane.f32.xlu0 %v2492
  %v2494 = vpop.xlane.xlu0 %2493
  %v2495 = vsel %vm667, %v2231, 0.0
  %2496 = vadd.xlane.f32.xlu0 %v2495
  %v2497 = vpop.xlane.xlu0 %2496
  %v2498 = vsel %vm667, %v2236, 0.0
  %2499 = vadd.xlane.f32.xlu0 %v2498
  %v2500 = vpop.xlane.xlu0 %2499
  %v2501 = vsel %vm667, %v2241, 0.0
  %2502 = vadd.xlane.f32.xlu0 %v2501
  %v2503 = vpop.xlane.xlu0 %2502
  %v2504 = vsel %vm667, %v2246, 0.0
  %2505 = vadd.xlane.f32.xlu0 %v2504
  %v2506 = vpop.xlane.xlu0 %2505
  %v2507 = vsel %vm667, %v2251, 0.0
  %2508 = vadd.xlane.f32.xlu0 %v2507
  %v2509 = vpop.xlane.xlu0 %2508
  %v2510 = vsel %vm667, %v2256, 0.0
  %2511 = vadd.xlane.f32.xlu0 %v2510
  %v2512 = vpop.xlane.xlu0 %2511
  %v2513 = vsel %vm667, %v2261, 0.0
  %2514 = vadd.xlane.f32.xlu0 %v2513
  %v2515 = vpop.xlane.xlu0 %2514
  %v2516 = vsel %vm667, %v2266, 0.0
  %2517 = vadd.xlane.f32.xlu0 %v2516
  %v2518 = vpop.xlane.xlu0 %2517
  %v2519 = vsel %vm667, %v2271, 0.0
  %2520 = vadd.xlane.f32.xlu0 %v2519
  %v2521 = vpop.xlane.xlu0 %2520
  %v2522 = vsel %vm667, %v2276, 0.0
  %2523 = vadd.xlane.f32.xlu0 %v2522
  %v2524 = vpop.xlane.xlu0 %2523
  %v2525 = vsel %vm667, %v2281, 0.0
  %2526 = vadd.xlane.f32.xlu0 %v2525
  %v2527 = vpop.xlane.xlu0 %2526
  %v2528 = vsel %vm667, %v2286, 0.0
  %2529 = vadd.xlane.f32.xlu0 %v2528
  %v2530 = vpop.xlane.xlu0 %2529
  %v2531 = vsel %vm667, %v2291, 0.0
  %2532 = vadd.xlane.f32.xlu0 %v2531
  %v2533 = vpop.xlane.xlu0 %2532
  %v2534 = vsel %vm667, %v2296, 0.0
  %2535 = vadd.xlane.f32.xlu0 %v2534
  %v2536 = vpop.xlane.xlu0 %2535
  %v2537 = vsel %vm667, %v2301, 0.0
  %2538 = vadd.xlane.f32.xlu0 %v2537
  %v2539 = vpop.xlane.xlu0 %2538
  %v2540 = vsel %vm667, %v2306, 0.0
  %2541 = vadd.xlane.f32.xlu0 %v2540
  %v2542 = vpop.xlane.xlu0 %2541
  %v2543 = vsel %vm667, %v2311, 0.0
  %2544 = vadd.xlane.f32.xlu0 %v2543
  %v2545 = vpop.xlane.xlu0 %2544
  %v2546 = vsel %vm667, %v2316, 0.0
  %2547 = vadd.xlane.f32.xlu0 %v2546
  %v2548 = vpop.xlane.xlu0 %2547
  %v2549 = vsel %vm667, %v2321, 0.0
  %2550 = vadd.xlane.f32.xlu0 %v2549
  %v2551 = vpop.xlane.xlu0 %2550
  %v2552 = vsel %vm667, %v2326, 0.0
  %2553 = vadd.xlane.f32.xlu0 %v2552
  %v2554 = vpop.xlane.xlu0 %2553
  %v2555 = vsel %vm667, %v2331, 0.0
  %2556 = vadd.xlane.f32.xlu0 %v2555
  %v2557 = vpop.xlane.xlu0 %2556
  %v2558 = vsel %vm667, %v2336, 0.0
  %2559 = vadd.xlane.f32.xlu0 %v2558
  %v2560 = vpop.xlane.xlu0 %2559
  %v2561 = vsel %vm667, %v2341, 0.0
  %2562 = vadd.xlane.f32.xlu0 %v2561
  %v2563 = vpop.xlane.xlu0 %2562
  %v2564 = vsel %vm667, %v2346, 0.0
  %2565 = vadd.xlane.f32.xlu0 %v2564
  %v2566 = vpop.xlane.xlu0 %2565
  %v2567 = vsel %vm667, %v2351, 0.0
  %2568 = vadd.xlane.f32.xlu0 %v2567
  %v2569 = vpop.xlane.xlu0 %2568
  %v2570 = vsel %vm667, %v2356, 0.0
  %2571 = vadd.xlane.f32.xlu0 %v2570
  %v2572 = vpop.xlane.xlu0 %2571
  %v2573 = vsel %vm667, %v2361, 0.0
  %2574 = vadd.xlane.f32.xlu0 %v2573
  %v2575 = vpop.xlane.xlu0 %2574
  %v2576 = vsel %vm667, %v2366, 0.0
  %2577 = vadd.xlane.f32.xlu0 %v2576
  %v2578 = vpop.xlane.xlu0 %2577
  %v2579 = vsel %vm667, %v2371, 0.0
  %2580 = vadd.xlane.f32.xlu0 %v2579
  %v2581 = vpop.xlane.xlu0 %2580
  %v2582 = vsel %vm667, %v2376, 0.0
  %2583 = vadd.xlane.f32.xlu0 %v2582
  %v2584 = vpop.xlane.xlu0 %2583
  %v2585 = vsel %vm667, %v2381, 0.0
  %2586 = vadd.xlane.f32.xlu0 %v2585
  %v2587 = vpop.xlane.xlu0 %2586
  %v2588 = vsel %vm667, %v2386, 0.0
  %2589 = vadd.xlane.f32.xlu0 %v2588
  %v2590 = vpop.xlane.xlu0 %2589
  %v2591 = vsel %vm667, %v2391, 0.0
  %2592 = vadd.xlane.f32.xlu0 %v2591
  %v2593 = vpop.xlane.xlu0 %2592
  %v2594 = vsel %vm667, %v2396, 0.0
  %2595 = vadd.xlane.f32.xlu0 %v2594
  %v2596 = vpop.xlane.xlu0 %2595
  %v2597 = vsel %vm667, %v2401, 0.0
  %2598 = vadd.xlane.f32.xlu0 %v2597
  %v2599 = vpop.xlane.xlu0 %2598
  %v2600 = vsel %vm667, %v2406, 0.0
  %2601 = vadd.xlane.f32.xlu0 %v2600
  %v2602 = vpop.xlane.xlu0 %2601
  %v2603 = vsel %vm667, %v2411, 0.0
  %2604 = vadd.xlane.f32.xlu0 %v2603
  %v2605 = vpop.xlane.xlu0 %2604
  %v2606 = vmul.f32 %v2416, %v860
  %v2607 = vmul.f32 %v2419, %v860
  %v2608 = vmul.f32 %v2422, %v860
  %v2609 = vmul.f32 %v2425, %v860
  %v2610 = vmul.f32 %v2428, %v860
  %v2611 = vmul.f32 %v2431, %v860
  %v2612 = vmul.f32 %v2434, %v860
  %v2613 = vmul.f32 %v2437, %v860
  %v2614 = vmul.f32 %v2440, %v860
  %v2615 = vmul.f32 %v2443, %v860
  %v2616 = vmul.f32 %v2446, %v860
  %v2617 = vmul.f32 %v2449, %v860
  %v2618 = vmul.f32 %v2452, %v860
  %v2619 = vmul.f32 %v2455, %v860
  %v2620 = vmul.f32 %v2458, %v860
  %v2621 = vmul.f32 %v2461, %v860
  %v2622 = vmul.f32 %v2464, %v860
  %v2623 = vmul.f32 %v2467, %v860
  %v2624 = vmul.f32 %v2470, %v860
  %v2625 = vmul.f32 %v2473, %v860
  %v2626 = vmul.f32 %v2476, %v860
  %v2627 = vmul.f32 %v2479, %v860
  %v2628 = vmul.f32 %v2482, %v860
  %v2629 = vmul.f32 %v2485, %v860
  %v2630 = vmul.f32 %v2488, %v860
  %v2631 = vmul.f32 %v2491, %v860
  %v2632 = vmul.f32 %v2494, %v860
  %v2633 = vmul.f32 %v2497, %v860
  %v2634 = vmul.f32 %v2500, %v860
  %v2635 = vmul.f32 %v2503, %v860
  %v2636 = vmul.f32 %v2506, %v860
  %v2637 = vmul.f32 %v2509, %v860
  %v2638 = vmul.f32 %v2512, %v860
  %v2639 = vmul.f32 %v2515, %v860
  %v2640 = vmul.f32 %v2518, %v860
  %v2641 = vmul.f32 %v2521, %v860
  %v2642 = vmul.f32 %v2524, %v860
  %v2643 = vmul.f32 %v2527, %v860
  %v2644 = vmul.f32 %v2530, %v860
  %v2645 = vmul.f32 %v2533, %v860
  %v2646 = vmul.f32 %v2536, %v860
  %v2647 = vmul.f32 %v2539, %v860
  %v2648 = vmul.f32 %v2542, %v860
  %v2649 = vmul.f32 %v2545, %v860
  %v2650 = vmul.f32 %v2548, %v860
  %v2651 = vmul.f32 %v2551, %v860
  %v2652 = vmul.f32 %v2554, %v860
  %v2653 = vmul.f32 %v2557, %v860
  %v2654 = vmul.f32 %v2560, %v860
  %v2655 = vmul.f32 %v2563, %v860
  %v2656 = vmul.f32 %v2566, %v860
  %v2657 = vmul.f32 %v2569, %v860
  %v2658 = vmul.f32 %v2572, %v860
  %v2659 = vmul.f32 %v2575, %v860
  %v2660 = vmul.f32 %v2578, %v860
  %v2661 = vmul.f32 %v2581, %v860
  %v2662 = vmul.f32 %v2584, %v860
  %v2663 = vmul.f32 %v2587, %v860
  %v2664 = vmul.f32 %v2590, %v860
  %v2665 = vmul.f32 %v2593, %v860
  %v2666 = vmul.f32 %v2596, %v860
  %v2667 = vmul.f32 %v2599, %v860
  %v2668 = vmul.f32 %v2602, %v860
  %v2669 = vmul.f32 %v2605, %v860
  %v2670 = vsub.f32 %v2096, %v2606
  %v2671 = vsub.f32 %v2101, %v2607
  %v2672 = vsub.f32 %v2106, %v2608
  %v2673 = vsub.f32 %v2111, %v2609
  %v2674 = vsub.f32 %v2116, %v2610
  %v2675 = vsub.f32 %v2121, %v2611
  %v2676 = vsub.f32 %v2126, %v2612
  %v2677 = vsub.f32 %v2131, %v2613
  %v2678 = vsub.f32 %v2136, %v2614
  %v2679 = vsub.f32 %v2141, %v2615
  %v2680 = vsub.f32 %v2146, %v2616
  %v2681 = vsub.f32 %v2151, %v2617
  %v2682 = vsub.f32 %v2156, %v2618
  %v2683 = vsub.f32 %v2161, %v2619
  %v2684 = vsub.f32 %v2166, %v2620
  %v2685 = vsub.f32 %v2171, %v2621
  %v2686 = vsub.f32 %v2176, %v2622
  %v2687 = vsub.f32 %v2181, %v2623
  %v2688 = vsub.f32 %v2186, %v2624
  %v2689 = vsub.f32 %v2191, %v2625
  %v2690 = vsub.f32 %v2196, %v2626
  %v2691 = vsub.f32 %v2201, %v2627
  %v2692 = vsub.f32 %v2206, %v2628
  %v2693 = vsub.f32 %v2211, %v2629
  %v2694 = vsub.f32 %v2216, %v2630
  %v2695 = vsub.f32 %v2221, %v2631
  %v2696 = vsub.f32 %v2226, %v2632
  %v2697 = vsub.f32 %v2231, %v2633
  %v2698 = vsub.f32 %v2236, %v2634
  %v2699 = vsub.f32 %v2241, %v2635
  %v2700 = vsub.f32 %v2246, %v2636
  %v2701 = vsub.f32 %v2251, %v2637
  %v2702 = vsub.f32 %v2256, %v2638
  %v2703 = vsub.f32 %v2261, %v2639
  %v2704 = vsub.f32 %v2266, %v2640
  %v2705 = vsub.f32 %v2271, %v2641
  %v2706 = vsub.f32 %v2276, %v2642
  %v2707 = vsub.f32 %v2281, %v2643
  %v2708 = vsub.f32 %v2286, %v2644
  %v2709 = vsub.f32 %v2291, %v2645
  %v2710 = vsub.f32 %v2296, %v2646
  %v2711 = vsub.f32 %v2301, %v2647
  %v2712 = vsub.f32 %v2306, %v2648
  %v2713 = vsub.f32 %v2311, %v2649
  %v2714 = vsub.f32 %v2316, %v2650
  %v2715 = vsub.f32 %v2321, %v2651
  %v2716 = vsub.f32 %v2326, %v2652
  %v2717 = vsub.f32 %v2331, %v2653
  %v2718 = vsub.f32 %v2336, %v2654
  %v2719 = vsub.f32 %v2341, %v2655
  %v2720 = vsub.f32 %v2346, %v2656
  %v2721 = vsub.f32 %v2351, %v2657
  %v2722 = vsub.f32 %v2356, %v2658
  %v2723 = vsub.f32 %v2361, %v2659
  %v2724 = vsub.f32 %v2366, %v2660
  %v2725 = vsub.f32 %v2371, %v2661
  %v2726 = vsub.f32 %v2376, %v2662
  %v2727 = vsub.f32 %v2381, %v2663
  %v2728 = vsub.f32 %v2386, %v2664
  %v2729 = vsub.f32 %v2391, %v2665
  %v2730 = vsub.f32 %v2396, %v2666
  %v2731 = vsub.f32 %v2401, %v2667
  %v2732 = vsub.f32 %v2406, %v2668
  %v2733 = vsub.f32 %v2411, %v2669
  %v2734 = vmul.f32 %v2670, %v2670
  %v2735 = vmul.f32 %v2671, %v2671
  %v2736 = vmul.f32 %v2672, %v2672
  %v2737 = vmul.f32 %v2673, %v2673
  %v2738 = vmul.f32 %v2674, %v2674
  %v2739 = vmul.f32 %v2675, %v2675
  %v2740 = vmul.f32 %v2676, %v2676
  %v2741 = vmul.f32 %v2677, %v2677
  %v2742 = vmul.f32 %v2678, %v2678
  %v2743 = vmul.f32 %v2679, %v2679
  %v2744 = vmul.f32 %v2680, %v2680
  %v2745 = vmul.f32 %v2681, %v2681
  %v2746 = vmul.f32 %v2682, %v2682
  %v2747 = vmul.f32 %v2683, %v2683
  %v2748 = vmul.f32 %v2684, %v2684
  %v2749 = vmul.f32 %v2685, %v2685
  %v2750 = vmul.f32 %v2686, %v2686
  %v2751 = vmul.f32 %v2687, %v2687
  %v2752 = vmul.f32 %v2688, %v2688
  %v2753 = vmul.f32 %v2689, %v2689
  %v2754 = vmul.f32 %v2690, %v2690
  %v2755 = vmul.f32 %v2691, %v2691
  %v2756 = vmul.f32 %v2692, %v2692
  %v2757 = vmul.f32 %v2693, %v2693
  %v2758 = vmul.f32 %v2694, %v2694
  %v2759 = vmul.f32 %v2695, %v2695
  %v2760 = vmul.f32 %v2696, %v2696
  %v2761 = vmul.f32 %v2697, %v2697
  %v2762 = vmul.f32 %v2698, %v2698
  %v2763 = vmul.f32 %v2699, %v2699
  %v2764 = vmul.f32 %v2700, %v2700
  %v2765 = vmul.f32 %v2701, %v2701
  %v2766 = vmul.f32 %v2702, %v2702
  %v2767 = vmul.f32 %v2703, %v2703
  %v2768 = vmul.f32 %v2704, %v2704
  %v2769 = vmul.f32 %v2705, %v2705
  %v2770 = vmul.f32 %v2706, %v2706
  %v2771 = vmul.f32 %v2707, %v2707
  %v2772 = vmul.f32 %v2708, %v2708
  %v2773 = vmul.f32 %v2709, %v2709
  %v2774 = vmul.f32 %v2710, %v2710
  %v2775 = vmul.f32 %v2711, %v2711
  %v2776 = vmul.f32 %v2712, %v2712
  %v2777 = vmul.f32 %v2713, %v2713
  %v2778 = vmul.f32 %v2714, %v2714
  %v2779 = vmul.f32 %v2715, %v2715
  %v2780 = vmul.f32 %v2716, %v2716
  %v2781 = vmul.f32 %v2717, %v2717
  %v2782 = vmul.f32 %v2718, %v2718
  %v2783 = vmul.f32 %v2719, %v2719
  %v2784 = vmul.f32 %v2720, %v2720
  %v2785 = vmul.f32 %v2721, %v2721
  %v2786 = vmul.f32 %v2722, %v2722
  %v2787 = vmul.f32 %v2723, %v2723
  %v2788 = vmul.f32 %v2724, %v2724
  %v2789 = vmul.f32 %v2725, %v2725
  %v2790 = vmul.f32 %v2726, %v2726
  %v2791 = vmul.f32 %v2727, %v2727
  %v2792 = vmul.f32 %v2728, %v2728
  %v2793 = vmul.f32 %v2729, %v2729
  %v2794 = vmul.f32 %v2730, %v2730
  %v2795 = vmul.f32 %v2731, %v2731
  %v2796 = vmul.f32 %v2732, %v2732
  %v2797 = vmul.f32 %v2733, %v2733
  %v2798 = vsel %vm667, %v2734, 0.0
  %2799 = vadd.xlane.f32.xlu0 %v2798
  %v2800 = vpop.xlane.xlu0 %2799
  %v2801 = vsel %vm667, %v2735, 0.0
  %2802 = vadd.xlane.f32.xlu0 %v2801
  %v2803 = vpop.xlane.xlu0 %2802
  %v2804 = vsel %vm667, %v2736, 0.0
  %2805 = vadd.xlane.f32.xlu0 %v2804
  %v2806 = vpop.xlane.xlu0 %2805
  %v2807 = vsel %vm667, %v2737, 0.0
  %2808 = vadd.xlane.f32.xlu0 %v2807
  %v2809 = vpop.xlane.xlu0 %2808
  %v2810 = vsel %vm667, %v2738, 0.0
  %2811 = vadd.xlane.f32.xlu0 %v2810
  %v2812 = vpop.xlane.xlu0 %2811
  %v2813 = vsel %vm667, %v2739, 0.0
  %2814 = vadd.xlane.f32.xlu0 %v2813
  %v2815 = vpop.xlane.xlu0 %2814
  %v2816 = vsel %vm667, %v2740, 0.0
  %2817 = vadd.xlane.f32.xlu0 %v2816
  %v2818 = vpop.xlane.xlu0 %2817
  %v2819 = vsel %vm667, %v2741, 0.0
  %2820 = vadd.xlane.f32.xlu0 %v2819
  %v2821 = vpop.xlane.xlu0 %2820
  %v2822 = vsel %vm667, %v2742, 0.0
  %2823 = vadd.xlane.f32.xlu0 %v2822
  %v2824 = vpop.xlane.xlu0 %2823
  %v2825 = vsel %vm667, %v2743, 0.0
  %2826 = vadd.xlane.f32.xlu0 %v2825
  %v2827 = vpop.xlane.xlu0 %2826
  %v2828 = vsel %vm667, %v2744, 0.0
  %2829 = vadd.xlane.f32.xlu0 %v2828
  %v2830 = vpop.xlane.xlu0 %2829
  %v2831 = vsel %vm667, %v2745, 0.0
  %2832 = vadd.xlane.f32.xlu0 %v2831
  %v2833 = vpop.xlane.xlu0 %2832
  %v2834 = vsel %vm667, %v2746, 0.0
  %2835 = vadd.xlane.f32.xlu0 %v2834
  %v2836 = vpop.xlane.xlu0 %2835
  %v2837 = vsel %vm667, %v2747, 0.0
  %2838 = vadd.xlane.f32.xlu0 %v2837
  %v2839 = vpop.xlane.xlu0 %2838
  %v2840 = vsel %vm667, %v2748, 0.0
  %2841 = vadd.xlane.f32.xlu0 %v2840
  %v2842 = vpop.xlane.xlu0 %2841
  %v2843 = vsel %vm667, %v2749, 0.0
  %2844 = vadd.xlane.f32.xlu0 %v2843
  %v2845 = vpop.xlane.xlu0 %2844
  %v2846 = vsel %vm667, %v2750, 0.0
  %2847 = vadd.xlane.f32.xlu0 %v2846
  %v2848 = vpop.xlane.xlu0 %2847
  %v2849 = vsel %vm667, %v2751, 0.0
  %2850 = vadd.xlane.f32.xlu0 %v2849
  %v2851 = vpop.xlane.xlu0 %2850
  %v2852 = vsel %vm667, %v2752, 0.0
  %2853 = vadd.xlane.f32.xlu0 %v2852
  %v2854 = vpop.xlane.xlu0 %2853
  %v2855 = vsel %vm667, %v2753, 0.0
  %2856 = vadd.xlane.f32.xlu0 %v2855
  %v2857 = vpop.xlane.xlu0 %2856
  %v2858 = vsel %vm667, %v2754, 0.0
  %2859 = vadd.xlane.f32.xlu0 %v2858
  %v2860 = vpop.xlane.xlu0 %2859
  %v2861 = vsel %vm667, %v2755, 0.0
  %2862 = vadd.xlane.f32.xlu0 %v2861
  %v2863 = vpop.xlane.xlu0 %2862
  %v2864 = vsel %vm667, %v2756, 0.0
  %2865 = vadd.xlane.f32.xlu0 %v2864
  %v2866 = vpop.xlane.xlu0 %2865
  %v2867 = vsel %vm667, %v2757, 0.0
  %2868 = vadd.xlane.f32.xlu0 %v2867
  %v2869 = vpop.xlane.xlu0 %2868
  %v2870 = vsel %vm667, %v2758, 0.0
  %2871 = vadd.xlane.f32.xlu0 %v2870
  %v2872 = vpop.xlane.xlu0 %2871
  %v2873 = vsel %vm667, %v2759, 0.0
  %2874 = vadd.xlane.f32.xlu0 %v2873
  %v2875 = vpop.xlane.xlu0 %2874
  %v2876 = vsel %vm667, %v2760, 0.0
  %2877 = vadd.xlane.f32.xlu0 %v2876
  %v2878 = vpop.xlane.xlu0 %2877
  %v2879 = vsel %vm667, %v2761, 0.0
  %2880 = vadd.xlane.f32.xlu0 %v2879
  %v2881 = vpop.xlane.xlu0 %2880
  %v2882 = vsel %vm667, %v2762, 0.0
  %2883 = vadd.xlane.f32.xlu0 %v2882
  %v2884 = vpop.xlane.xlu0 %2883
  %v2885 = vsel %vm667, %v2763, 0.0
  %2886 = vadd.xlane.f32.xlu0 %v2885
  %v2887 = vpop.xlane.xlu0 %2886
  %v2888 = vsel %vm667, %v2764, 0.0
  %2889 = vadd.xlane.f32.xlu0 %v2888
  %v2890 = vpop.xlane.xlu0 %2889
  %v2891 = vsel %vm667, %v2765, 0.0
  %2892 = vadd.xlane.f32.xlu0 %v2891
  %v2893 = vpop.xlane.xlu0 %2892
  %v2894 = vsel %vm667, %v2766, 0.0
  %2895 = vadd.xlane.f32.xlu0 %v2894
  %v2896 = vpop.xlane.xlu0 %2895
  %v2897 = vsel %vm667, %v2767, 0.0
  %2898 = vadd.xlane.f32.xlu0 %v2897
  %v2899 = vpop.xlane.xlu0 %2898
  %v2900 = vsel %vm667, %v2768, 0.0
  %2901 = vadd.xlane.f32.xlu0 %v2900
  %v2902 = vpop.xlane.xlu0 %2901
  %v2903 = vsel %vm667, %v2769, 0.0
  %2904 = vadd.xlane.f32.xlu0 %v2903
  %v2905 = vpop.xlane.xlu0 %2904
  %v2906 = vsel %vm667, %v2770, 0.0
  %2907 = vadd.xlane.f32.xlu0 %v2906
  %v2908 = vpop.xlane.xlu0 %2907
  %v2909 = vsel %vm667, %v2771, 0.0
  %2910 = vadd.xlane.f32.xlu0 %v2909
  %v2911 = vpop.xlane.xlu0 %2910
  %v2912 = vsel %vm667, %v2772, 0.0
  %2913 = vadd.xlane.f32.xlu0 %v2912
  %v2914 = vpop.xlane.xlu0 %2913
  %v2915 = vsel %vm667, %v2773, 0.0
  %2916 = vadd.xlane.f32.xlu0 %v2915
  %v2917 = vpop.xlane.xlu0 %2916
  %v2918 = vsel %vm667, %v2774, 0.0
  %2919 = vadd.xlane.f32.xlu0 %v2918
  %v2920 = vpop.xlane.xlu0 %2919
  %v2921 = vsel %vm667, %v2775, 0.0
  %2922 = vadd.xlane.f32.xlu0 %v2921
  %v2923 = vpop.xlane.xlu0 %2922
  %v2924 = vsel %vm667, %v2776, 0.0
  %2925 = vadd.xlane.f32.xlu0 %v2924
  %v2926 = vpop.xlane.xlu0 %2925
  %v2927 = vsel %vm667, %v2777, 0.0
  %2928 = vadd.xlane.f32.xlu0 %v2927
  %v2929 = vpop.xlane.xlu0 %2928
  %v2930 = vsel %vm667, %v2778, 0.0
  %2931 = vadd.xlane.f32.xlu0 %v2930
  %v2932 = vpop.xlane.xlu0 %2931
  %v2933 = vsel %vm667, %v2779, 0.0
  %2934 = vadd.xlane.f32.xlu0 %v2933
  %v2935 = vpop.xlane.xlu0 %2934
  %v2936 = vsel %vm667, %v2780, 0.0
  %2937 = vadd.xlane.f32.xlu0 %v2936
  %v2938 = vpop.xlane.xlu0 %2937
  %v2939 = vsel %vm667, %v2781, 0.0
  %2940 = vadd.xlane.f32.xlu0 %v2939
  %v2941 = vpop.xlane.xlu0 %2940
  %v2942 = vsel %vm667, %v2782, 0.0
  %2943 = vadd.xlane.f32.xlu0 %v2942
  %v2944 = vpop.xlane.xlu0 %2943
  %v2945 = vsel %vm667, %v2783, 0.0
  %2946 = vadd.xlane.f32.xlu0 %v2945
  %v2947 = vpop.xlane.xlu0 %2946
  %v2948 = vsel %vm667, %v2784, 0.0
  %2949 = vadd.xlane.f32.xlu0 %v2948
  %v2950 = vpop.xlane.xlu0 %2949
  %v2951 = vsel %vm667, %v2785, 0.0
  %2952 = vadd.xlane.f32.xlu0 %v2951
  %v2953 = vpop.xlane.xlu0 %2952
  %v2954 = vsel %vm667, %v2786, 0.0
  %2955 = vadd.xlane.f32.xlu0 %v2954
  %v2956 = vpop.xlane.xlu0 %2955
  %v2957 = vsel %vm667, %v2787, 0.0
  %2958 = vadd.xlane.f32.xlu0 %v2957
  %v2959 = vpop.xlane.xlu0 %2958
  %v2960 = vsel %vm667, %v2788, 0.0
  %2961 = vadd.xlane.f32.xlu0 %v2960
  %v2962 = vpop.xlane.xlu0 %2961
  %v2963 = vsel %vm667, %v2789, 0.0
  %2964 = vadd.xlane.f32.xlu0 %v2963
  %v2965 = vpop.xlane.xlu0 %2964
  %v2966 = vsel %vm667, %v2790, 0.0
  %2967 = vadd.xlane.f32.xlu0 %v2966
  %v2968 = vpop.xlane.xlu0 %2967
  %v2969 = vsel %vm667, %v2791, 0.0
  %2970 = vadd.xlane.f32.xlu0 %v2969
  %v2971 = vpop.xlane.xlu0 %2970
  %v2972 = vsel %vm667, %v2792, 0.0
  %2973 = vadd.xlane.f32.xlu0 %v2972
  %v2974 = vpop.xlane.xlu0 %2973
  %v2975 = vsel %vm667, %v2793, 0.0
  %2976 = vadd.xlane.f32.xlu0 %v2975
  %v2977 = vpop.xlane.xlu0 %2976
  %v2978 = vsel %vm667, %v2794, 0.0
  %2979 = vadd.xlane.f32.xlu0 %v2978
  %v2980 = vpop.xlane.xlu0 %2979
  %v2981 = vsel %vm667, %v2795, 0.0
  %2982 = vadd.xlane.f32.xlu0 %v2981
  %v2983 = vpop.xlane.xlu0 %2982
  %v2984 = vsel %vm667, %v2796, 0.0
  %2985 = vadd.xlane.f32.xlu0 %v2984
  %v2986 = vpop.xlane.xlu0 %2985
  %v2987 = vsel %vm667, %v2797, 0.0
  %2988 = vadd.xlane.f32.xlu0 %v2987
  %v2989 = vpop.xlane.xlu0 %2988
  %v2990 = vmul.f32 %v2800, %v860
  %v2991 = vmul.f32 %v2803, %v860
  %v2992 = vmul.f32 %v2806, %v860
  %v2993 = vmul.f32 %v2809, %v860
  %v2994 = vmul.f32 %v2812, %v860
  %v2995 = vmul.f32 %v2815, %v860
  %v2996 = vmul.f32 %v2818, %v860
  %v2997 = vmul.f32 %v2821, %v860
  %v2998 = vmul.f32 %v2824, %v860
  %v2999 = vmul.f32 %v2827, %v860
  %v3000 = vmul.f32 %v2830, %v860
  %v3001 = vmul.f32 %v2833, %v860
  %v3002 = vmul.f32 %v2836, %v860
  %v3003 = vmul.f32 %v2839, %v860
  %v3004 = vmul.f32 %v2842, %v860
  %v3005 = vmul.f32 %v2845, %v860
  %v3006 = vmul.f32 %v2848, %v860
  %v3007 = vmul.f32 %v2851, %v860
  %v3008 = vmul.f32 %v2854, %v860
  %v3009 = vmul.f32 %v2857, %v860
  %v3010 = vmul.f32 %v2860, %v860
  %v3011 = vmul.f32 %v2863, %v860
  %v3012 = vmul.f32 %v2866, %v860
  %v3013 = vmul.f32 %v2869, %v860
  %v3014 = vmul.f32 %v2872, %v860
  %v3015 = vmul.f32 %v2875, %v860
  %v3016 = vmul.f32 %v2878, %v860
  %v3017 = vmul.f32 %v2881, %v860
  %v3018 = vmul.f32 %v2884, %v860
  %v3019 = vmul.f32 %v2887, %v860
  %v3020 = vmul.f32 %v2890, %v860
  %v3021 = vmul.f32 %v2893, %v860
  %v3022 = vmul.f32 %v2896, %v860
  %v3023 = vmul.f32 %v2899, %v860
  %v3024 = vmul.f32 %v2902, %v860
  %v3025 = vmul.f32 %v2905, %v860
  %v3026 = vmul.f32 %v2908, %v860
  %v3027 = vmul.f32 %v2911, %v860
  %v3028 = vmul.f32 %v2914, %v860
  %v3029 = vmul.f32 %v2917, %v860
  %v3030 = vmul.f32 %v2920, %v860
  %v3031 = vmul.f32 %v2923, %v860
  %v3032 = vmul.f32 %v2926, %v860
  %v3033 = vmul.f32 %v2929, %v860
  %v3034 = vmul.f32 %v2932, %v860
  %v3035 = vmul.f32 %v2935, %v860
  %v3036 = vmul.f32 %v2938, %v860
  %v3037 = vmul.f32 %v2941, %v860
  %v3038 = vmul.f32 %v2944, %v860
  %v3039 = vmul.f32 %v2947, %v860
  %v3040 = vmul.f32 %v2950, %v860
  %v3041 = vmul.f32 %v2953, %v860
  %v3042 = vmul.f32 %v2956, %v860
  %v3043 = vmul.f32 %v2959, %v860
  %v3044 = vmul.f32 %v2962, %v860
  %v3045 = vmul.f32 %v2965, %v860
  %v3046 = vmul.f32 %v2968, %v860
  %v3047 = vmul.f32 %v2971, %v860
  %v3048 = vmul.f32 %v2974, %v860
  %v3049 = vmul.f32 %v2977, %v860
  %v3050 = vmul.f32 %v2980, %v860
  %v3051 = vmul.f32 %v2983, %v860
  %v3052 = vmul.f32 %v2986, %v860
  %v3053 = vmul.f32 %v2989, %v860
  %v3054 = vadd.f32 %v2990, 1e-05
  %v3055 = vadd.f32 %v2991, 1e-05
  %v3056 = vadd.f32 %v2992, 1e-05
  %v3057 = vadd.f32 %v2993, 1e-05
  %v3058 = vadd.f32 %v2994, 1e-05
  %v3059 = vadd.f32 %v2995, 1e-05
  %v3060 = vadd.f32 %v2996, 1e-05
  %v3061 = vadd.f32 %v2997, 1e-05
  %v3062 = vadd.f32 %v2998, 1e-05
  %v3063 = vadd.f32 %v2999, 1e-05
  %v3064 = vadd.f32 %v3000, 1e-05
  %v3065 = vadd.f32 %v3001, 1e-05
  %v3066 = vadd.f32 %v3002, 1e-05
  %v3067 = vadd.f32 %v3003, 1e-05
  %v3068 = vadd.f32 %v3004, 1e-05
  %v3069 = vadd.f32 %v3005, 1e-05
  %v3070 = vadd.f32 %v3006, 1e-05
  %v3071 = vadd.f32 %v3007, 1e-05
  %v3072 = vadd.f32 %v3008, 1e-05
  %v3073 = vadd.f32 %v3009, 1e-05
  %v3074 = vadd.f32 %v3010, 1e-05
  %v3075 = vadd.f32 %v3011, 1e-05
  %v3076 = vadd.f32 %v3012, 1e-05
  %v3077 = vadd.f32 %v3013, 1e-05
  %v3078 = vadd.f32 %v3014, 1e-05
  %v3079 = vadd.f32 %v3015, 1e-05
  %v3080 = vadd.f32 %v3016, 1e-05
  %v3081 = vadd.f32 %v3017, 1e-05
  %v3082 = vadd.f32 %v3018, 1e-05
  %v3083 = vadd.f32 %v3019, 1e-05
  %v3084 = vadd.f32 %v3020, 1e-05
  %v3085 = vadd.f32 %v3021, 1e-05
  %v3086 = vadd.f32 %v3022, 1e-05
  %v3087 = vadd.f32 %v3023, 1e-05
  %v3088 = vadd.f32 %v3024, 1e-05
  %v3089 = vadd.f32 %v3025, 1e-05
  %v3090 = vadd.f32 %v3026, 1e-05
  %v3091 = vadd.f32 %v3027, 1e-05
  %v3092 = vadd.f32 %v3028, 1e-05
  %v3093 = vadd.f32 %v3029, 1e-05
  %v3094 = vadd.f32 %v3030, 1e-05
  %v3095 = vadd.f32 %v3031, 1e-05
  %v3096 = vadd.f32 %v3032, 1e-05
  %v3097 = vadd.f32 %v3033, 1e-05
  %v3098 = vadd.f32 %v3034, 1e-05
  %v3099 = vadd.f32 %v3035, 1e-05
  %v3100 = vadd.f32 %v3036, 1e-05
  %v3101 = vadd.f32 %v3037, 1e-05
  %v3102 = vadd.f32 %v3038, 1e-05
  %v3103 = vadd.f32 %v3039, 1e-05
  %v3104 = vadd.f32 %v3040, 1e-05
  %v3105 = vadd.f32 %v3041, 1e-05
  %v3106 = vadd.f32 %v3042, 1e-05
  %v3107 = vadd.f32 %v3043, 1e-05
  %v3108 = vadd.f32 %v3044, 1e-05
  %v3109 = vadd.f32 %v3045, 1e-05
  %v3110 = vadd.f32 %v3046, 1e-05
  %v3111 = vadd.f32 %v3047, 1e-05
  %v3112 = vadd.f32 %v3048, 1e-05
  %v3113 = vadd.f32 %v3049, 1e-05
  %v3114 = vadd.f32 %v3050, 1e-05
  %v3115 = vadd.f32 %v3051, 1e-05
  %v3116 = vadd.f32 %v3052, 1e-05
  %v3117 = vadd.f32 %v3053, 1e-05
  %v3118 = vrsqrt.pop %v3054
  %v3119 = vrsqrt.pop %v3055
  %v3120 = vrsqrt.pop %v3056
  %v3121 = vrsqrt.pop %v3057
  %v3122 = vrsqrt.pop %v3058
  %v3123 = vrsqrt.pop %v3059
  %v3124 = vrsqrt.pop %v3060
  %v3125 = vrsqrt.pop %v3061
  %v3126 = vrsqrt.pop %v3062
  %v3127 = vrsqrt.pop %v3063
  %v3128 = vrsqrt.pop %v3064
  %v3129 = vrsqrt.pop %v3065
  %v3130 = vrsqrt.pop %v3066
  %v3131 = vrsqrt.pop %v3067
  %v3132 = vrsqrt.pop %v3068
  %v3133 = vrsqrt.pop %v3069
  %v3134 = vrsqrt.pop %v3070
  %v3135 = vrsqrt.pop %v3071
  %v3136 = vrsqrt.pop %v3072
  %v3137 = vrsqrt.pop %v3073
  %v3138 = vrsqrt.pop %v3074
  %v3139 = vrsqrt.pop %v3075
  %v3140 = vrsqrt.pop %v3076
  %v3141 = vrsqrt.pop %v3077
  %v3142 = vrsqrt.pop %v3078
  %v3143 = vrsqrt.pop %v3079
  %v3144 = vrsqrt.pop %v3080
  %v3145 = vrsqrt.pop %v3081
  %v3146 = vrsqrt.pop %v3082
  %v3147 = vrsqrt.pop %v3083
  %v3148 = vrsqrt.pop %v3084
  %v3149 = vrsqrt.pop %v3085
  %v3150 = vrsqrt.pop %v3086
  %v3151 = vrsqrt.pop %v3087
  %v3152 = vrsqrt.pop %v3088
  %v3153 = vrsqrt.pop %v3089
  %v3154 = vrsqrt.pop %v3090
  %v3155 = vrsqrt.pop %v3091
  %v3156 = vrsqrt.pop %v3092
  %v3157 = vrsqrt.pop %v3093
  %v3158 = vrsqrt.pop %v3094
  %v3159 = vrsqrt.pop %v3095
  %v3160 = vrsqrt.pop %v3096
  %v3161 = vrsqrt.pop %v3097
  %v3162 = vrsqrt.pop %v3098
  %v3163 = vrsqrt.pop %v3099
  %v3164 = vrsqrt.pop %v3100
  %v3165 = vrsqrt.pop %v3101
  %v3166 = vrsqrt.pop %v3102
  %v3167 = vrsqrt.pop %v3103
  %v3168 = vrsqrt.pop %v3104
  %v3169 = vrsqrt.pop %v3105
  %v3170 = vrsqrt.pop %v3106
  %v3171 = vrsqrt.pop %v3107
  %v3172 = vrsqrt.pop %v3108
  %v3173 = vrsqrt.pop %v3109
  %v3174 = vrsqrt.pop %v3110
  %v3175 = vrsqrt.pop %v3111
  %v3176 = vrsqrt.pop %v3112
  %v3177 = vrsqrt.pop %v3113
  %v3178 = vrsqrt.pop %v3114
  %v3179 = vrsqrt.pop %v3115
  %v3180 = vrsqrt.pop %v3116
  %v3181 = vrsqrt.pop %v3117
  %v3182 = vmul.f32 %v2670, %v3118
  %v3183 = vmul.f32 %v2671, %v3119
  %v3184 = vmul.f32 %v2672, %v3120
  %v3185 = vmul.f32 %v2673, %v3121
  %v3186 = vmul.f32 %v2674, %v3122
  %v3187 = vmul.f32 %v2675, %v3123
  %v3188 = vmul.f32 %v2676, %v3124
  %v3189 = vmul.f32 %v2677, %v3125
  %v3190 = vmul.f32 %v2678, %v3126
  %v3191 = vmul.f32 %v2679, %v3127
  %v3192 = vmul.f32 %v2680, %v3128
  %v3193 = vmul.f32 %v2681, %v3129
  %v3194 = vmul.f32 %v2682, %v3130
  %v3195 = vmul.f32 %v2683, %v3131
  %v3196 = vmul.f32 %v2684, %v3132
  %v3197 = vmul.f32 %v2685, %v3133
  %v3198 = vmul.f32 %v2686, %v3134
  %v3199 = vmul.f32 %v2687, %v3135
  %v3200 = vmul.f32 %v2688, %v3136
  %v3201 = vmul.f32 %v2689, %v3137
  %v3202 = vmul.f32 %v2690, %v3138
  %v3203 = vmul.f32 %v2691, %v3139
  %v3204 = vmul.f32 %v2692, %v3140
  %v3205 = vmul.f32 %v2693, %v3141
  %v3206 = vmul.f32 %v2694, %v3142
  %v3207 = vmul.f32 %v2695, %v3143
  %v3208 = vmul.f32 %v2696, %v3144
  %v3209 = vmul.f32 %v2697, %v3145
  %v3210 = vmul.f32 %v2698, %v3146
  %v3211 = vmul.f32 %v2699, %v3147
  %v3212 = vmul.f32 %v2700, %v3148
  %v3213 = vmul.f32 %v2701, %v3149
  %v3214 = vmul.f32 %v2702, %v3150
  %v3215 = vmul.f32 %v2703, %v3151
  %v3216 = vmul.f32 %v2704, %v3152
  %v3217 = vmul.f32 %v2705, %v3153
  %v3218 = vmul.f32 %v2706, %v3154
  %v3219 = vmul.f32 %v2707, %v3155
  %v3220 = vmul.f32 %v2708, %v3156
  %v3221 = vmul.f32 %v2709, %v3157
  %v3222 = vmul.f32 %v2710, %v3158
  %v3223 = vmul.f32 %v2711, %v3159
  %v3224 = vmul.f32 %v2712, %v3160
  %v3225 = vmul.f32 %v2713, %v3161
  %v3226 = vmul.f32 %v2714, %v3162
  %v3227 = vmul.f32 %v2715, %v3163
  %v3228 = vmul.f32 %v2716, %v3164
  %v3229 = vmul.f32 %v2717, %v3165
  %v3230 = vmul.f32 %v2718, %v3166
  %v3231 = vmul.f32 %v2719, %v3167
  %v3232 = vmul.f32 %v2720, %v3168
  %v3233 = vmul.f32 %v2721, %v3169
  %v3234 = vmul.f32 %v2722, %v3170
  %v3235 = vmul.f32 %v2723, %v3171
  %v3236 = vmul.f32 %v2724, %v3172
  %v3237 = vmul.f32 %v2725, %v3173
  %v3238 = vmul.f32 %v2726, %v3174
  %v3239 = vmul.f32 %v2727, %v3175
  %v3240 = vmul.f32 %v2728, %v3176
  %v3241 = vmul.f32 %v2729, %v3177
  %v3242 = vmul.f32 %v2730, %v3178
  %v3243 = vmul.f32 %v2731, %v3179
  %v3244 = vmul.f32 %v2732, %v3180
  %v3245 = vmul.f32 %v2733, %v3181
  %v3246 = vlaneseq
  %v3247 = vshrl.u32 %v3246, 7
  %v3248 = vsub.s32 3, %v3247
  %v3249 = vrot.slane %v87, %v3248
  %v3250 = vmul.f32 %v3182, %v3249
  %v3251 = vmul.f32 %v3183, %v3249
  %v3252 = vmul.f32 %v3184, %v3249
  %v3253 = vmul.f32 %v3185, %v3249
  %v3254 = vmul.f32 %v3186, %v3249
  %v3255 = vmul.f32 %v3187, %v3249
  %v3256 = vmul.f32 %v3188, %v3249
  %v3257 = vmul.f32 %v3189, %v3249
  %v3258 = vmul.f32 %v3190, %v3249
  %v3259 = vmul.f32 %v3191, %v3249
  %v3260 = vmul.f32 %v3192, %v3249
  %v3261 = vmul.f32 %v3193, %v3249
  %v3262 = vmul.f32 %v3194, %v3249
  %v3263 = vmul.f32 %v3195, %v3249
  %v3264 = vmul.f32 %v3196, %v3249
  %v3265 = vmul.f32 %v3197, %v3249
  %v3266 = vmul.f32 %v3198, %v3249
  %v3267 = vmul.f32 %v3199, %v3249
  %v3268 = vmul.f32 %v3200, %v3249
  %v3269 = vmul.f32 %v3201, %v3249
  %v3270 = vmul.f32 %v3202, %v3249
  %v3271 = vmul.f32 %v3203, %v3249
  %v3272 = vmul.f32 %v3204, %v3249
  %v3273 = vmul.f32 %v3205, %v3249
  %v3274 = vmul.f32 %v3206, %v3249
  %v3275 = vmul.f32 %v3207, %v3249
  %v3276 = vmul.f32 %v3208, %v3249
  %v3277 = vmul.f32 %v3209, %v3249
  %v3278 = vmul.f32 %v3210, %v3249
  %v3279 = vmul.f32 %v3211, %v3249
  %v3280 = vmul.f32 %v3212, %v3249
  %v3281 = vmul.f32 %v3213, %v3249
  %v3282 = vmul.f32 %v3214, %v3249
  %v3283 = vmul.f32 %v3215, %v3249
  %v3284 = vmul.f32 %v3216, %v3249
  %v3285 = vmul.f32 %v3217, %v3249
  %v3286 = vmul.f32 %v3218, %v3249
  %v3287 = vmul.f32 %v3219, %v3249
  %v3288 = vmul.f32 %v3220, %v3249
  %v3289 = vmul.f32 %v3221, %v3249
  %v3290 = vmul.f32 %v3222, %v3249
  %v3291 = vmul.f32 %v3223, %v3249
  %v3292 = vmul.f32 %v3224, %v3249
  %v3293 = vmul.f32 %v3225, %v3249
  %v3294 = vmul.f32 %v3226, %v3249
  %v3295 = vmul.f32 %v3227, %v3249
  %v3296 = vmul.f32 %v3228, %v3249
  %v3297 = vmul.f32 %v3229, %v3249
  %v3298 = vmul.f32 %v3230, %v3249
  %v3299 = vmul.f32 %v3231, %v3249
  %v3300 = vmul.f32 %v3232, %v3249
  %v3301 = vmul.f32 %v3233, %v3249
  %v3302 = vmul.f32 %v3234, %v3249
  %v3303 = vmul.f32 %v3235, %v3249
  %v3304 = vmul.f32 %v3236, %v3249
  %v3305 = vmul.f32 %v3237, %v3249
  %v3306 = vmul.f32 %v3238, %v3249
  %v3307 = vmul.f32 %v3239, %v3249
  %v3308 = vmul.f32 %v3240, %v3249
  %v3309 = vmul.f32 %v3241, %v3249
  %v3310 = vmul.f32 %v3242, %v3249
  %v3311 = vmul.f32 %v3243, %v3249
  %v3312 = vmul.f32 %v3244, %v3249
  %v3313 = vmul.f32 %v3245, %v3249
  %v3314 = vlaneseq
  %v3315 = vshrl.u32 %v3314, 7
  %v3316 = vsub.s32 4, %v3315
  %v3317 = vrot.slane %v87, %v3316
  %v3318 = vadd.f32 %v3250, %v3317
  %v3319 = vadd.f32 %v3251, %v3317
  %v3320 = vadd.f32 %v3252, %v3317
  %v3321 = vadd.f32 %v3253, %v3317
  %v3322 = vadd.f32 %v3254, %v3317
  %v3323 = vadd.f32 %v3255, %v3317
  %v3324 = vadd.f32 %v3256, %v3317
  %v3325 = vadd.f32 %v3257, %v3317
  %v3326 = vadd.f32 %v3258, %v3317
  %v3327 = vadd.f32 %v3259, %v3317
  %v3328 = vadd.f32 %v3260, %v3317
  %v3329 = vadd.f32 %v3261, %v3317
  %v3330 = vadd.f32 %v3262, %v3317
  %v3331 = vadd.f32 %v3263, %v3317
  %v3332 = vadd.f32 %v3264, %v3317
  %v3333 = vadd.f32 %v3265, %v3317
  %v3334 = vadd.f32 %v3266, %v3317
  %v3335 = vadd.f32 %v3267, %v3317
  %v3336 = vadd.f32 %v3268, %v3317
  %v3337 = vadd.f32 %v3269, %v3317
  %v3338 = vadd.f32 %v3270, %v3317
  %v3339 = vadd.f32 %v3271, %v3317
  %v3340 = vadd.f32 %v3272, %v3317
  %v3341 = vadd.f32 %v3273, %v3317
  %v3342 = vadd.f32 %v3274, %v3317
  %v3343 = vadd.f32 %v3275, %v3317
  %v3344 = vadd.f32 %v3276, %v3317
  %v3345 = vadd.f32 %v3277, %v3317
  %v3346 = vadd.f32 %v3278, %v3317
  %v3347 = vadd.f32 %v3279, %v3317
  %v3348 = vadd.f32 %v3280, %v3317
  %v3349 = vadd.f32 %v3281, %v3317
  %v3350 = vadd.f32 %v3282, %v3317
  %v3351 = vadd.f32 %v3283, %v3317
  %v3352 = vadd.f32 %v3284, %v3317
  %v3353 = vadd.f32 %v3285, %v3317
  %v3354 = vadd.f32 %v3286, %v3317
  %v3355 = vadd.f32 %v3287, %v3317
  %v3356 = vadd.f32 %v3288, %v3317
  %v3357 = vadd.f32 %v3289, %v3317
  %v3358 = vadd.f32 %v3290, %v3317
  %v3359 = vadd.f32 %v3291, %v3317
  %v3360 = vadd.f32 %v3292, %v3317
  %v3361 = vadd.f32 %v3293, %v3317
  %v3362 = vadd.f32 %v3294, %v3317
  %v3363 = vadd.f32 %v3295, %v3317
  %v3364 = vadd.f32 %v3296, %v3317
  %v3365 = vadd.f32 %v3297, %v3317
  %v3366 = vadd.f32 %v3298, %v3317
  %v3367 = vadd.f32 %v3299, %v3317
  %v3368 = vadd.f32 %v3300, %v3317
  %v3369 = vadd.f32 %v3301, %v3317
  %v3370 = vadd.f32 %v3302, %v3317
  %v3371 = vadd.f32 %v3303, %v3317
  %v3372 = vadd.f32 %v3304, %v3317
  %v3373 = vadd.f32 %v3305, %v3317
  %v3374 = vadd.f32 %v3306, %v3317
  %v3375 = vadd.f32 %v3307, %v3317
  %v3376 = vadd.f32 %v3308, %v3317
  %v3377 = vadd.f32 %v3309, %v3317
  %v3378 = vadd.f32 %v3310, %v3317
  %v3379 = vadd.f32 %v3311, %v3317
  %v3380 = vadd.f32 %v3312, %v3317
  %v3381 = vadd.f32 %v3313, %v3317
  %vm3382 = vcmp.gt.f32.partialorder %v3318, 0.0
  %vm3383 = vcmp.gt.f32.partialorder %v3319, 0.0
  %vm3384 = vcmp.gt.f32.partialorder %v3320, 0.0
  %vm3385 = vcmp.gt.f32.partialorder %v3321, 0.0
  %vm3386 = vcmp.gt.f32.partialorder %v3322, 0.0
  %vm3387 = vcmp.gt.f32.partialorder %v3323, 0.0
  %vm3388 = vcmp.gt.f32.partialorder %v3324, 0.0
  %vm3389 = vcmp.gt.f32.partialorder %v3325, 0.0
  %vm3390 = vcmp.gt.f32.partialorder %v3326, 0.0
  %vm3391 = vcmp.gt.f32.partialorder %v3327, 0.0
  %vm3392 = vcmp.gt.f32.partialorder %v3328, 0.0
  %vm3393 = vcmp.gt.f32.partialorder %v3329, 0.0
  %vm3394 = vcmp.gt.f32.partialorder %v3330, 0.0
  %vm3395 = vcmp.gt.f32.partialorder %v3331, 0.0
  %vm3396 = vcmp.gt.f32.partialorder %v3332, 0.0
  %vm3397 = vcmp.gt.f32.partialorder %v3333, 0.0
  %vm3398 = vcmp.gt.f32.partialorder %v3334, 0.0
  %vm3399 = vcmp.gt.f32.partialorder %v3335, 0.0
  %vm3400 = vcmp.gt.f32.partialorder %v3336, 0.0
  %vm3401 = vcmp.gt.f32.partialorder %v3337, 0.0
  %vm3402 = vcmp.gt.f32.partialorder %v3338, 0.0
  %vm3403 = vcmp.gt.f32.partialorder %v3339, 0.0
  %vm3404 = vcmp.gt.f32.partialorder %v3340, 0.0
  %vm3405 = vcmp.gt.f32.partialorder %v3341, 0.0
  %vm3406 = vcmp.gt.f32.partialorder %v3342, 0.0
  %vm3407 = vcmp.gt.f32.partialorder %v3343, 0.0
  %vm3408 = vcmp.gt.f32.partialorder %v3344, 0.0
  %vm3409 = vcmp.gt.f32.partialorder %v3345, 0.0
  %vm3410 = vcmp.gt.f32.partialorder %v3346, 0.0
  %vm3411 = vcmp.gt.f32.partialorder %v3347, 0.0
  %vm3412 = vcmp.gt.f32.partialorder %v3348, 0.0
  %vm3413 = vcmp.gt.f32.partialorder %v3349, 0.0
  %vm3414 = vcmp.gt.f32.partialorder %v3350, 0.0
  %vm3415 = vcmp.gt.f32.partialorder %v3351, 0.0
  %vm3416 = vcmp.gt.f32.partialorder %v3352, 0.0
  %vm3417 = vcmp.gt.f32.partialorder %v3353, 0.0
  %vm3418 = vcmp.gt.f32.partialorder %v3354, 0.0
  %vm3419 = vcmp.gt.f32.partialorder %v3355, 0.0
  %vm3420 = vcmp.gt.f32.partialorder %v3356, 0.0
  %vm3421 = vcmp.gt.f32.partialorder %v3357, 0.0
  %vm3422 = vcmp.gt.f32.partialorder %v3358, 0.0
  %vm3423 = vcmp.gt.f32.partialorder %v3359, 0.0
  %vm3424 = vcmp.gt.f32.partialorder %v3360, 0.0
  %vm3425 = vcmp.gt.f32.partialorder %v3361, 0.0
  %vm3426 = vcmp.gt.f32.partialorder %v3362, 0.0
  %vm3427 = vcmp.gt.f32.partialorder %v3363, 0.0
  %vm3428 = vcmp.gt.f32.partialorder %v3364, 0.0
  %vm3429 = vcmp.gt.f32.partialorder %v3365, 0.0
  %vm3430 = vcmp.gt.f32.partialorder %v3366, 0.0
  %vm3431 = vcmp.gt.f32.partialorder %v3367, 0.0
  %vm3432 = vcmp.gt.f32.partialorder %v3368, 0.0
  %vm3433 = vcmp.gt.f32.partialorder %v3369, 0.0
  %vm3434 = vcmp.gt.f32.partialorder %v3370, 0.0
  %vm3435 = vcmp.gt.f32.partialorder %v3371, 0.0
  %vm3436 = vcmp.gt.f32.partialorder %v3372, 0.0
  %vm3437 = vcmp.gt.f32.partialorder %v3373, 0.0
  %vm3438 = vcmp.gt.f32.partialorder %v3374, 0.0
  %vm3439 = vcmp.gt.f32.partialorder %v3375, 0.0
  %vm3440 = vcmp.gt.f32.partialorder %v3376, 0.0
  %vm3441 = vcmp.gt.f32.partialorder %v3377, 0.0
  %vm3442 = vcmp.gt.f32.partialorder %v3378, 0.0
  %vm3443 = vcmp.gt.f32.partialorder %v3379, 0.0
  %vm3444 = vcmp.gt.f32.partialorder %v3380, 0.0
  %vm3445 = vcmp.gt.f32.partialorder %v3381, 0.0
  %v3446 = vmul.f32 %v3318, 0.2
  %v3447 = vmul.f32 %v3319, 0.2
  %v3448 = vmul.f32 %v3320, 0.2
  %v3449 = vmul.f32 %v3321, 0.2
  %v3450 = vmul.f32 %v3322, 0.2
  %v3451 = vmul.f32 %v3323, 0.2
  %v3452 = vmul.f32 %v3324, 0.2
  %v3453 = vmul.f32 %v3325, 0.2
  %v3454 = vmul.f32 %v3326, 0.2
  %v3455 = vmul.f32 %v3327, 0.2
  %v3456 = vmul.f32 %v3328, 0.2
  %v3457 = vmul.f32 %v3329, 0.2
  %v3458 = vmul.f32 %v3330, 0.2
  %v3459 = vmul.f32 %v3331, 0.2
  %v3460 = vmul.f32 %v3332, 0.2
  %v3461 = vmul.f32 %v3333, 0.2
  %v3462 = vmul.f32 %v3334, 0.2
  %v3463 = vmul.f32 %v3335, 0.2
  %v3464 = vmul.f32 %v3336, 0.2
  %v3465 = vmul.f32 %v3337, 0.2
  %v3466 = vmul.f32 %v3338, 0.2
  %v3467 = vmul.f32 %v3339, 0.2
  %v3468 = vmul.f32 %v3340, 0.2
  %v3469 = vmul.f32 %v3341, 0.2
  %v3470 = vmul.f32 %v3342, 0.2
  %v3471 = vmul.f32 %v3343, 0.2
  %v3472 = vmul.f32 %v3344, 0.2
  %v3473 = vmul.f32 %v3345, 0.2
  %v3474 = vmul.f32 %v3346, 0.2
  %v3475 = vmul.f32 %v3347, 0.2
  %v3476 = vmul.f32 %v3348, 0.2
  %v3477 = vmul.f32 %v3349, 0.2
  %v3478 = vmul.f32 %v3350, 0.2
  %v3479 = vmul.f32 %v3351, 0.2
  %v3480 = vmul.f32 %v3352, 0.2
  %v3481 = vmul.f32 %v3353, 0.2
  %v3482 = vmul.f32 %v3354, 0.2
  %v3483 = vmul.f32 %v3355, 0.2
  %v3484 = vmul.f32 %v3356, 0.2
  %v3485 = vmul.f32 %v3357, 0.2
  %v3486 = vmul.f32 %v3358, 0.2
  %v3487 = vmul.f32 %v3359, 0.2
  %v3488 = vmul.f32 %v3360, 0.2
  %v3489 = vmul.f32 %v3361, 0.2
  %v3490 = vmul.f32 %v3362, 0.2
  %v3491 = vmul.f32 %v3363, 0.2
  %v3492 = vmul.f32 %v3364, 0.2
  %v3493 = vmul.f32 %v3365, 0.2
  %v3494 = vmul.f32 %v3366, 0.2
  %v3495 = vmul.f32 %v3367, 0.2
  %v3496 = vmul.f32 %v3368, 0.2
  %v3497 = vmul.f32 %v3369, 0.2
  %v3498 = vmul.f32 %v3370, 0.2
  %v3499 = vmul.f32 %v3371, 0.2
  %v3500 = vmul.f32 %v3372, 0.2
  %v3501 = vmul.f32 %v3373, 0.2
  %v3502 = vmul.f32 %v3374, 0.2
  %v3503 = vmul.f32 %v3375, 0.2
  %v3504 = vmul.f32 %v3376, 0.2
  %v3505 = vmul.f32 %v3377, 0.2
  %v3506 = vmul.f32 %v3378, 0.2
  %v3507 = vmul.f32 %v3379, 0.2
  %v3508 = vmul.f32 %v3380, 0.2
  %v3509 = vmul.f32 %v3381, 0.2
  %v3510 = vsel %vm3382, %v3318, %v3446
  %v3511 = vsel %vm3383, %v3319, %v3447
  %v3512 = vsel %vm3384, %v3320, %v3448
  %v3513 = vsel %vm3385, %v3321, %v3449
  %v3514 = vsel %vm3386, %v3322, %v3450
  %v3515 = vsel %vm3387, %v3323, %v3451
  %v3516 = vsel %vm3388, %v3324, %v3452
  %v3517 = vsel %vm3389, %v3325, %v3453
  %v3518 = vsel %vm3390, %v3326, %v3454
  %v3519 = vsel %vm3391, %v3327, %v3455
  %v3520 = vsel %vm3392, %v3328, %v3456
  %v3521 = vsel %vm3393, %v3329, %v3457
  %v3522 = vsel %vm3394, %v3330, %v3458
  %v3523 = vsel %vm3395, %v3331, %v3459
  %v3524 = vsel %vm3396, %v3332, %v3460
  %v3525 = vsel %vm3397, %v3333, %v3461
  %v3526 = vsel %vm3398, %v3334, %v3462
  %v3527 = vsel %vm3399, %v3335, %v3463
  %v3528 = vsel %vm3400, %v3336, %v3464
  %v3529 = vsel %vm3401, %v3337, %v3465
  %v3530 = vsel %vm3402, %v3338, %v3466
  %v3531 = vsel %vm3403, %v3339, %v3467
  %v3532 = vsel %vm3404, %v3340, %v3468
  %v3533 = vsel %vm3405, %v3341, %v3469
  %v3534 = vsel %vm3406, %v3342, %v3470
  %v3535 = vsel %vm3407, %v3343, %v3471
  %v3536 = vsel %vm3408, %v3344, %v3472
  %v3537 = vsel %vm3409, %v3345, %v3473
  %v3538 = vsel %vm3410, %v3346, %v3474
  %v3539 = vsel %vm3411, %v3347, %v3475
  %v3540 = vsel %vm3412, %v3348, %v3476
  %v3541 = vsel %vm3413, %v3349, %v3477
  %v3542 = vsel %vm3414, %v3350, %v3478
  %v3543 = vsel %vm3415, %v3351, %v3479
  %v3544 = vsel %vm3416, %v3352, %v3480
  %v3545 = vsel %vm3417, %v3353, %v3481
  %v3546 = vsel %vm3418, %v3354, %v3482
  %v3547 = vsel %vm3419, %v3355, %v3483
  %v3548 = vsel %vm3420, %v3356, %v3484
  %v3549 = vsel %vm3421, %v3357, %v3485
  %v3550 = vsel %vm3422, %v3358, %v3486
  %v3551 = vsel %vm3423, %v3359, %v3487
  %v3552 = vsel %vm3424, %v3360, %v3488
  %v3553 = vsel %vm3425, %v3361, %v3489
  %v3554 = vsel %vm3426, %v3362, %v3490
  %v3555 = vsel %vm3427, %v3363, %v3491
  %v3556 = vsel %vm3428, %v3364, %v3492
  %v3557 = vsel %vm3429, %v3365, %v3493
  %v3558 = vsel %vm3430, %v3366, %v3494
  %v3559 = vsel %vm3431, %v3367, %v3495
  %v3560 = vsel %vm3432, %v3368, %v3496
  %v3561 = vsel %vm3433, %v3369, %v3497
  %v3562 = vsel %vm3434, %v3370, %v3498
  %v3563 = vsel %vm3435, %v3371, %v3499
  %v3564 = vsel %vm3436, %v3372, %v3500
  %v3565 = vsel %vm3437, %v3373, %v3501
  %v3566 = vsel %vm3438, %v3374, %v3502
  %v3567 = vsel %vm3439, %v3375, %v3503
  %v3568 = vsel %vm3440, %v3376, %v3504
  %v3569 = vsel %vm3441, %v3377, %v3505
  %v3570 = vsel %vm3442, %v3378, %v3506
  %v3571 = vsel %vm3443, %v3379, %v3507
  %v3572 = vsel %vm3444, %v3380, %v3508
  %v3573 = vsel %vm3445, %v3381, %v3509
  %v3574 = vld [vmem:[%s3] sm:$0xff]
  %v3575 = vld [vmem:[%s3 + $0x8] sm:$0xff]
  %v3576 = vld [vmem:[%s3 + $0x10] sm:$0xff]
  %v3577 = vld [vmem:[%s3 + $0x18] sm:$0xff]
  %v3578 = vld [vmem:[%s3 + $0x20] sm:$0xff]
  %v3579 = vld [vmem:[%s3 + $0x28] sm:$0xff]
  %v3580 = vld [vmem:[%s3 + $0x30] sm:$0xff]
  %v3581 = vld [vmem:[%s3 + $0x38] sm:$0xff]
  %v3582 = vld [vmem:[%s5] sm:$0x3]
  %v3584 = vlaneseq
  %v3585 = vshrl.u32 %v3584, 7
  %v3586 = vsub.s32 0, %v3585
  %v3587 = vrot.slane %v3582, %v3586
  %v3588 = vlaneseq
  %v3589 = vshrl.u32 %v3588, 7
  %v3590 = vsub.s32 1, %v3589
  %v3591 = vrot.slane %v3582, %v3590
  %v3595 = vsel %vm667, %v3510, 0
  %v3598 = vsel %vm667, %v3511, 0
  %v3601 = vsel %vm667, %v3512, 0
  %v3604 = vsel %vm667, %v3513, 0
  %v3607 = vsel %vm667, %v3514, 0
  %v3610 = vsel %vm667, %v3515, 0
  %v3613 = vsel %vm667, %v3516, 0
  %v3616 = vsel %vm667, %v3517, 0
  %v3619 = vsel %vm667, %v3518, 0
  %v3622 = vsel %vm667, %v3519, 0
  %v3625 = vsel %vm667, %v3520, 0
  %v3628 = vsel %vm667, %v3521, 0
  %v3631 = vsel %vm667, %v3522, 0
  %v3634 = vsel %vm667, %v3523, 0
  %v3637 = vsel %vm667, %v3524, 0
  %v3640 = vsel %vm667, %v3525, 0
  %v3643 = vsel %vm667, %v3526, 0
  %v3646 = vsel %vm667, %v3527, 0
  %v3649 = vsel %vm667, %v3528, 0
  %v3652 = vsel %vm667, %v3529, 0
  %v3655 = vsel %vm667, %v3530, 0
  %v3658 = vsel %vm667, %v3531, 0
  %v3661 = vsel %vm667, %v3532, 0
  %v3664 = vsel %vm667, %v3533, 0
  %v3667 = vsel %vm667, %v3534, 0
  %v3670 = vsel %vm667, %v3535, 0
  %v3673 = vsel %vm667, %v3536, 0
  %v3676 = vsel %vm667, %v3537, 0
  %v3679 = vsel %vm667, %v3538, 0
  %v3682 = vsel %vm667, %v3539, 0
  %v3685 = vsel %vm667, %v3540, 0
  %v3688 = vsel %vm667, %v3541, 0
  %v3691 = vsel %vm667, %v3542, 0
  %v3694 = vsel %vm667, %v3543, 0
  %v3697 = vsel %vm667, %v3544, 0
  %v3700 = vsel %vm667, %v3545, 0
  %v3703 = vsel %vm667, %v3546, 0
  %v3706 = vsel %vm667, %v3547, 0
  %v3709 = vsel %vm667, %v3548, 0
  %v3712 = vsel %vm667, %v3549, 0
  %v3715 = vsel %vm667, %v3550, 0
  %v3718 = vsel %vm667, %v3551, 0
  %v3721 = vsel %vm667, %v3552, 0
  %v3724 = vsel %vm667, %v3553, 0
  %v3727 = vsel %vm667, %v3554, 0
  %v3730 = vsel %vm667, %v3555, 0
  %v3733 = vsel %vm667, %v3556, 0
  %v3736 = vsel %vm667, %v3557, 0
  %v3739 = vsel %vm667, %v3558, 0
  %v3742 = vsel %vm667, %v3559, 0
  %v3745 = vsel %vm667, %v3560, 0
  %v3748 = vsel %vm667, %v3561, 0
  %v3751 = vsel %vm667, %v3562, 0
  %v3754 = vsel %vm667, %v3563, 0
  %v3757 = vsel %vm667, %v3564, 0
  %v3760 = vsel %vm667, %v3565, 0
  %v3763 = vsel %vm667, %v3566, 0
  %v3766 = vsel %vm667, %v3567, 0
  %v3769 = vsel %vm667, %v3568, 0
  %v3772 = vsel %vm667, %v3569, 0
  %v3775 = vsel %vm667, %v3570, 0
  %v3778 = vsel %vm667, %v3571, 0
  %v3781 = vsel %vm667, %v3572, 0
  %v3784 = vsel %vm667, %v3573, 0
  %3786 = vmatprep.subr.mxu0 0.0
  %3787 = vmatpush1.msra.mxu0 0.0
  %3788 = vmatprep.subr.mxu0 0.0
  %3789 = vmatpush1.msra.mxu0 0.0
  %3790 = vmatprep.subr.mxu0 0.0
  %3791 = vmatpush1.msra.mxu0 0.0
  %3792 = vmatprep.subr.mxu0 0.0
  %3793 = vmatpush1.msra.mxu0 0.0
  %3794 = vmatprep.subr.mxu0 0.0
  %3795 = vmatpush1.msra.mxu0 0.0
  %3796 = vmatprep.subr.mxu0 0.0
  %3797 = vmatpush1.msra.mxu0 0.0
  %3798 = vmatprep.subr.mxu0 0.0
  %3799 = vmatpush1.msra.mxu0 0.0
  %3800 = vmatprep.subr.mxu0 0.0
  %3801 = vmatpush1.msra.mxu0 0.0
  %3802 = vmatprep.subr.mxu0 0.0
  %3803 = vmatpush1.msra.mxu0 0.0
  %3804 = vmatprep.subr.mxu0 0.0
  %3805 = vmatpush1.msra.mxu0 0.0
  %3806 = vmatprep.subr.mxu0 0.0
  %3807 = vmatpush1.msra.mxu0 0.0
  %3808 = vmatprep.subr.mxu0 0.0
  %3809 = vmatpush1.msra.mxu0 0.0
  %3810 = vmatprep.subr.mxu0 %v3581
  %3811 = vmatpush1.msra.mxu0 %v3580
  %3812 = vmatprep.subr.mxu0 %v3579
  %3813 = vmatpush1.msra.mxu0 %v3578
  %3814 = vmatprep.subr.mxu0 %v3577
  %3815 = vmatpush1.msra.mxu0 %v3576
  %3816 = vmatprep.subr.mxu0 %v3575
  %3817 = vmatpush1.msra.mxu0 %v3574
  %3818 = vmatprep.subr.mxu0 0.0
  %3819 = vmatpush2.msra.mxu0 0.0
  %3820 = vmatprep.subr.mxu0 0.0
  %3821 = vmatpush2.msra.mxu0 0.0
  %3822 = vmatprep.subr.mxu0 0.0
  %3823 = vmatpush2.msra.mxu0 0.0
  %3824 = vmatprep.subr.mxu0 0.0
  %3825 = vmatpush2.msra.mxu0 0.0
  %3826 = vmatprep.subr.mxu0 0.0
  %3827 = vmatpush2.msra.mxu0 0.0
  %3828 = vmatprep.subr.mxu0 0.0
  %3829 = vmatpush2.msra.mxu0 0.0
  %3830 = vmatprep.subr.mxu0 0.0
  %3831 = vmatpush2.msra.mxu0 0.0
  %3832 = vmatprep.subr.mxu0 0.0
  %3833 = vmatpush2.msra.mxu0 0.0
  %3834 = vmatprep.subr.mxu0 0.0
  %3835 = vmatpush2.msra.mxu0 0.0
  %3836 = vmatprep.subr.mxu0 0.0
  %3837 = vmatpush2.msra.mxu0 0.0
  %3838 = vmatprep.subr.mxu0 0.0
  %3839 = vmatpush2.msra.mxu0 0.0
  %3840 = vmatprep.subr.mxu0 0.0
  %3841 = vmatpush2.msra.mxu0 0.0
  %3842 = vmatprep.subr.mxu0 0.0
  %3843 = vmatpush2.msra.mxu0 0.0
  %3844 = vmatprep.subr.mxu0 0.0
  %3845 = vmatpush2.msra.mxu0 0.0
  %3846 = vmatprep.subr.mxu0 0.0
  %3847 = vmatpush2.msra.mxu0 0.0
  %3848 = vmatprep.subr.mxu0 0.0
  %3849 = vmatpush2.msra.mxu0 0.0
  %3850 = vmatprep.mubr.f32.mxu0 0.0
  %3851 = vmatmul.mubr.f32.gmra.mxu0 %v3595
  %v3852 = vpop.f32.mrf.mxu0
  %v3853 = vadd.f32 %v3587, %v3852
  %v3854 = vpop.f32.mrf.mxu0
  %v3855 = vadd.f32 %v3591, %v3854
  %3856 = vmatprep.mubr.f32.mxu0 0.0
  %3857 = vmatmul.mubr.f32.gmra.mxu0 %v3598
  %v3858 = vpop.f32.mrf.mxu0
  %v3859 = vadd.f32 %v3587, %v3858
  %v3860 = vpop.f32.mrf.mxu0
  %v3861 = vadd.f32 %v3591, %v3860
  %3862 = vmatprep.mubr.f32.mxu0 0.0
  %3863 = vmatmul.mubr.f32.gmra.mxu0 %v3601
  %v3864 = vpop.f32.mrf.mxu0
  %v3865 = vadd.f32 %v3587, %v3864
  %v3866 = vpop.f32.mrf.mxu0
  %v3867 = vadd.f32 %v3591, %v3866
  %3868 = vmatprep.mubr.f32.mxu0 0.0
  %3869 = vmatmul.mubr.f32.gmra.mxu0 %v3604
  %v3870 = vpop.f32.mrf.mxu0
  %v3871 = vadd.f32 %v3587, %v3870
  %v3872 = vpop.f32.mrf.mxu0
  %v3873 = vadd.f32 %v3591, %v3872
  %3874 = vmatprep.mubr.f32.mxu0 0.0
  %3875 = vmatmul.mubr.f32.gmra.mxu0 %v3607
  %v3876 = vpop.f32.mrf.mxu0
  %v3877 = vadd.f32 %v3587, %v3876
  %v3878 = vpop.f32.mrf.mxu0
  %v3879 = vadd.f32 %v3591, %v3878
  %3880 = vmatprep.mubr.f32.mxu0 0.0
  %3881 = vmatmul.mubr.f32.gmra.mxu0 %v3610
  %v3882 = vpop.f32.mrf.mxu0
  %v3883 = vadd.f32 %v3587, %v3882
  %v3884 = vpop.f32.mrf.mxu0
  %v3885 = vadd.f32 %v3591, %v3884
  %3886 = vmatprep.mubr.f32.mxu0 0.0
  %3887 = vmatmul.mubr.f32.gmra.mxu0 %v3613
  %v3888 = vpop.f32.mrf.mxu0
  %v3889 = vadd.f32 %v3587, %v3888
  %v3890 = vpop.f32.mrf.mxu0
  %v3891 = vadd.f32 %v3591, %v3890
  %3892 = vmatprep.mubr.f32.mxu0 0.0
  %3893 = vmatmul.mubr.f32.gmra.mxu0 %v3616
  %v3894 = vpop.f32.mrf.mxu0
  %v3895 = vadd.f32 %v3587, %v3894
  %v3896 = vpop.f32.mrf.mxu0
  %v3897 = vadd.f32 %v3591, %v3896
  %3898 = vmatprep.mubr.f32.mxu0 0.0
  %3899 = vmatmul.mubr.f32.gmra.mxu0 %v3619
  %v3900 = vpop.f32.mrf.mxu0
  %v3901 = vadd.f32 %v3587, %v3900
  %v3902 = vpop.f32.mrf.mxu0
  %v3903 = vadd.f32 %v3591, %v3902
  %3904 = vmatprep.mubr.f32.mxu0 0.0
  %3905 = vmatmul.mubr.f32.gmra.mxu0 %v3622
  %v3906 = vpop.f32.mrf.mxu0
  %v3907 = vadd.f32 %v3587, %v3906
  %v3908 = vpop.f32.mrf.mxu0
  %v3909 = vadd.f32 %v3591, %v3908
  %3910 = vmatprep.mubr.f32.mxu0 0.0
  %3911 = vmatmul.mubr.f32.gmra.mxu0 %v3625
  %v3912 = vpop.f32.mrf.mxu0
  %v3913 = vadd.f32 %v3587, %v3912
  %v3914 = vpop.f32.mrf.mxu0
  %v3915 = vadd.f32 %v3591, %v3914
  %3916 = vmatprep.mubr.f32.mxu0 0.0
  %3917 = vmatmul.mubr.f32.gmra.mxu0 %v3628
  %v3918 = vpop.f32.mrf.mxu0
  %v3919 = vadd.f32 %v3587, %v3918
  %v3920 = vpop.f32.mrf.mxu0
  %v3921 = vadd.f32 %v3591, %v3920
  %3922 = vmatprep.mubr.f32.mxu0 0.0
  %3923 = vmatmul.mubr.f32.gmra.mxu0 %v3631
  %v3924 = vpop.f32.mrf.mxu0
  %v3925 = vadd.f32 %v3587, %v3924
  %v3926 = vpop.f32.mrf.mxu0
  %v3927 = vadd.f32 %v3591, %v3926
  %3928 = vmatprep.mubr.f32.mxu0 0.0
  %3929 = vmatmul.mubr.f32.gmra.mxu0 %v3634
  %v3930 = vpop.f32.mrf.mxu0
  %v3931 = vadd.f32 %v3587, %v3930
  %v3932 = vpop.f32.mrf.mxu0
  %v3933 = vadd.f32 %v3591, %v3932
  %3934 = vmatprep.mubr.f32.mxu0 0.0
  %3935 = vmatmul.mubr.f32.gmra.mxu0 %v3637
  %v3936 = vpop.f32.mrf.mxu0
  %v3937 = vadd.f32 %v3587, %v3936
  %v3938 = vpop.f32.mrf.mxu0
  %v3939 = vadd.f32 %v3591, %v3938
  %3940 = vmatprep.mubr.f32.mxu0 0.0
  %3941 = vmatmul.mubr.f32.gmra.mxu0 %v3640
  %v3942 = vpop.f32.mrf.mxu0
  %v3943 = vadd.f32 %v3587, %v3942
  %v3944 = vpop.f32.mrf.mxu0
  %v3945 = vadd.f32 %v3591, %v3944
  %3946 = vmatprep.mubr.f32.mxu0 0.0
  %3947 = vmatmul.mubr.f32.gmra.mxu0 %v3643
  %v3948 = vpop.f32.mrf.mxu0
  %v3949 = vadd.f32 %v3587, %v3948
  %v3950 = vpop.f32.mrf.mxu0
  %v3951 = vadd.f32 %v3591, %v3950
  %3952 = vmatprep.mubr.f32.mxu0 0.0
  %3953 = vmatmul.mubr.f32.gmra.mxu0 %v3646
  %v3954 = vpop.f32.mrf.mxu0
  %v3955 = vadd.f32 %v3587, %v3954
  %v3956 = vpop.f32.mrf.mxu0
  %v3957 = vadd.f32 %v3591, %v3956
  %3958 = vmatprep.mubr.f32.mxu0 0.0
  %3959 = vmatmul.mubr.f32.gmra.mxu0 %v3649
  %v3960 = vpop.f32.mrf.mxu0
  %v3961 = vadd.f32 %v3587, %v3960
  %v3962 = vpop.f32.mrf.mxu0
  %v3963 = vadd.f32 %v3591, %v3962
  %3964 = vmatprep.mubr.f32.mxu0 0.0
  %3965 = vmatmul.mubr.f32.gmra.mxu0 %v3652
  %v3966 = vpop.f32.mrf.mxu0
  %v3967 = vadd.f32 %v3587, %v3966
  %v3968 = vpop.f32.mrf.mxu0
  %v3969 = vadd.f32 %v3591, %v3968
  %3970 = vmatprep.mubr.f32.mxu0 0.0
  %3971 = vmatmul.mubr.f32.gmra.mxu0 %v3655
  %v3972 = vpop.f32.mrf.mxu0
  %v3973 = vadd.f32 %v3587, %v3972
  %v3974 = vpop.f32.mrf.mxu0
  %v3975 = vadd.f32 %v3591, %v3974
  %3976 = vmatprep.mubr.f32.mxu0 0.0
  %3977 = vmatmul.mubr.f32.gmra.mxu0 %v3658
  %v3978 = vpop.f32.mrf.mxu0
  %v3979 = vadd.f32 %v3587, %v3978
  %v3980 = vpop.f32.mrf.mxu0
  %v3981 = vadd.f32 %v3591, %v3980
  %3982 = vmatprep.mubr.f32.mxu0 0.0
  %3983 = vmatmul.mubr.f32.gmra.mxu0 %v3661
  %v3984 = vpop.f32.mrf.mxu0
  %v3985 = vadd.f32 %v3587, %v3984
  %v3986 = vpop.f32.mrf.mxu0
  %v3987 = vadd.f32 %v3591, %v3986
  %3988 = vmatprep.mubr.f32.mxu0 0.0
  %3989 = vmatmul.mubr.f32.gmra.mxu0 %v3664
  %v3990 = vpop.f32.mrf.mxu0
  %v3991 = vadd.f32 %v3587, %v3990
  %v3992 = vpop.f32.mrf.mxu0
  %v3993 = vadd.f32 %v3591, %v3992
  %3994 = vmatprep.mubr.f32.mxu0 0.0
  %3995 = vmatmul.mubr.f32.gmra.mxu0 %v3667
  %v3996 = vpop.f32.mrf.mxu0
  %v3997 = vadd.f32 %v3587, %v3996
  %v3998 = vpop.f32.mrf.mxu0
  %v3999 = vadd.f32 %v3591, %v3998
  %4000 = vmatprep.mubr.f32.mxu0 0.0
  %4001 = vmatmul.mubr.f32.gmra.mxu0 %v3670
  %v4002 = vpop.f32.mrf.mxu0
  %v4003 = vadd.f32 %v3587, %v4002
  %v4004 = vpop.f32.mrf.mxu0
  %v4005 = vadd.f32 %v3591, %v4004
  %4006 = vmatprep.mubr.f32.mxu0 0.0
  %4007 = vmatmul.mubr.f32.gmra.mxu0 %v3673
  %v4008 = vpop.f32.mrf.mxu0
  %v4009 = vadd.f32 %v3587, %v4008
  %v4010 = vpop.f32.mrf.mxu0
  %v4011 = vadd.f32 %v3591, %v4010
  %4012 = vmatprep.mubr.f32.mxu0 0.0
  %4013 = vmatmul.mubr.f32.gmra.mxu0 %v3676
  %v4014 = vpop.f32.mrf.mxu0
  %v4015 = vadd.f32 %v3587, %v4014
  %v4016 = vpop.f32.mrf.mxu0
  %v4017 = vadd.f32 %v3591, %v4016
  %4018 = vmatprep.mubr.f32.mxu0 0.0
  %4019 = vmatmul.mubr.f32.gmra.mxu0 %v3679
  %v4020 = vpop.f32.mrf.mxu0
  %v4021 = vadd.f32 %v3587, %v4020
  %v4022 = vpop.f32.mrf.mxu0
  %v4023 = vadd.f32 %v3591, %v4022
  %4024 = vmatprep.mubr.f32.mxu0 0.0
  %4025 = vmatmul.mubr.f32.gmra.mxu0 %v3682
  %v4026 = vpop.f32.mrf.mxu0
  %v4027 = vadd.f32 %v3587, %v4026
  %v4028 = vpop.f32.mrf.mxu0
  %v4029 = vadd.f32 %v3591, %v4028
  %4030 = vmatprep.mubr.f32.mxu0 0.0
  %4031 = vmatmul.mubr.f32.gmra.mxu0 %v3685
  %v4032 = vpop.f32.mrf.mxu0
  %v4033 = vadd.f32 %v3587, %v4032
  %v4034 = vpop.f32.mrf.mxu0
  %v4035 = vadd.f32 %v3591, %v4034
  %4036 = vmatprep.mubr.f32.mxu0 0.0
  %4037 = vmatmul.mubr.f32.gmra.mxu0 %v3688
  %v4038 = vpop.f32.mrf.mxu0
  %v4039 = vadd.f32 %v3587, %v4038
  %v4040 = vpop.f32.mrf.mxu0
  %v4041 = vadd.f32 %v3591, %v4040
  %4042 = vmatprep.mubr.f32.mxu0 0.0
  %4043 = vmatmul.mubr.f32.gmra.mxu0 %v3691
  %v4044 = vpop.f32.mrf.mxu0
  %v4045 = vadd.f32 %v3587, %v4044
  %v4046 = vpop.f32.mrf.mxu0
  %v4047 = vadd.f32 %v3591, %v4046
  %4048 = vmatprep.mubr.f32.mxu0 0.0
  %4049 = vmatmul.mubr.f32.gmra.mxu0 %v3694
  %v4050 = vpop.f32.mrf.mxu0
  %v4051 = vadd.f32 %v3587, %v4050
  %v4052 = vpop.f32.mrf.mxu0
  %v4053 = vadd.f32 %v3591, %v4052
  %4054 = vmatprep.mubr.f32.mxu0 0.0
  %4055 = vmatmul.mubr.f32.gmra.mxu0 %v3697
  %v4056 = vpop.f32.mrf.mxu0
  %v4057 = vadd.f32 %v3587, %v4056
  %v4058 = vpop.f32.mrf.mxu0
  %v4059 = vadd.f32 %v3591, %v4058
  %4060 = vmatprep.mubr.f32.mxu0 0.0
  %4061 = vmatmul.mubr.f32.gmra.mxu0 %v3700
  %v4062 = vpop.f32.mrf.mxu0
  %v4063 = vadd.f32 %v3587, %v4062
  %v4064 = vpop.f32.mrf.mxu0
  %v4065 = vadd.f32 %v3591, %v4064
  %4066 = vmatprep.mubr.f32.mxu0 0.0
  %4067 = vmatmul.mubr.f32.gmra.mxu0 %v3703
  %v4068 = vpop.f32.mrf.mxu0
  %v4069 = vadd.f32 %v3587, %v4068
  %v4070 = vpop.f32.mrf.mxu0
  %v4071 = vadd.f32 %v3591, %v4070
  %4072 = vmatprep.mubr.f32.mxu0 0.0
  %4073 = vmatmul.mubr.f32.gmra.mxu0 %v3706
  %v4074 = vpop.f32.mrf.mxu0
  %v4075 = vadd.f32 %v3587, %v4074
  %v4076 = vpop.f32.mrf.mxu0
  %v4077 = vadd.f32 %v3591, %v4076
  %4078 = vmatprep.mubr.f32.mxu0 0.0
  %4079 = vmatmul.mubr.f32.gmra.mxu0 %v3709
  %v4080 = vpop.f32.mrf.mxu0
  %v4081 = vadd.f32 %v3587, %v4080
  %v4082 = vpop.f32.mrf.mxu0
  %v4083 = vadd.f32 %v3591, %v4082
  %4084 = vmatprep.mubr.f32.mxu0 0.0
  %4085 = vmatmul.mubr.f32.gmra.mxu0 %v3712
  %v4086 = vpop.f32.mrf.mxu0
  %v4087 = vadd.f32 %v3587, %v4086
  %v4088 = vpop.f32.mrf.mxu0
  %v4089 = vadd.f32 %v3591, %v4088
  %4090 = vmatprep.mubr.f32.mxu0 0.0
  %4091 = vmatmul.mubr.f32.gmra.mxu0 %v3715
  %v4092 = vpop.f32.mrf.mxu0
  %v4093 = vadd.f32 %v3587, %v4092
  %v4094 = vpop.f32.mrf.mxu0
  %v4095 = vadd.f32 %v3591, %v4094
  %4096 = vmatprep.mubr.f32.mxu0 0.0
  %4097 = vmatmul.mubr.f32.gmra.mxu0 %v3718
  %v4098 = vpop.f32.mrf.mxu0
  %v4099 = vadd.f32 %v3587, %v4098
  %v4100 = vpop.f32.mrf.mxu0
  %v4101 = vadd.f32 %v3591, %v4100
  %4102 = vmatprep.mubr.f32.mxu0 0.0
  %4103 = vmatmul.mubr.f32.gmra.mxu0 %v3721
  %v4104 = vpop.f32.mrf.mxu0
  %v4105 = vadd.f32 %v3587, %v4104
  %v4106 = vpop.f32.mrf.mxu0
  %v4107 = vadd.f32 %v3591, %v4106
  %4108 = vmatprep.mubr.f32.mxu0 0.0
  %4109 = vmatmul.mubr.f32.gmra.mxu0 %v3724
  %v4110 = vpop.f32.mrf.mxu0
  %v4111 = vadd.f32 %v3587, %v4110
  %v4112 = vpop.f32.mrf.mxu0
  %v4113 = vadd.f32 %v3591, %v4112
  %4114 = vmatprep.mubr.f32.mxu0 0.0
  %4115 = vmatmul.mubr.f32.gmra.mxu0 %v3727
  %v4116 = vpop.f32.mrf.mxu0
  %v4117 = vadd.f32 %v3587, %v4116
  %v4118 = vpop.f32.mrf.mxu0
  %v4119 = vadd.f32 %v3591, %v4118
  %4120 = vmatprep.mubr.f32.mxu0 0.0
  %4121 = vmatmul.mubr.f32.gmra.mxu0 %v3730
  %v4122 = vpop.f32.mrf.mxu0
  %v4123 = vadd.f32 %v3587, %v4122
  %v4124 = vpop.f32.mrf.mxu0
  %v4125 = vadd.f32 %v3591, %v4124
  %4126 = vmatprep.mubr.f32.mxu0 0.0
  %4127 = vmatmul.mubr.f32.gmra.mxu0 %v3733
  %v4128 = vpop.f32.mrf.mxu0
  %v4129 = vadd.f32 %v3587, %v4128
  %v4130 = vpop.f32.mrf.mxu0
  %v4131 = vadd.f32 %v3591, %v4130
  %4132 = vmatprep.mubr.f32.mxu0 0.0
  %4133 = vmatmul.mubr.f32.gmra.mxu0 %v3736
  %v4134 = vpop.f32.mrf.mxu0
  %v4135 = vadd.f32 %v3587, %v4134
  %v4136 = vpop.f32.mrf.mxu0
  %v4137 = vadd.f32 %v3591, %v4136
  %4138 = vmatprep.mubr.f32.mxu0 0.0
  %4139 = vmatmul.mubr.f32.gmra.mxu0 %v3739
  %v4140 = vpop.f32.mrf.mxu0
  %v4141 = vadd.f32 %v3587, %v4140
  %v4142 = vpop.f32.mrf.mxu0
  %v4143 = vadd.f32 %v3591, %v4142
  %4144 = vmatprep.mubr.f32.mxu0 0.0
  %4145 = vmatmul.mubr.f32.gmra.mxu0 %v3742
  %v4146 = vpop.f32.mrf.mxu0
  %v4147 = vadd.f32 %v3587, %v4146
  %v4148 = vpop.f32.mrf.mxu0
  %v4149 = vadd.f32 %v3591, %v4148
  %4150 = vmatprep.mubr.f32.mxu0 0.0
  %4151 = vmatmul.mubr.f32.gmra.mxu0 %v3745
  %v4152 = vpop.f32.mrf.mxu0
  %v4153 = vadd.f32 %v3587, %v4152
  %v4154 = vpop.f32.mrf.mxu0
  %v4155 = vadd.f32 %v3591, %v4154
  %4156 = vmatprep.mubr.f32.mxu0 0.0
  %4157 = vmatmul.mubr.f32.gmra.mxu0 %v3748
  %v4158 = vpop.f32.mrf.mxu0
  %v4159 = vadd.f32 %v3587, %v4158
  %v4160 = vpop.f32.mrf.mxu0
  %v4161 = vadd.f32 %v3591, %v4160
  %4162 = vmatprep.mubr.f32.mxu0 0.0
  %4163 = vmatmul.mubr.f32.gmra.mxu0 %v3751
  %v4164 = vpop.f32.mrf.mxu0
  %v4165 = vadd.f32 %v3587, %v4164
  %v4166 = vpop.f32.mrf.mxu0
  %v4167 = vadd.f32 %v3591, %v4166
  %4168 = vmatprep.mubr.f32.mxu0 0.0
  %4169 = vmatmul.mubr.f32.gmra.mxu0 %v3754
  %v4170 = vpop.f32.mrf.mxu0
  %v4171 = vadd.f32 %v3587, %v4170
  %v4172 = vpop.f32.mrf.mxu0
  %v4173 = vadd.f32 %v3591, %v4172
  %4174 = vmatprep.mubr.f32.mxu0 0.0
  %4175 = vmatmul.mubr.f32.gmra.mxu0 %v3757
  %v4176 = vpop.f32.mrf.mxu0
  %v4177 = vadd.f32 %v3587, %v4176
  %v4178 = vpop.f32.mrf.mxu0
  %v4179 = vadd.f32 %v3591, %v4178
  %4180 = vmatprep.mubr.f32.mxu0 0.0
  %4181 = vmatmul.mubr.f32.gmra.mxu0 %v3760
  %v4182 = vpop.f32.mrf.mxu0
  %v4183 = vadd.f32 %v3587, %v4182
  %v4184 = vpop.f32.mrf.mxu0
  %v4185 = vadd.f32 %v3591, %v4184
  %4186 = vmatprep.mubr.f32.mxu0 0.0
  %4187 = vmatmul.mubr.f32.gmra.mxu0 %v3763
  %v4188 = vpop.f32.mrf.mxu0
  %v4189 = vadd.f32 %v3587, %v4188
  %v4190 = vpop.f32.mrf.mxu0
  %v4191 = vadd.f32 %v3591, %v4190
  %4192 = vmatprep.mubr.f32.mxu0 0.0
  %4193 = vmatmul.mubr.f32.gmra.mxu0 %v3766
  %v4194 = vpop.f32.mrf.mxu0
  %v4195 = vadd.f32 %v3587, %v4194
  %v4196 = vpop.f32.mrf.mxu0
  %v4197 = vadd.f32 %v3591, %v4196
  %4198 = vmatprep.mubr.f32.mxu0 0.0
  %4199 = vmatmul.mubr.f32.gmra.mxu0 %v3769
  %v4200 = vpop.f32.mrf.mxu0
  %v4201 = vadd.f32 %v3587, %v4200
  %v4202 = vpop.f32.mrf.mxu0
  %v4203 = vadd.f32 %v3591, %v4202
  %4204 = vmatprep.mubr.f32.mxu0 0.0
  %4205 = vmatmul.mubr.f32.gmra.mxu0 %v3772
  %v4206 = vpop.f32.mrf.mxu0
  %v4207 = vadd.f32 %v3587, %v4206
  %v4208 = vpop.f32.mrf.mxu0
  %v4209 = vadd.f32 %v3591, %v4208
  %4210 = vmatprep.mubr.f32.mxu0 0.0
  %4211 = vmatmul.mubr.f32.gmra.mxu0 %v3775
  %v4212 = vpop.f32.mrf.mxu0
  %v4213 = vadd.f32 %v3587, %v4212
  %v4214 = vpop.f32.mrf.mxu0
  %v4215 = vadd.f32 %v3591, %v4214
  %4216 = vmatprep.mubr.f32.mxu0 0.0
  %4217 = vmatmul.mubr.f32.gmra.mxu0 %v3778
  %v4218 = vpop.f32.mrf.mxu0
  %v4219 = vadd.f32 %v3587, %v4218
  %v4220 = vpop.f32.mrf.mxu0
  %v4221 = vadd.f32 %v3591, %v4220
  %4222 = vmatprep.mubr.f32.mxu0 0.0
  %4223 = vmatmul.mubr.f32.gmra.mxu0 %v3781
  %v4224 = vpop.f32.mrf.mxu0
  %v4225 = vadd.f32 %v3587, %v4224
  %v4226 = vpop.f32.mrf.mxu0
  %v4227 = vadd.f32 %v3591, %v4226
  %4228 = vmatprep.mubr.f32.mxu0 0.0
  %4229 = vmatmul.mubr.f32.gmra.mxu0 %v3784
  %v4230 = vpop.f32.mrf.mxu0
  %v4231 = vadd.f32 %v3587, %v4230
  %v4232 = vpop.f32.mrf.mxu0
  %v4233 = vadd.f32 %v3591, %v4232
  %4234 = vdwg.mxu0
  %4235 = vst [vmem:[%s6] sm:$0xff] %v3853
  %vm4236 = vcmask 130048
  %4237 = vst.msk [vmem:[%s6 + $0x8] sm:$0xff] %vm4236, %v3855
  %4238 = vst [vmem:[%s6 + $0x10] sm:$0xff] %v3859
  %4239 = vst.msk [vmem:[%s6 + $0x18] sm:$0xff] %vm4236, %v3861
  %4240 = vst [vmem:[%s6 + $0x20] sm:$0xff] %v3865
  %4241 = vst.msk [vmem:[%s6 + $0x28] sm:$0xff] %vm4236, %v3867
  %4242 = vst [vmem:[%s6 + $0x30] sm:$0xff] %v3871
  %4243 = vst.msk [vmem:[%s6 + $0x38] sm:$0xff] %vm4236, %v3873
  %4244 = vst [vmem:[%s6 + $0x40] sm:$0xff] %v3877
  %4245 = vst.msk [vmem:[%s6 + $0x48] sm:$0xff] %vm4236, %v3879
  %4246 = vst [vmem:[%s6 + $0x50] sm:$0xff] %v3883
  %4247 = vst.msk [vmem:[%s6 + $0x58] sm:$0xff] %vm4236, %v3885
  %4248 = vst [vmem:[%s6 + $0x60] sm:$0xff] %v3889
  %4249 = vst.msk [vmem:[%s6 + $0x68] sm:$0xff] %vm4236, %v3891
  %4250 = vst [vmem:[%s6 + $0x70] sm:$0xff] %v3895
  %4251 = vst.msk [vmem:[%s6 + $0x78] sm:$0xff] %vm4236, %v3897
  %4252 = vst [vmem:[%s6 + $0x80] sm:$0xff] %v3901
  %4253 = vst.msk [vmem:[%s6 + $0x88] sm:$0xff] %vm4236, %v3903
  %4254 = vst [vmem:[%s6 + $0x90] sm:$0xff] %v3907
  %4255 = vst.msk [vmem:[%s6 + $0x98] sm:$0xff] %vm4236, %v3909
  %4256 = vst [vmem:[%s6 + $0xa0] sm:$0xff] %v3913
  %4257 = vst.msk [vmem:[%s6 + $0xa8] sm:$0xff] %vm4236, %v3915
  %4258 = vst [vmem:[%s6 + $0xb0] sm:$0xff] %v3919
  %4259 = vst.msk [vmem:[%s6 + $0xb8] sm:$0xff] %vm4236, %v3921
  %4260 = vst [vmem:[%s6 + $0xc0] sm:$0xff] %v3925
  %4261 = vst.msk [vmem:[%s6 + $0xc8] sm:$0xff] %vm4236, %v3927
  %4262 = vst [vmem:[%s6 + $0xd0] sm:$0xff] %v3931
  %4263 = vst.msk [vmem:[%s6 + $0xd8] sm:$0xff] %vm4236, %v3933
  %4264 = vst [vmem:[%s6 + $0xe0] sm:$0xff] %v3937
  %4265 = vst.msk [vmem:[%s6 + $0xe8] sm:$0xff] %vm4236, %v3939
  %4266 = vst [vmem:[%s6 + $0xf0] sm:$0xff] %v3943
  %4267 = vst.msk [vmem:[%s6 + $0xf8] sm:$0xff] %vm4236, %v3945
  %4268 = vst [vmem:[%s6 + $0x100] sm:$0xff] %v3949
  %4269 = vst.msk [vmem:[%s6 + $0x108] sm:$0xff] %vm4236, %v3951
  %4270 = vst [vmem:[%s6 + $0x110] sm:$0xff] %v3955
  %4271 = vst.msk [vmem:[%s6 + $0x118] sm:$0xff] %vm4236, %v3957
  %4272 = vst [vmem:[%s6 + $0x120] sm:$0xff] %v3961
  %4273 = vst.msk [vmem:[%s6 + $0x128] sm:$0xff] %vm4236, %v3963
  %4274 = vst [vmem:[%s6 + $0x130] sm:$0xff] %v3967
  %4275 = vst.msk [vmem:[%s6 + $0x138] sm:$0xff] %vm4236, %v3969
  %4276 = vst [vmem:[%s6 + $0x140] sm:$0xff] %v3973
  %4277 = vst.msk [vmem:[%s6 + $0x148] sm:$0xff] %vm4236, %v3975
  %4278 = vst [vmem:[%s6 + $0x150] sm:$0xff] %v3979
  %4279 = vst.msk [vmem:[%s6 + $0x158] sm:$0xff] %vm4236, %v3981
  %4280 = vst [vmem:[%s6 + $0x160] sm:$0xff] %v3985
  %4281 = vst.msk [vmem:[%s6 + $0x168] sm:$0xff] %vm4236, %v3987
  %4282 = vst [vmem:[%s6 + $0x170] sm:$0xff] %v3991
  %4283 = vst.msk [vmem:[%s6 + $0x178] sm:$0xff] %vm4236, %v3993
  %4284 = vst [vmem:[%s6 + $0x180] sm:$0xff] %v3997
  %4285 = vst.msk [vmem:[%s6 + $0x188] sm:$0xff] %vm4236, %v3999
  %4286 = vst [vmem:[%s6 + $0x190] sm:$0xff] %v4003
  %4287 = vst.msk [vmem:[%s6 + $0x198] sm:$0xff] %vm4236, %v4005
  %4288 = vst [vmem:[%s6 + $0x1a0] sm:$0xff] %v4009
  %4289 = vst.msk [vmem:[%s6 + $0x1a8] sm:$0xff] %vm4236, %v4011
  %4290 = vst [vmem:[%s6 + $0x1b0] sm:$0xff] %v4015
  %4291 = vst.msk [vmem:[%s6 + $0x1b8] sm:$0xff] %vm4236, %v4017
  %4292 = vst [vmem:[%s6 + $0x1c0] sm:$0xff] %v4021
  %4293 = vst.msk [vmem:[%s6 + $0x1c8] sm:$0xff] %vm4236, %v4023
  %4294 = vst [vmem:[%s6 + $0x1d0] sm:$0xff] %v4027
  %4295 = vst.msk [vmem:[%s6 + $0x1d8] sm:$0xff] %vm4236, %v4029
  %4296 = vst [vmem:[%s6 + $0x1e0] sm:$0xff] %v4033
  %4297 = vst.msk [vmem:[%s6 + $0x1e8] sm:$0xff] %vm4236, %v4035
  %4298 = vst [vmem:[%s6 + $0x1f0] sm:$0xff] %v4039
  %4299 = vst.msk [vmem:[%s6 + $0x1f8] sm:$0xff] %vm4236, %v4041
  %4300 = vst [vmem:[%s6 + $0x200] sm:$0xff] %v4045
  %4301 = vst.msk [vmem:[%s6 + $0x208] sm:$0xff] %vm4236, %v4047
  %4302 = vst [vmem:[%s6 + $0x210] sm:$0xff] %v4051
  %4303 = vst.msk [vmem:[%s6 + $0x218] sm:$0xff] %vm4236, %v4053
  %4304 = vst [vmem:[%s6 + $0x220] sm:$0xff] %v4057
  %4305 = vst.msk [vmem:[%s6 + $0x228] sm:$0xff] %vm4236, %v4059
  %4306 = vst [vmem:[%s6 + $0x230] sm:$0xff] %v4063
  %4307 = vst.msk [vmem:[%s6 + $0x238] sm:$0xff] %vm4236, %v4065
  %4308 = vst [vmem:[%s6 + $0x240] sm:$0xff] %v4069
  %4309 = vst.msk [vmem:[%s6 + $0x248] sm:$0xff] %vm4236, %v4071
  %4310 = vst [vmem:[%s6 + $0x250] sm:$0xff] %v4075
  %4311 = vst.msk [vmem:[%s6 + $0x258] sm:$0xff] %vm4236, %v4077
  %4312 = vst [vmem:[%s6 + $0x260] sm:$0xff] %v4081
  %4313 = vst.msk [vmem:[%s6 + $0x268] sm:$0xff] %vm4236, %v4083
  %4314 = vst [vmem:[%s6 + $0x270] sm:$0xff] %v4087
  %4315 = vst.msk [vmem:[%s6 + $0x278] sm:$0xff] %vm4236, %v4089
  %4316 = vst [vmem:[%s6 + $0x280] sm:$0xff] %v4093
  %4317 = vst.msk [vmem:[%s6 + $0x288] sm:$0xff] %vm4236, %v4095
  %4318 = vst [vmem:[%s6 + $0x290] sm:$0xff] %v4099
  %4319 = vst.msk [vmem:[%s6 + $0x298] sm:$0xff] %vm4236, %v4101
  %4320 = vst [vmem:[%s6 + $0x2a0] sm:$0xff] %v4105
  %4321 = vst.msk [vmem:[%s6 + $0x2a8] sm:$0xff] %vm4236, %v4107
  %4322 = vst [vmem:[%s6 + $0x2b0] sm:$0xff] %v4111
  %4323 = vst.msk [vmem:[%s6 + $0x2b8] sm:$0xff] %vm4236, %v4113
  %4324 = vst [vmem:[%s6 + $0x2c0] sm:$0xff] %v4117
  %4325 = vst.msk [vmem:[%s6 + $0x2c8] sm:$0xff] %vm4236, %v4119
  %4326 = vst [vmem:[%s6 + $0x2d0] sm:$0xff] %v4123
  %4327 = vst.msk [vmem:[%s6 + $0x2d8] sm:$0xff] %vm4236, %v4125
  %4328 = vst [vmem:[%s6 + $0x2e0] sm:$0xff] %v4129
  %4329 = vst.msk [vmem:[%s6 + $0x2e8] sm:$0xff] %vm4236, %v4131
  %4330 = vst [vmem:[%s6 + $0x2f0] sm:$0xff] %v4135
  %4331 = vst.msk [vmem:[%s6 + $0x2f8] sm:$0xff] %vm4236, %v4137
  %4332 = vst [vmem:[%s6 + $0x300] sm:$0xff] %v4141
  %4333 = vst.msk [vmem:[%s6 + $0x308] sm:$0xff] %vm4236, %v4143
  %4334 = vst [vmem:[%s6 + $0x310] sm:$0xff] %v4147
  %4335 = vst.msk [vmem:[%s6 + $0x318] sm:$0xff] %vm4236, %v4149
  %4336 = vst [vmem:[%s6 + $0x320] sm:$0xff] %v4153
  %4337 = vst.msk [vmem:[%s6 + $0x328] sm:$0xff] %vm4236, %v4155
  %4338 = vst [vmem:[%s6 + $0x330] sm:$0xff] %v4159
  %4339 = vst.msk [vmem:[%s6 + $0x338] sm:$0xff] %vm4236, %v4161
  %4340 = vst [vmem:[%s6 + $0x340] sm:$0xff] %v4165
  %4341 = vst.msk [vmem:[%s6 + $0x348] sm:$0xff] %vm4236, %v4167
  %4342 = vst [vmem:[%s6 + $0x350] sm:$0xff] %v4171
  %4343 = vst.msk [vmem:[%s6 + $0x358] sm:$0xff] %vm4236, %v4173
  %4344 = vst [vmem:[%s6 + $0x360] sm:$0xff] %v4177
  %4345 = vst.msk [vmem:[%s6 + $0x368] sm:$0xff] %vm4236, %v4179
  %4346 = vst [vmem:[%s6 + $0x370] sm:$0xff] %v4183
  %4347 = vst.msk [vmem:[%s6 + $0x378] sm:$0xff] %vm4236, %v4185
  %4348 = vst [vmem:[%s6 + $0x380] sm:$0xff] %v4189
  %4349 = vst.msk [vmem:[%s6 + $0x388] sm:$0xff] %vm4236, %v4191
  %4350 = vst [vmem:[%s6 + $0x390] sm:$0xff] %v4195
  %4351 = vst.msk [vmem:[%s6 + $0x398] sm:$0xff] %vm4236, %v4197
  %4352 = vst [vmem:[%s6 + $0x3a0] sm:$0xff] %v4201
  %4353 = vst.msk [vmem:[%s6 + $0x3a8] sm:$0xff] %vm4236, %v4203
  %4354 = vst [vmem:[%s6 + $0x3b0] sm:$0xff] %v4207
  %4355 = vst.msk [vmem:[%s6 + $0x3b8] sm:$0xff] %vm4236, %v4209
  %4356 = vst [vmem:[%s6 + $0x3c0] sm:$0xff] %v4213
  %4357 = vst.msk [vmem:[%s6 + $0x3c8] sm:$0xff] %vm4236, %v4215
  %4358 = vst [vmem:[%s6 + $0x3d0] sm:$0xff] %v4219
  %4359 = vst.msk [vmem:[%s6 + $0x3d8] sm:$0xff] %vm4236, %v4221
  %4360 = vst [vmem:[%s6 + $0x3e0] sm:$0xff] %v4225
  %4361 = vst.msk [vmem:[%s6 + $0x3e8] sm:$0xff] %vm4236, %v4227
  %4362 = vst [vmem:[%s6 + $0x3f0] sm:$0xff] %v4231
  %4363 = vst.msk [vmem:[%s6 + $0x3f8] sm:$0xff] %vm4236, %v4233
  // Predicated region
  $region26: #{tpu_custom_call.1} parent=0 // pred_check
    _
  $region27: #{tpu_custom_call.1} parent=0 // pred_check_branch
    %4365 = sbr.rel (0) target = $region29
  $region28: #{tpu_custom_call.1} parent=0 // pred_region
    _
  $region29: #{tpu_custom_call.1} parent=0 // pred_fallthru
    _
  // Predicated region
  $region30: #{tpu_custom_call.1} parent=0 // pred_check
    _
  $region31: #{tpu_custom_call.1} parent=0 // pred_check_branch
    %4367 = sbr.rel (0) target = $region33
  $region32: #{tpu_custom_call.1} parent=0 // pred_region
    _
  $region33: #{tpu_custom_call.1} parent=0 // pred_fallthru
    _

</llo_original>
